<compile_context>
chip_gen: v7x
topology: tpu7x:2x2x1
jax: 0.10.0
libtpu: 0.0.40
codegen_flags: <defaults>
</compile_context>

<pallas_src>
from math import ceil

import jax
import jax.numpy as jnp
from jax import lax
from jax.experimental import pallas as pl
from jax.experimental.pallas import tpu as pltpu

EPS = 1e-15


# ----------------------------------------------------------------------------- fused kernel

def net_kernel(x_ref, adj_ref,
               w1p_r, w1p_t, b1p,       # gnn1_pool
               w1e_r, w1e_t, b1e,       # gnn1_embed
               w2p_r, w2p_t, b2p,       # gnn2_pool
               w2e_r, w2e_t, b2e,       # gnn2_embed
               w3_r, w3_t, b3,          # gnn3_embed
               wl1, bl1, wl2, bl2,      # lin1, lin2
               logp_ref, emb_ref, loss_ref):
    """Whole DiffPool forward for one batch element (grid axis = batch)."""
    x0 = x_ref[0]                        # (N, Fin)
    adj0 = adj_ref[0]                    # (N, N)

    def sage(x, adj, wr, wt, b):
        # DenseSAGEConv(normalize=False, mask=None)
        agg = jnp.dot(adj, x, preferred_element_type=jnp.float32)
        deg = jnp.sum(adj, axis=-1, keepdims=True)
        agg = agg * pl.reciprocal(jnp.maximum(deg, 1.0), approx=True)
        return (jnp.dot(agg, wr[...], preferred_element_type=jnp.float32)
                + jnp.dot(x, wt[...], preferred_element_type=jnp.float32)
                + b[...])

    def softmax(s):
        s = s - jnp.max(s, axis=-1, keepdims=True)
        e = jnp.exp(s)
        return e * pl.reciprocal(jnp.sum(e, axis=-1, keepdims=True), approx=True)

    def diff_pool(x, adj, s):
        # dense_diff_pool (mask=None); returns un-normalized per-batch loss partials.
        s = softmax(s)                                                    # (N, C)
        out_x = lax.dot_general(s, x, (((0,), (0,)), ((), ())),
                                preferred_element_type=jnp.float32)       # s^T x   -> (C, F)
        sta = lax.dot_general(s, adj, (((0,), (0,)), ((), ())),
                              preferred_element_type=jnp.float32)         # s^T adj -> (C, N)
        out_adj = jnp.dot(sta, s, preferred_element_type=jnp.float32)     # (C, C)
        sst = lax.dot_general(s, s, (((1,), (1,)), ((), ())),
                              preferred_element_type=jnp.float32)         # s s^T   -> (N, N)
        d = adj - sst
        link_sq = jnp.sum(d * d)                                          # scalar partial
        ent = jnp.sum(-s * jnp.log(s + EPS))                              # scalar partial
        return out_x, out_adj, link_sq, ent

    # --- stage 1 ---
    s1 = sage(x0, adj0, w1p_r, w1p_t, b1p)
    h = sage(x0, adj0, w1e_r, w1e_t, b1e)
    h, adj1, lsq1, ent1 = diff_pool(h, adj0, s1)

    # --- stage 2 ---
    s2 = sage(h, adj1, w2p_r, w2p_t, b2p)
    h = sage(h, adj1, w2e_r, w2e_t, b2e)
    h, adj2, lsq2, ent2 = diff_pool(h, adj1, s2)

    # --- stage 3 + head ---
    h = sage(h, adj2, w3_r, w3_t, b3)

    emb = jnp.mean(h, axis=0, keepdims=True)                              # (1, 192)
    z = jnp.maximum(jnp.dot(emb, wl1[...], preferred_element_type=jnp.float32) + bl1[...], 0.0)
    logits = jnp.dot(z, wl2[...], preferred_element_type=jnp.float32) + bl2[...]   # (1, 2)
    m = jnp.max(logits, axis=-1, keepdims=True)
    lse = m + jnp.log(jnp.sum(jnp.exp(logits - m), axis=-1, keepdims=True))

    logp_ref[0] = logits - lse
    emb_ref[0] = emb

    # Pack the four per-batch loss partials into one lane-row output (single store).
    lane = lax.broadcasted_iota(jnp.int32, (1, 4), 1)
    loss_ref[0] = (jnp.where(lane == 0, lsq1, 0.0)
                   + jnp.where(lane == 1, ent1, 0.0)
                   + jnp.where(lane == 2, lsq2, 0.0)
                   + jnp.where(lane == 3, ent2, 0.0))


# ----------------------------------------------------------------------------- wrapper

def net_forward(x, adj, params):
    B, N, Fin = x.shape
    C1 = params["gnn1_pool"][0].shape[1]
    F = params["gnn1_embed"][0].shape[1]
    nclass = params["lin2"][0].shape[1]

    weights = []
    for name in ("gnn1_pool", "gnn1_embed", "gnn2_pool", "gnn2_embed", "gnn3_embed"):
        weights.extend(params[name])
    weights.extend(params["lin1"])
    weights.extend(params["lin2"])

    def full_spec(a):
        nd = a.ndim
        return pl.BlockSpec(a.shape, lambda b: (0,) * nd)

    in_specs = ([pl.BlockSpec((1, N, Fin), lambda b: (b, 0, 0)),
                 pl.BlockSpec((1, N, N), lambda b: (b, 0, 0))]
                + [full_spec(a) for a in weights])

    out_specs = (pl.BlockSpec((1, 1, nclass), lambda b: (b, 0, 0)),
                 pl.BlockSpec((1, 1, F), lambda b: (b, 0, 0)),
                 pl.BlockSpec((1, 1, 4), lambda b: (b, 0, 0)))
    out_shape = (jax.ShapeDtypeStruct((B, 1, nclass), jnp.float32),
                 jax.ShapeDtypeStruct((B, 1, F), jnp.float32),
                 jax.ShapeDtypeStruct((B, 1, 4), jnp.float32))

    logp, emb, lossp = pl.pallas_call(
        net_kernel,
        grid=(B,),
        in_specs=in_specs,
        out_specs=out_specs,
        out_shape=out_shape,
        compiler_params=pltpu.CompilerParams(dimension_semantics=("parallel",)),
    )(x, adj, *weights)

    # Per-stage normalization of the pooling losses (matches PyG dense_diff_pool):
    # link_i = ||adj_i - s_i s_i^T||_F / adj_i.numel(), ent_i = mean over (B, nodes_i).
    l1 = jnp.sqrt(jnp.sum(lossp[:, 0, 0])) / (B * N * N)
    l2 = jnp.sqrt(jnp.sum(lossp[:, 0, 2])) / (B * C1 * C1)
    e1 = jnp.sum(lossp[:, 0, 1]) / (B * N)
    e2 = jnp.sum(lossp[:, 0, 3]) / (B * C1)

    return logp.reshape(B, nclass), l1 + l2, e1 + e2, emb.reshape(B, F)


# ----------------------------------------------------------------------------- params

def init_params(key):
    n1 = ceil(0.25 * 111)   # 28 clusters after first pool
    n2 = ceil(0.25 * n1)    # 7 clusters after second pool

    def glorot(k, shape):
        return (jax.random.normal(k, shape, jnp.float32) / jnp.sqrt(shape[0])).astype(jnp.float32)

    def init_sage(k, fin, fout):
        k1, k2, k3 = jax.random.split(k, 3)
        return (glorot(k1, (fin, fout)),
                glorot(k2, (fin, fout)),
                (0.01 * jax.random.normal(k3, (1, fout), jnp.float32)).astype(jnp.float32))

    def init_lin(k, fin, fout):
        k1, k2 = jax.random.split(k)
        return (glorot(k1, (fin, fout)),
                (0.01 * jax.random.normal(k2, (1, fout), jnp.float32)).astype(jnp.float32))

    ks = jax.random.split(key, 7)
    return {
        "gnn1_pool": init_sage(ks[0], 37, n1),
        "gnn1_embed": init_sage(ks[1], 37, 192),
        "gnn2_pool": init_sage(ks[2], 192, n2),
        "gnn2_embed": init_sage(ks[3], 192, 192),
        "gnn3_embed": init_sage(ks[4], 192, 192),
        "lin1": init_lin(ks[5], 192, 192),
        "lin2": init_lin(ks[6], 192, 2),
    }


# ----------------------------------------------------------------------------- main

if __name__ == "__main__":
    key = jax.random.PRNGKey(0)
    kx, kadj, kparams = jax.random.split(key, 3)

    B, N, F_IN = 2, 16, 37
    x = jax.random.normal(kx, (B, N, F_IN), jnp.float32)
    a = (jax.random.uniform(kadj, (B, N, N)) > 0.5).astype(jnp.float32)
    adj = jnp.maximum(a, jnp.swapaxes(a, 1, 2))                      # symmetric 0/1 adjacency
    adj = jnp.maximum(adj, jnp.eye(N, dtype=jnp.float32)[None])      # self loops

    params = init_params(kparams)

    fwd = jax.jit(net_forward)
    logp, link_loss, ent_loss, node_emb = fwd(x, adj, params)
    jax.block_until_ready((logp, link_loss, ent_loss, node_emb))

    assert logp.shape == (B, 2)
    assert node_emb.shape == (B, 192)
    assert link_loss.shape == () and ent_loss.shape == ()
    print("KERNEL_OK")
</pallas_src>

<mosaic_0001>
module attributes {stable_mosaic.version = 11 : i64} {
  func.func @net_kernel(%arg0: i32, %arg1: memref<1x16x37xf32, #tpu.memory_space<vmem>>, %arg2: memref<1x16x16xf32, #tpu.memory_space<vmem>>, %arg3: memref<37x28xf32, #tpu.memory_space<vmem>>, %arg4: memref<37x28xf32, #tpu.memory_space<vmem>>, %arg5: memref<1x28xf32, #tpu.memory_space<vmem>>, %arg6: memref<37x192xf32, #tpu.memory_space<vmem>>, %arg7: memref<37x192xf32, #tpu.memory_space<vmem>>, %arg8: memref<1x192xf32, #tpu.memory_space<vmem>>, %arg9: memref<192x7xf32, #tpu.memory_space<vmem>>, %arg10: memref<192x7xf32, #tpu.memory_space<vmem>>, %arg11: memref<1x7xf32, #tpu.memory_space<vmem>>, %arg12: memref<192x192xf32, #tpu.memory_space<vmem>>, %arg13: memref<192x192xf32, #tpu.memory_space<vmem>>, %arg14: memref<1x192xf32, #tpu.memory_space<vmem>>, %arg15: memref<192x192xf32, #tpu.memory_space<vmem>>, %arg16: memref<192x192xf32, #tpu.memory_space<vmem>>, %arg17: memref<1x192xf32, #tpu.memory_space<vmem>>, %arg18: memref<192x192xf32, #tpu.memory_space<vmem>>, %arg19: memref<1x192xf32, #tpu.memory_space<vmem>>, %arg20: memref<192x2xf32, #tpu.memory_space<vmem>>, %arg21: memref<1x2xf32, #tpu.memory_space<vmem>>, %arg22: memref<1x1x2xf32, #tpu.memory_space<vmem>>, %arg23: memref<1x1x192xf32, #tpu.memory_space<vmem>>, %arg24: memref<1x1x4xf32, #tpu.memory_space<vmem>>) attributes {dimension_semantics = [#tpu.dimension_semantics<parallel>], iteration_bounds = array<i64: 2>, scalar_prefetch = 0 : i64, scratch_operands = 0 : i64, tpu.core_type = #tpu.core_type<tc>, window_params = [{transform_indices = @transform_0, window_bounds = array<i64: 1, 16, 37>}, {transform_indices = @transform_1, window_bounds = array<i64: 1, 16, 16>}, {pipeline_mode = #tpu.pipeline_mode<synchronous>, transform_indices = @transform_2, window_bounds = array<i64: 37, 28>}, {pipeline_mode = #tpu.pipeline_mode<synchronous>, transform_indices = @transform_3, window_bounds = array<i64: 37, 28>}, {pipeline_mode = #tpu.pipeline_mode<synchronous>, transform_indices = @transform_4, window_bounds = array<i64: 1, 28>}, {pipeline_mode = #tpu.pipeline_mode<synchronous>, transform_indices = @transform_5, window_bounds = array<i64: 37, 192>}, {pipeline_mode = #tpu.pipeline_mode<synchronous>, transform_indices = @transform_6, window_bounds = array<i64: 37, 192>}, {pipeline_mode = #tpu.pipeline_mode<synchronous>, transform_indices = @transform_7, window_bounds = array<i64: 1, 192>}, {pipeline_mode = #tpu.pipeline_mode<synchronous>, transform_indices = @transform_8, window_bounds = array<i64: 192, 7>}, {pipeline_mode = #tpu.pipeline_mode<synchronous>, transform_indices = @transform_9, window_bounds = array<i64: 192, 7>}, {pipeline_mode = #tpu.pipeline_mode<synchronous>, transform_indices = @transform_10, window_bounds = array<i64: 1, 7>}, {pipeline_mode = #tpu.pipeline_mode<synchronous>, transform_indices = @transform_11, window_bounds = array<i64: 192, 192>}, {pipeline_mode = #tpu.pipeline_mode<synchronous>, transform_indices = @transform_12, window_bounds = array<i64: 192, 192>}, {pipeline_mode = #tpu.pipeline_mode<synchronous>, transform_indices = @transform_13, window_bounds = array<i64: 1, 192>}, {pipeline_mode = #tpu.pipeline_mode<synchronous>, transform_indices = @transform_14, window_bounds = array<i64: 192, 192>}, {pipeline_mode = #tpu.pipeline_mode<synchronous>, transform_indices = @transform_15, window_bounds = array<i64: 192, 192>}, {pipeline_mode = #tpu.pipeline_mode<synchronous>, transform_indices = @transform_16, window_bounds = array<i64: 1, 192>}, {pipeline_mode = #tpu.pipeline_mode<synchronous>, transform_indices = @transform_17, window_bounds = array<i64: 192, 192>}, {pipeline_mode = #tpu.pipeline_mode<synchronous>, transform_indices = @transform_18, window_bounds = array<i64: 1, 192>}, {pipeline_mode = #tpu.pipeline_mode<synchronous>, transform_indices = @transform_19, window_bounds = array<i64: 192, 2>}, {pipeline_mode = #tpu.pipeline_mode<synchronous>, transform_indices = @transform_20, window_bounds = array<i64: 1, 2>}, {transform_indices = @transform_21, window_bounds = array<i64: 1, 1, 2>}, {transform_indices = @transform_22, window_bounds = array<i64: 1, 1, 192>}, {transform_indices = @transform_23, window_bounds = array<i64: 1, 1, 4>}]} {
    %c0 = arith.constant 0 : index
    %c0_0 = arith.constant 0 : index
    %c0_1 = arith.constant 0 : index
    %0 = vector.load %arg1[%c0, %c0_0, %c0_1] : memref<1x16x37xf32, #tpu.memory_space<vmem>>, vector<1x16x37xf32>
    %1 = vector.shape_cast %0 : vector<1x16x37xf32> to vector<16x37xf32>
    %c0_2 = arith.constant 0 : index
    %c0_3 = arith.constant 0 : index
    %c0_4 = arith.constant 0 : index
    %2 = vector.load %arg2[%c0_2, %c0_3, %c0_4] : memref<1x16x16xf32, #tpu.memory_space<vmem>>, vector<1x16x16xf32>
    %3 = vector.shape_cast %2 : vector<1x16x16xf32> to vector<16x16xf32>
    %cst = arith.constant dense<0.000000e+00> : vector<16x37xf32>
    %4 = tpu.matmul %3, %1, %cst {dimension_numbers = #tpu.dot_dimension_numbers<[1], [0], [0], [1], [0, 0, 1, 1], [], []>} : vector<16x16xf32>, vector<16x37xf32>, vector<16x37xf32> -> vector<16x37xf32>
    %cst_5 = arith.constant dense<0.000000e+00> : vector<16xf32>
    %5 = vector.multi_reduction <add>, %3, %cst_5 [1] : vector<16x16xf32> to vector<16xf32>
    %6 = vector.shape_cast %5 : vector<16xf32> to vector<16x1xf32>
    %cst_6 = arith.constant 1.000000e+00 : f32
    %7 = vector.broadcast %cst_6 : f32 to vector<16x1xf32>
    %8 = arith.maximumf %6, %7 : vector<16x1xf32>
    %9 = tpu.reciprocal %8 {approx = true} : vector<16x1xf32> -> vector<16x1xf32>
    %10 = vector.broadcast %9 : vector<16x1xf32> to vector<16x37xf32>
    %11 = arith.mulf %4, %10 : vector<16x37xf32>
    %c0_7 = arith.constant 0 : index
    %c0_8 = arith.constant 0 : index
    %12 = vector.load %arg3[%c0_7, %c0_8] : memref<37x28xf32, #tpu.memory_space<vmem>>, vector<37x28xf32>
    %cst_9 = arith.constant dense<0.000000e+00> : vector<16x28xf32>
    %13 = tpu.matmul %11, %12, %cst_9 {dimension_numbers = #tpu.dot_dimension_numbers<[1], [0], [0], [1], [0, 0, 1, 1], [], []>} : vector<16x37xf32>, vector<37x28xf32>, vector<16x28xf32> -> vector<16x28xf32>
    %c0_10 = arith.constant 0 : index
    %c0_11 = arith.constant 0 : index
    %14 = vector.load %arg4[%c0_10, %c0_11] : memref<37x28xf32, #tpu.memory_space<vmem>>, vector<37x28xf32>
    %cst_12 = arith.constant dense<0.000000e+00> : vector<16x28xf32>
    %15 = tpu.matmul %1, %14, %cst_12 {dimension_numbers = #tpu.dot_dimension_numbers<[1], [0], [0], [1], [0, 0, 1, 1], [], []>} : vector<16x37xf32>, vector<37x28xf32>, vector<16x28xf32> -> vector<16x28xf32>
    %16 = arith.addf %13, %15 : vector<16x28xf32>
    %c0_13 = arith.constant 0 : index
    %c0_14 = arith.constant 0 : index
    %17 = vector.load %arg5[%c0_13, %c0_14] : memref<1x28xf32, #tpu.memory_space<vmem>>, vector<1x28xf32>
    %18 = vector.broadcast %17 : vector<1x28xf32> to vector<16x28xf32>
    %19 = arith.addf %16, %18 : vector<16x28xf32>
    %cst_15 = arith.constant dense<0.000000e+00> : vector<16x37xf32>
    %20 = tpu.matmul %3, %1, %cst_15 {dimension_numbers = #tpu.dot_dimension_numbers<[1], [0], [0], [1], [0, 0, 1, 1], [], []>} : vector<16x16xf32>, vector<16x37xf32>, vector<16x37xf32> -> vector<16x37xf32>
    %cst_16 = arith.constant dense<0.000000e+00> : vector<16xf32>
    %21 = vector.multi_reduction <add>, %3, %cst_16 [1] : vector<16x16xf32> to vector<16xf32>
    %22 = vector.shape_cast %21 : vector<16xf32> to vector<16x1xf32>
    %cst_17 = arith.constant 1.000000e+00 : f32
    %23 = vector.broadcast %cst_17 : f32 to vector<16x1xf32>
    %24 = arith.maximumf %22, %23 : vector<16x1xf32>
    %25 = tpu.reciprocal %24 {approx = true} : vector<16x1xf32> -> vector<16x1xf32>
    %26 = vector.broadcast %25 : vector<16x1xf32> to vector<16x37xf32>
    %27 = arith.mulf %20, %26 : vector<16x37xf32>
    %c0_18 = arith.constant 0 : index
    %c0_19 = arith.constant 0 : index
    %28 = vector.load %arg6[%c0_18, %c0_19] : memref<37x192xf32, #tpu.memory_space<vmem>>, vector<37x192xf32>
    %cst_20 = arith.constant dense<0.000000e+00> : vector<16x192xf32>
    %29 = tpu.matmul %27, %28, %cst_20 {dimension_numbers = #tpu.dot_dimension_numbers<[1], [0], [0], [1], [0, 0, 1, 1], [], []>} : vector<16x37xf32>, vector<37x192xf32>, vector<16x192xf32> -> vector<16x192xf32>
    %c0_21 = arith.constant 0 : index
    %c0_22 = arith.constant 0 : index
    %30 = vector.load %arg7[%c0_21, %c0_22] : memref<37x192xf32, #tpu.memory_space<vmem>>, vector<37x192xf32>
    %cst_23 = arith.constant dense<0.000000e+00> : vector<16x192xf32>
    %31 = tpu.matmul %1, %30, %cst_23 {dimension_numbers = #tpu.dot_dimension_numbers<[1], [0], [0], [1], [0, 0, 1, 1], [], []>} : vector<16x37xf32>, vector<37x192xf32>, vector<16x192xf32> -> vector<16x192xf32>
    %32 = arith.addf %29, %31 : vector<16x192xf32>
    %c0_24 = arith.constant 0 : index
    %c0_25 = arith.constant 0 : index
    %33 = vector.load %arg8[%c0_24, %c0_25] : memref<1x192xf32, #tpu.memory_space<vmem>>, vector<1x192xf32>
    %34 = vector.broadcast %33 : vector<1x192xf32> to vector<16x192xf32>
    %35 = arith.addf %32, %34 : vector<16x192xf32>
    %cst_26 = arith.constant dense<0xFF800000> : vector<16xf32>
    %36 = vector.multi_reduction <maximumf>, %19, %cst_26 [1] : vector<16x28xf32> to vector<16xf32>
    %37 = vector.shape_cast %36 : vector<16xf32> to vector<16x1xf32>
    %38 = vector.broadcast %37 : vector<16x1xf32> to vector<16x28xf32>
    %39 = arith.subf %19, %38 : vector<16x28xf32>
    %40 = math.exp %39 : vector<16x28xf32>
    %cst_27 = arith.constant dense<0.000000e+00> : vector<16xf32>
    %41 = vector.multi_reduction <add>, %40, %cst_27 [1] : vector<16x28xf32> to vector<16xf32>
    %42 = vector.shape_cast %41 : vector<16xf32> to vector<16x1xf32>
    %43 = tpu.reciprocal %42 {approx = true} : vector<16x1xf32> -> vector<16x1xf32>
    %44 = vector.broadcast %43 : vector<16x1xf32> to vector<16x28xf32>
    %45 = arith.mulf %40, %44 : vector<16x28xf32>
    %cst_28 = arith.constant dense<0.000000e+00> : vector<28x192xf32>
    %46 = tpu.matmul %45, %35, %cst_28 {dimension_numbers = #tpu.dot_dimension_numbers<[0], [0], [1], [1], [0, 1, 1, 1], [], []>} : vector<16x28xf32>, vector<16x192xf32>, vector<28x192xf32> -> vector<28x192xf32>
    %cst_29 = arith.constant dense<0.000000e+00> : vector<28x16xf32>
    %47 = tpu.matmul %45, %3, %cst_29 {dimension_numbers = #tpu.dot_dimension_numbers<[0], [0], [1], [1], [0, 1, 1, 1], [], []>} : vector<16x28xf32>, vector<16x16xf32>, vector<28x16xf32> -> vector<28x16xf32>
    %cst_30 = arith.constant dense<0.000000e+00> : vector<28x28xf32>
    %48 = tpu.matmul %47, %45, %cst_30 {dimension_numbers = #tpu.dot_dimension_numbers<[1], [0], [0], [1], [0, 0, 1, 1], [], []>} : vector<28x16xf32>, vector<16x28xf32>, vector<28x28xf32> -> vector<28x28xf32>
    %cst_31 = arith.constant dense<0.000000e+00> : vector<16x16xf32>
    %49 = tpu.matmul %45, %45, %cst_31 {dimension_numbers = #tpu.dot_dimension_numbers<[1], [1], [0], [0], [0, 0, 1, 0], [], []>} : vector<16x28xf32>, vector<16x28xf32>, vector<16x16xf32> -> vector<16x16xf32>
    %50 = arith.subf %3, %49 : vector<16x16xf32>
    %51 = arith.mulf %50, %50 : vector<16x16xf32>
    %52 = vector.shape_cast %51 : vector<16x16xf32> to vector<1x16x16xf32>
    %cst_32 = arith.constant dense<0.000000e+00> : vector<1xf32>
    %53 = vector.multi_reduction <add>, %52, %cst_32 [1, 2] : vector<1x16x16xf32> to vector<1xf32>
    %54 = vector.shape_cast %53 : vector<1xf32> to vector<1x1x1xf32>
    %55 = vector.extract %54[0, 0, 0] : f32 from vector<1x1x1xf32>
    %cst_33 = arith.constant 0.000000e+00 : f32
    %56 = vector.broadcast %cst_33 : f32 to vector<16x28xf32>
    %57 = arith.subf %56, %45 : vector<16x28xf32>
    %cst_34 = arith.constant 1.000000e-15 : f32
    %58 = vector.broadcast %cst_34 : f32 to vector<16x28xf32>
    %59 = arith.addf %45, %58 : vector<16x28xf32>
    %60 = math.log %59 : vector<16x28xf32>
    %61 = arith.mulf %57, %60 : vector<16x28xf32>
    %62 = vector.shape_cast %61 : vector<16x28xf32> to vector<1x16x28xf32>
    %cst_35 = arith.constant dense<0.000000e+00> : vector<1xf32>
    %63 = vector.multi_reduction <add>, %62, %cst_35 [1, 2] : vector<1x16x28xf32> to vector<1xf32>
    %64 = vector.shape_cast %63 : vector<1xf32> to vector<1x1x1xf32>
    %65 = vector.extract %64[0, 0, 0] : f32 from vector<1x1x1xf32>
    %cst_36 = arith.constant dense<0.000000e+00> : vector<28x192xf32>
    %66 = tpu.matmul %48, %46, %cst_36 {dimension_numbers = #tpu.dot_dimension_numbers<[1], [0], [0], [1], [0, 0, 1, 1], [], []>} : vector<28x28xf32>, vector<28x192xf32>, vector<28x192xf32> -> vector<28x192xf32>
    %cst_37 = arith.constant dense<0.000000e+00> : vector<28xf32>
    %67 = vector.multi_reduction <add>, %48, %cst_37 [1] : vector<28x28xf32> to vector<28xf32>
    %68 = vector.shape_cast %67 : vector<28xf32> to vector<28x1xf32>
    %cst_38 = arith.constant 1.000000e+00 : f32
    %69 = vector.broadcast %cst_38 : f32 to vector<28x1xf32>
    %70 = arith.maximumf %68, %69 : vector<28x1xf32>
    %71 = tpu.reciprocal %70 {approx = true} : vector<28x1xf32> -> vector<28x1xf32>
    %72 = vector.broadcast %71 : vector<28x1xf32> to vector<28x192xf32>
    %73 = arith.mulf %66, %72 : vector<28x192xf32>
    %c0_39 = arith.constant 0 : index
    %c0_40 = arith.constant 0 : index
    %74 = vector.load %arg9[%c0_39, %c0_40] : memref<192x7xf32, #tpu.memory_space<vmem>>, vector<192x7xf32>
    %cst_41 = arith.constant dense<0.000000e+00> : vector<28x7xf32>
    %75 = tpu.matmul %73, %74, %cst_41 {dimension_numbers = #tpu.dot_dimension_numbers<[1], [0], [0], [1], [0, 0, 1, 1], [], []>} : vector<28x192xf32>, vector<192x7xf32>, vector<28x7xf32> -> vector<28x7xf32>
    %c0_42 = arith.constant 0 : index
    %c0_43 = arith.constant 0 : index
    %76 = vector.load %arg10[%c0_42, %c0_43] : memref<192x7xf32, #tpu.memory_space<vmem>>, vector<192x7xf32>
    %cst_44 = arith.constant dense<0.000000e+00> : vector<28x7xf32>
    %77 = tpu.matmul %46, %76, %cst_44 {dimension_numbers = #tpu.dot_dimension_numbers<[1], [0], [0], [1], [0, 0, 1, 1], [], []>} : vector<28x192xf32>, vector<192x7xf32>, vector<28x7xf32> -> vector<28x7xf32>
    %78 = arith.addf %75, %77 : vector<28x7xf32>
    %c0_45 = arith.constant 0 : index
    %c0_46 = arith.constant 0 : index
    %79 = vector.load %arg11[%c0_45, %c0_46] : memref<1x7xf32, #tpu.memory_space<vmem>>, vector<1x7xf32>
    %80 = vector.broadcast %79 : vector<1x7xf32> to vector<28x7xf32>
    %81 = arith.addf %78, %80 : vector<28x7xf32>
    %cst_47 = arith.constant dense<0.000000e+00> : vector<28x192xf32>
    %82 = tpu.matmul %48, %46, %cst_47 {dimension_numbers = #tpu.dot_dimension_numbers<[1], [0], [0], [1], [0, 0, 1, 1], [], []>} : vector<28x28xf32>, vector<28x192xf32>, vector<28x192xf32> -> vector<28x192xf32>
    %cst_48 = arith.constant dense<0.000000e+00> : vector<28xf32>
    %83 = vector.multi_reduction <add>, %48, %cst_48 [1] : vector<28x28xf32> to vector<28xf32>
    %84 = vector.shape_cast %83 : vector<28xf32> to vector<28x1xf32>
    %cst_49 = arith.constant 1.000000e+00 : f32
    %85 = vector.broadcast %cst_49 : f32 to vector<28x1xf32>
    %86 = arith.maximumf %84, %85 : vector<28x1xf32>
    %87 = tpu.reciprocal %86 {approx = true} : vector<28x1xf32> -> vector<28x1xf32>
    %88 = vector.broadcast %87 : vector<28x1xf32> to vector<28x192xf32>
    %89 = arith.mulf %82, %88 : vector<28x192xf32>
    %c0_50 = arith.constant 0 : index
    %c0_51 = arith.constant 0 : index
    %90 = vector.load %arg12[%c0_50, %c0_51] : memref<192x192xf32, #tpu.memory_space<vmem>>, vector<192x192xf32>
    %cst_52 = arith.constant dense<0.000000e+00> : vector<28x192xf32>
    %91 = tpu.matmul %89, %90, %cst_52 {dimension_numbers = #tpu.dot_dimension_numbers<[1], [0], [0], [1], [0, 0, 1, 1], [], []>} : vector<28x192xf32>, vector<192x192xf32>, vector<28x192xf32> -> vector<28x192xf32>
    %c0_53 = arith.constant 0 : index
    %c0_54 = arith.constant 0 : index
    %92 = vector.load %arg13[%c0_53, %c0_54] : memref<192x192xf32, #tpu.memory_space<vmem>>, vector<192x192xf32>
    %cst_55 = arith.constant dense<0.000000e+00> : vector<28x192xf32>
    %93 = tpu.matmul %46, %92, %cst_55 {dimension_numbers = #tpu.dot_dimension_numbers<[1], [0], [0], [1], [0, 0, 1, 1], [], []>} : vector<28x192xf32>, vector<192x192xf32>, vector<28x192xf32> -> vector<28x192xf32>
    %94 = arith.addf %91, %93 : vector<28x192xf32>
    %c0_56 = arith.constant 0 : index
    %c0_57 = arith.constant 0 : index
    %95 = vector.load %arg14[%c0_56, %c0_57] : memref<1x192xf32, #tpu.memory_space<vmem>>, vector<1x192xf32>
    %96 = vector.broadcast %95 : vector<1x192xf32> to vector<28x192xf32>
    %97 = arith.addf %94, %96 : vector<28x192xf32>
    %cst_58 = arith.constant dense<0xFF800000> : vector<28xf32>
    %98 = vector.multi_reduction <maximumf>, %81, %cst_58 [1] : vector<28x7xf32> to vector<28xf32>
    %99 = vector.shape_cast %98 : vector<28xf32> to vector<28x1xf32>
    %100 = vector.broadcast %99 : vector<28x1xf32> to vector<28x7xf32>
    %101 = arith.subf %81, %100 : vector<28x7xf32>
    %102 = math.exp %101 : vector<28x7xf32>
    %cst_59 = arith.constant dense<0.000000e+00> : vector<28xf32>
    %103 = vector.multi_reduction <add>, %102, %cst_59 [1] : vector<28x7xf32> to vector<28xf32>
    %104 = vector.shape_cast %103 : vector<28xf32> to vector<28x1xf32>
    %105 = tpu.reciprocal %104 {approx = true} : vector<28x1xf32> -> vector<28x1xf32>
    %106 = vector.broadcast %105 : vector<28x1xf32> to vector<28x7xf32>
    %107 = arith.mulf %102, %106 : vector<28x7xf32>
    %cst_60 = arith.constant dense<0.000000e+00> : vector<7x192xf32>
    %108 = tpu.matmul %107, %97, %cst_60 {dimension_numbers = #tpu.dot_dimension_numbers<[0], [0], [1], [1], [0, 1, 1, 1], [], []>} : vector<28x7xf32>, vector<28x192xf32>, vector<7x192xf32> -> vector<7x192xf32>
    %cst_61 = arith.constant dense<0.000000e+00> : vector<7x28xf32>
    %109 = tpu.matmul %107, %48, %cst_61 {dimension_numbers = #tpu.dot_dimension_numbers<[0], [0], [1], [1], [0, 1, 1, 1], [], []>} : vector<28x7xf32>, vector<28x28xf32>, vector<7x28xf32> -> vector<7x28xf32>
    %cst_62 = arith.constant dense<0.000000e+00> : vector<7x7xf32>
    %110 = tpu.matmul %109, %107, %cst_62 {dimension_numbers = #tpu.dot_dimension_numbers<[1], [0], [0], [1], [0, 0, 1, 1], [], []>} : vector<7x28xf32>, vector<28x7xf32>, vector<7x7xf32> -> vector<7x7xf32>
    %cst_63 = arith.constant dense<0.000000e+00> : vector<28x28xf32>
    %111 = tpu.matmul %107, %107, %cst_63 {dimension_numbers = #tpu.dot_dimension_numbers<[1], [1], [0], [0], [0, 0, 1, 0], [], []>} : vector<28x7xf32>, vector<28x7xf32>, vector<28x28xf32> -> vector<28x28xf32>
    %112 = arith.subf %48, %111 : vector<28x28xf32>
    %113 = arith.mulf %112, %112 : vector<28x28xf32>
    %114 = vector.shape_cast %113 : vector<28x28xf32> to vector<1x28x28xf32>
    %cst_64 = arith.constant dense<0.000000e+00> : vector<1xf32>
    %115 = vector.multi_reduction <add>, %114, %cst_64 [1, 2] : vector<1x28x28xf32> to vector<1xf32>
    %116 = vector.shape_cast %115 : vector<1xf32> to vector<1x1x1xf32>
    %117 = vector.extract %116[0, 0, 0] : f32 from vector<1x1x1xf32>
    %cst_65 = arith.constant 0.000000e+00 : f32
    %118 = vector.broadcast %cst_65 : f32 to vector<28x7xf32>
    %119 = arith.subf %118, %107 : vector<28x7xf32>
    %cst_66 = arith.constant 1.000000e-15 : f32
    %120 = vector.broadcast %cst_66 : f32 to vector<28x7xf32>
    %121 = arith.addf %107, %120 : vector<28x7xf32>
    %122 = math.log %121 : vector<28x7xf32>
    %123 = arith.mulf %119, %122 : vector<28x7xf32>
    %124 = vector.shape_cast %123 : vector<28x7xf32> to vector<1x28x7xf32>
    %cst_67 = arith.constant dense<0.000000e+00> : vector<1xf32>
    %125 = vector.multi_reduction <add>, %124, %cst_67 [1, 2] : vector<1x28x7xf32> to vector<1xf32>
    %126 = vector.shape_cast %125 : vector<1xf32> to vector<1x1x1xf32>
    %127 = vector.extract %126[0, 0, 0] : f32 from vector<1x1x1xf32>
    %cst_68 = arith.constant dense<0.000000e+00> : vector<7x192xf32>
    %128 = tpu.matmul %110, %108, %cst_68 {dimension_numbers = #tpu.dot_dimension_numbers<[1], [0], [0], [1], [0, 0, 1, 1], [], []>} : vector<7x7xf32>, vector<7x192xf32>, vector<7x192xf32> -> vector<7x192xf32>
    %cst_69 = arith.constant dense<0.000000e+00> : vector<7xf32>
    %129 = vector.multi_reduction <add>, %110, %cst_69 [1] : vector<7x7xf32> to vector<7xf32>
    %130 = vector.shape_cast %129 : vector<7xf32> to vector<7x1xf32>
    %cst_70 = arith.constant 1.000000e+00 : f32
    %131 = vector.broadcast %cst_70 : f32 to vector<7x1xf32>
    %132 = arith.maximumf %130, %131 : vector<7x1xf32>
    %133 = tpu.reciprocal %132 {approx = true} : vector<7x1xf32> -> vector<7x1xf32>
    %134 = vector.broadcast %133 : vector<7x1xf32> to vector<7x192xf32>
    %135 = arith.mulf %128, %134 : vector<7x192xf32>
    %c0_71 = arith.constant 0 : index
    %c0_72 = arith.constant 0 : index
    %136 = vector.load %arg15[%c0_71, %c0_72] : memref<192x192xf32, #tpu.memory_space<vmem>>, vector<192x192xf32>
    %cst_73 = arith.constant dense<0.000000e+00> : vector<7x192xf32>
    %137 = tpu.matmul %135, %136, %cst_73 {dimension_numbers = #tpu.dot_dimension_numbers<[1], [0], [0], [1], [0, 0, 1, 1], [], []>} : vector<7x192xf32>, vector<192x192xf32>, vector<7x192xf32> -> vector<7x192xf32>
    %c0_74 = arith.constant 0 : index
    %c0_75 = arith.constant 0 : index
    %138 = vector.load %arg16[%c0_74, %c0_75] : memref<192x192xf32, #tpu.memory_space<vmem>>, vector<192x192xf32>
    %cst_76 = arith.constant dense<0.000000e+00> : vector<7x192xf32>
    %139 = tpu.matmul %108, %138, %cst_76 {dimension_numbers = #tpu.dot_dimension_numbers<[1], [0], [0], [1], [0, 0, 1, 1], [], []>} : vector<7x192xf32>, vector<192x192xf32>, vector<7x192xf32> -> vector<7x192xf32>
    %140 = arith.addf %137, %139 : vector<7x192xf32>
    %c0_77 = arith.constant 0 : index
    %c0_78 = arith.constant 0 : index
    %141 = vector.load %arg17[%c0_77, %c0_78] : memref<1x192xf32, #tpu.memory_space<vmem>>, vector<1x192xf32>
    %142 = vector.broadcast %141 : vector<1x192xf32> to vector<7x192xf32>
    %143 = arith.addf %140, %142 : vector<7x192xf32>
    %cst_79 = arith.constant dense<0.000000e+00> : vector<192xf32>
    %144 = vector.multi_reduction <add>, %143, %cst_79 [0] : vector<7x192xf32> to vector<192xf32>
    %145 = vector.shape_cast %144 : vector<192xf32> to vector<1x192xf32>
    %cst_80 = arith.constant 7.000000e+00 : f32
    %146 = vector.broadcast %cst_80 : f32 to vector<1x192xf32>
    %147 = arith.divf %145, %146 : vector<1x192xf32>
    %c0_81 = arith.constant 0 : index
    %c0_82 = arith.constant 0 : index
    %148 = vector.load %arg18[%c0_81, %c0_82] : memref<192x192xf32, #tpu.memory_space<vmem>>, vector<192x192xf32>
    %cst_83 = arith.constant dense<0.000000e+00> : vector<1x192xf32>
    %149 = tpu.matmul %147, %148, %cst_83 {dimension_numbers = #tpu.dot_dimension_numbers<[1], [0], [0], [1], [0, 0, 1, 1], [], []>} : vector<1x192xf32>, vector<192x192xf32>, vector<1x192xf32> -> vector<1x192xf32>
    %c0_84 = arith.constant 0 : index
    %c0_85 = arith.constant 0 : index
    %150 = vector.load %arg19[%c0_84, %c0_85] : memref<1x192xf32, #tpu.memory_space<vmem>>, vector<1x192xf32>
    %151 = arith.addf %149, %150 : vector<1x192xf32>
    %cst_86 = arith.constant 0.000000e+00 : f32
    %152 = vector.broadcast %cst_86 : f32 to vector<1x192xf32>
    %153 = arith.maximumf %151, %152 : vector<1x192xf32>
    %c0_87 = arith.constant 0 : index
    %c0_88 = arith.constant 0 : index
    %154 = vector.load %arg20[%c0_87, %c0_88] : memref<192x2xf32, #tpu.memory_space<vmem>>, vector<192x2xf32>
    %cst_89 = arith.constant dense<0.000000e+00> : vector<1x2xf32>
    %155 = tpu.matmul %153, %154, %cst_89 {dimension_numbers = #tpu.dot_dimension_numbers<[1], [0], [0], [1], [0, 0, 1, 1], [], []>} : vector<1x192xf32>, vector<192x2xf32>, vector<1x2xf32> -> vector<1x2xf32>
    %c0_90 = arith.constant 0 : index
    %c0_91 = arith.constant 0 : index
    %156 = vector.load %arg21[%c0_90, %c0_91] : memref<1x2xf32, #tpu.memory_space<vmem>>, vector<1x2xf32>
    %157 = arith.addf %155, %156 : vector<1x2xf32>
    %cst_92 = arith.constant dense<0xFF800000> : vector<1xf32>
    %158 = vector.multi_reduction <maximumf>, %157, %cst_92 [1] : vector<1x2xf32> to vector<1xf32>
    %159 = vector.shape_cast %158 : vector<1xf32> to vector<1x1xf32>
    %160 = vector.broadcast %159 : vector<1x1xf32> to vector<1x2xf32>
    %161 = arith.subf %157, %160 : vector<1x2xf32>
    %162 = math.exp %161 : vector<1x2xf32>
    %cst_93 = arith.constant dense<0.000000e+00> : vector<1xf32>
    %163 = vector.multi_reduction <add>, %162, %cst_93 [1] : vector<1x2xf32> to vector<1xf32>
    %164 = vector.shape_cast %163 : vector<1xf32> to vector<1x1xf32>
    %165 = math.log %164 : vector<1x1xf32>
    %166 = arith.addf %159, %165 : vector<1x1xf32>
    %167 = vector.broadcast %166 : vector<1x1xf32> to vector<1x2xf32>
    %168 = arith.subf %157, %167 : vector<1x2xf32>
    %c0_94 = arith.constant 0 : index
    %c0_95 = arith.constant 0 : index
    %c0_96 = arith.constant 0 : index
    %169 = vector.load %arg22[%c0_94, %c0_95, %c0_96] : memref<1x1x2xf32, #tpu.memory_space<vmem>>, vector<1x1x2xf32>
    %170 = vector.shape_cast %169 : vector<1x1x2xf32> to vector<1x2xf32>
    %171 = vector.shape_cast %168 : vector<1x2xf32> to vector<1x1x2xf32>
    tpu.vector_store %arg22[%c0_94, %c0_95, %c0_96], %171 {strides = array<i32>} : memref<1x1x2xf32, #tpu.memory_space<vmem>>, vector<1x1x2xf32>,
    %c0_97 = arith.constant 0 : index
    %c0_98 = arith.constant 0 : index
    %c0_99 = arith.constant 0 : index
    %172 = vector.load %arg23[%c0_97, %c0_98, %c0_99] : memref<1x1x192xf32, #tpu.memory_space<vmem>>, vector<1x1x192xf32>
    %173 = vector.shape_cast %172 : vector<1x1x192xf32> to vector<1x192xf32>
    %174 = vector.shape_cast %147 : vector<1x192xf32> to vector<1x1x192xf32>
    tpu.vector_store %arg23[%c0_97, %c0_98, %c0_99], %174 {strides = array<i32>} : memref<1x1x192xf32, #tpu.memory_space<vmem>>, vector<1x1x192xf32>,
    %175 = tpu.iota {dimensions = array<i32: 1>} : vector<1x4xi32>
    %c0_i32 = arith.constant 0 : i32
    %176 = vector.broadcast %c0_i32 : i32 to vector<1x4xi32>
    %177 = arith.cmpi eq, %175, %176 : vector<1x4xi32>
    %cst_100 = arith.constant 0.000000e+00 : f32
    %178 = vector.broadcast %55 : f32 to vector<1x4xf32>
    %179 = vector.broadcast %cst_100 : f32 to vector<1x4xf32>
    %180 = arith.select %177, %178, %179 : vector<1x4xi1>, vector<1x4xf32>
    %c1_i32 = arith.constant 1 : i32
    %181 = vector.broadcast %c1_i32 : i32 to vector<1x4xi32>
    %182 = arith.cmpi eq, %175, %181 : vector<1x4xi32>
    %cst_101 = arith.constant 0.000000e+00 : f32
    %183 = vector.broadcast %65 : f32 to vector<1x4xf32>
    %184 = vector.broadcast %cst_101 : f32 to vector<1x4xf32>
    %185 = arith.select %182, %183, %184 : vector<1x4xi1>, vector<1x4xf32>
    %186 = arith.addf %180, %185 : vector<1x4xf32>
    %c2_i32 = arith.constant 2 : i32
    %187 = vector.broadcast %c2_i32 : i32 to vector<1x4xi32>
    %188 = arith.cmpi eq, %175, %187 : vector<1x4xi32>
    %cst_102 = arith.constant 0.000000e+00 : f32
    %189 = vector.broadcast %117 : f32 to vector<1x4xf32>
    %190 = vector.broadcast %cst_102 : f32 to vector<1x4xf32>
    %191 = arith.select %188, %189, %190 : vector<1x4xi1>, vector<1x4xf32>
    %192 = arith.addf %186, %191 : vector<1x4xf32>
    %c3_i32 = arith.constant 3 : i32
    %193 = vector.broadcast %c3_i32 : i32 to vector<1x4xi32>
    %194 = arith.cmpi eq, %175, %193 : vector<1x4xi32>
    %cst_103 = arith.constant 0.000000e+00 : f32
    %195 = vector.broadcast %127 : f32 to vector<1x4xf32>
    %196 = vector.broadcast %cst_103 : f32 to vector<1x4xf32>
    %197 = arith.select %194, %195, %196 : vector<1x4xi1>, vector<1x4xf32>
    %198 = arith.addf %192, %197 : vector<1x4xf32>
    %c0_104 = arith.constant 0 : index
    %c0_105 = arith.constant 0 : index
    %c0_106 = arith.constant 0 : index
    %199 = vector.load %arg24[%c0_104, %c0_105, %c0_106] : memref<1x1x4xf32, #tpu.memory_space<vmem>>, vector<1x1x4xf32>
    %200 = vector.shape_cast %199 : vector<1x1x4xf32> to vector<1x4xf32>
    %201 = vector.shape_cast %198 : vector<1x4xf32> to vector<1x1x4xf32>
    tpu.vector_store %arg24[%c0_104, %c0_105, %c0_106], %201 {strides = array<i32>} : memref<1x1x4xf32, #tpu.memory_space<vmem>>, vector<1x1x4xf32>,
    return
  }
  func.func @transform_0(%arg0: i32) -> (i32, i32, i32) {
    %c0_i32 = arith.constant 0 : i32
    %c0_i32_0 = arith.constant 0 : i32
    %c0_i32_1 = arith.constant 0 : i32
    return %arg0, %c0_i32, %c0_i32_0 : i32, i32, i32
  }
  func.func @transform_1(%arg0: i32) -> (i32, i32, i32) {
    %c0_i32 = arith.constant 0 : i32
    %c0_i32_0 = arith.constant 0 : i32
    %c0_i32_1 = arith.constant 0 : i32
    return %arg0, %c0_i32, %c0_i32_0 : i32, i32, i32
  }
  func.func @transform_2(%arg0: i32) -> (i32, i32) {
    %c0_i32 = arith.constant 0 : i32
    %c0_i32_0 = arith.constant 0 : i32
    %c0_i32_1 = arith.constant 0 : i32
    return %c0_i32, %c0_i32_0 : i32, i32
  }
  func.func @transform_3(%arg0: i32) -> (i32, i32) {
    %c0_i32 = arith.constant 0 : i32
    %c0_i32_0 = arith.constant 0 : i32
    %c0_i32_1 = arith.constant 0 : i32
    return %c0_i32, %c0_i32_0 : i32, i32
  }
  func.func @transform_4(%arg0: i32) -> (i32, i32) {
    %c0_i32 = arith.constant 0 : i32
    %c0_i32_0 = arith.constant 0 : i32
    %c0_i32_1 = arith.constant 0 : i32
    return %c0_i32, %c0_i32_0 : i32, i32
  }
  func.func @transform_5(%arg0: i32) -> (i32, i32) {
    %c0_i32 = arith.constant 0 : i32
    %c0_i32_0 = arith.constant 0 : i32
    %c0_i32_1 = arith.constant 0 : i32
    return %c0_i32, %c0_i32_0 : i32, i32
  }
  func.func @transform_6(%arg0: i32) -> (i32, i32) {
    %c0_i32 = arith.constant 0 : i32
    %c0_i32_0 = arith.constant 0 : i32
    %c0_i32_1 = arith.constant 0 : i32
    return %c0_i32, %c0_i32_0 : i32, i32
  }
  func.func @transform_7(%arg0: i32) -> (i32, i32) {
    %c0_i32 = arith.constant 0 : i32
    %c0_i32_0 = arith.constant 0 : i32
    %c0_i32_1 = arith.constant 0 : i32
    return %c0_i32, %c0_i32_0 : i32, i32
  }
  func.func @transform_8(%arg0: i32) -> (i32, i32) {
    %c0_i32 = arith.constant 0 : i32
    %c0_i32_0 = arith.constant 0 : i32
    %c0_i32_1 = arith.constant 0 : i32
    return %c0_i32, %c0_i32_0 : i32, i32
  }
  func.func @transform_9(%arg0: i32) -> (i32, i32) {
    %c0_i32 = arith.constant 0 : i32
    %c0_i32_0 = arith.constant 0 : i32
    %c0_i32_1 = arith.constant 0 : i32
    return %c0_i32, %c0_i32_0 : i32, i32
  }
  func.func @transform_10(%arg0: i32) -> (i32, i32) {
    %c0_i32 = arith.constant 0 : i32
    %c0_i32_0 = arith.constant 0 : i32
    %c0_i32_1 = arith.constant 0 : i32
    return %c0_i32, %c0_i32_0 : i32, i32
  }
  func.func @transform_11(%arg0: i32) -> (i32, i32) {
    %c0_i32 = arith.constant 0 : i32
    %c0_i32_0 = arith.constant 0 : i32
    %c0_i32_1 = arith.constant 0 : i32
    return %c0_i32, %c0_i32_0 : i32, i32
  }
  func.func @transform_12(%arg0: i32) -> (i32, i32) {
    %c0_i32 = arith.constant 0 : i32
    %c0_i32_0 = arith.constant 0 : i32
    %c0_i32_1 = arith.constant 0 : i32
    return %c0_i32, %c0_i32_0 : i32, i32
  }
  func.func @transform_13(%arg0: i32) -> (i32, i32) {
    %c0_i32 = arith.constant 0 : i32
    %c0_i32_0 = arith.constant 0 : i32
    %c0_i32_1 = arith.constant 0 : i32
    return %c0_i32, %c0_i32_0 : i32, i32
  }
  func.func @transform_14(%arg0: i32) -> (i32, i32) {
    %c0_i32 = arith.constant 0 : i32
    %c0_i32_0 = arith.constant 0 : i32
    %c0_i32_1 = arith.constant 0 : i32
    return %c0_i32, %c0_i32_0 : i32, i32
  }
  func.func @transform_15(%arg0: i32) -> (i32, i32) {
    %c0_i32 = arith.constant 0 : i32
    %c0_i32_0 = arith.constant 0 : i32
    %c0_i32_1 = arith.constant 0 : i32
    return %c0_i32, %c0_i32_0 : i32, i32
  }
  func.func @transform_16(%arg0: i32) -> (i32, i32) {
    %c0_i32 = arith.constant 0 : i32
    %c0_i32_0 = arith.constant 0 : i32
    %c0_i32_1 = arith.constant 0 : i32
    return %c0_i32, %c0_i32_0 : i32, i32
  }
  func.func @transform_17(%arg0: i32) -> (i32, i32) {
    %c0_i32 = arith.constant 0 : i32
    %c0_i32_0 = arith.constant 0 : i32
    %c0_i32_1 = arith.constant 0 : i32
    return %c0_i32, %c0_i32_0 : i32, i32
  }
  func.func @transform_18(%arg0: i32) -> (i32, i32) {
    %c0_i32 = arith.constant 0 : i32
    %c0_i32_0 = arith.constant 0 : i32
    %c0_i32_1 = arith.constant 0 : i32
    return %c0_i32, %c0_i32_0 : i32, i32
  }
  func.func @transform_19(%arg0: i32) -> (i32, i32) {
    %c0_i32 = arith.constant 0 : i32
    %c0_i32_0 = arith.constant 0 : i32
    %c0_i32_1 = arith.constant 0 : i32
    return %c0_i32, %c0_i32_0 : i32, i32
  }
  func.func @transform_20(%arg0: i32) -> (i32, i32) {
    %c0_i32 = arith.constant 0 : i32
    %c0_i32_0 = arith.constant 0 : i32
    %c0_i32_1 = arith.constant 0 : i32
    return %c0_i32, %c0_i32_0 : i32, i32
  }
  func.func @transform_21(%arg0: i32) -> (i32, i32, i32) {
    %c0_i32 = arith.constant 0 : i32
    %c0_i32_0 = arith.constant 0 : i32
    %c0_i32_1 = arith.constant 0 : i32
    return %arg0, %c0_i32, %c0_i32_0 : i32, i32, i32
  }
  func.func @transform_22(%arg0: i32) -> (i32, i32, i32) {
    %c0_i32 = arith.constant 0 : i32
    %c0_i32_0 = arith.constant 0 : i32
    %c0_i32_1 = arith.constant 0 : i32
    return %arg0, %c0_i32, %c0_i32_0 : i32, i32, i32
  }
  func.func @transform_23(%arg0: i32) -> (i32, i32, i32) {
    %c0_i32 = arith.constant 0 : i32
    %c0_i32_0 = arith.constant 0 : i32
    %c0_i32_1 = arith.constant 0 : i32
    return %arg0, %c0_i32, %c0_i32_0 : i32, i32, i32
  }
}

</mosaic_0001>

<llo_original>
// kernel: net_forward.1
$region0: #{net_forward.1}
  #allocation0 [shape = 'u32[]', space=smem, size = 0x4, offset = 0x4, fixed_abs, tag = 'smem constant byte address 0x4 - core index']
  #allocation1 [shape = 'u32[144,128]{1,0:T(1,128)}', space=vmem, size = 0x12000, scoped, tag = 'internal scratch']
  %s0 = inlined_call_operand.hbm [shape: f32[2,16,37], index: 0, kind: input, shape index: {}]
  %s1 = inlined_call_operand.hbm [shape: f32[2,16,16], index: 1, kind: input, shape index: {}]
  %s2 = inlined_call_operand.vmem [shape: f32[37,28], index: 2, kind: input, shape index: {}]
  %s3 = inlined_call_operand.vmem [shape: f32[37,28], index: 3, kind: input, shape index: {}]
  %s4 = inlined_call_operand.vmem [shape: f32[1,28], index: 4, kind: input, shape index: {}]
  %s5 = inlined_call_operand.hbm [shape: f32[37,192], index: 5, kind: input, shape index: {}]
  %s6 = inlined_call_operand.hbm [shape: f32[37,192], index: 6, kind: input, shape index: {}]
  %s7 = inlined_call_operand.hbm [shape: f32[1,192], index: 7, kind: input, shape index: {}]
  %s8 = inlined_call_operand.vmem [shape: f32[192,7], index: 8, kind: input, shape index: {}]
  %s9 = inlined_call_operand.vmem [shape: f32[192,7], index: 9, kind: input, shape index: {}]
  %s10 = inlined_call_operand.hbm [shape: f32[1,7], index: 10, kind: input, shape index: {}]
  %s11 = inlined_call_operand.vmem [shape: f32[192,192], index: 11, kind: input, shape index: {}]
  %s12 = inlined_call_operand.vmem [shape: f32[192,192], index: 12, kind: input, shape index: {}]
  %s13 = inlined_call_operand.hbm [shape: f32[1,192], index: 13, kind: input, shape index: {}]
  %s14 = inlined_call_operand.hbm [shape: f32[192,192], index: 14, kind: input, shape index: {}]
  %s15 = inlined_call_operand.hbm [shape: f32[192,192], index: 15, kind: input, shape index: {}]
  %s16 = inlined_call_operand.vmem [shape: f32[1,192], index: 16, kind: input, shape index: {}]
  %s17 = inlined_call_operand.hbm [shape: f32[192,192], index: 17, kind: input, shape index: {}]
  %s18 = inlined_call_operand.vmem [shape: f32[1,192], index: 18, kind: input, shape index: {}]
  %s19 = inlined_call_operand.vmem [shape: f32[192,2], index: 19, kind: input, shape index: {}]
  %s20 = inlined_call_operand.vmem [shape: f32[1,2], index: 20, kind: input, shape index: {}]
  %s21 = inlined_call_operand.hbm [shape: f32[2,1,2], index: 21, kind: output, shape index: {0}]
  %s22 = inlined_call_operand.vmem [shape: f32[2,1,192], index: 22, kind: output, shape index: {1}]
  %s23 = inlined_call_operand.vmem [shape: f32[2,1,4], index: 23, kind: output, shape index: {2}]
  %24 = xla_tuple %s21, %s22, %s23
  %s25 = sld [smem:[#allocation0]]
  $region173: #{net_forward.1} parent=0
    _
  %s27 = ssub.s32 1, %s25
  %s28 = scalar_select 0, %s27, %s25
  $region1: #{net_forward.1} parent=0
    #allocation2 [shape = 'u8[16384]{0}', space=vmem, size = 0x4000, scoped, tag = 'input window, operand 0']
    #allocation3 [shape = 's32[2]{0}', space=sflag, size = 0x8, scoped, tag = 'scoped memory for net_forward.1']
    #allocation4 [shape = 's32[2]{0}', space=sflag, size = 0x8, scoped, tag = 'scoped memory for net_forward.1']
    #allocation5 [shape = 'u8[16384]{0}', space=vmem, size = 0x4000, scoped, tag = 'input window, operand 1']
    #allocation6 [shape = 's32[2]{0}', space=sflag, size = 0x8, scoped, tag = 'scoped memory for net_forward.1']
    #allocation7 [shape = 'u8[40960]{0}', space=vmem, size = 0xa000, scoped, tag = 'input window, operand 5, single buffered']
    #allocation8 [shape = 'u8[40960]{0}', space=vmem, size = 0xa000, scoped, tag = 'input window, operand 6, single buffered']
    #allocation9 [shape = 's32[1]{0}', space=sflag, size = 0x4, scoped, tag = 'scoped memory for net_forward.1']
    #allocation10 [shape = 'u8[1024]{0}', space=vmem, size = 0x400, scoped, tag = 'input window, operand 7, single buffered']
    #allocation11 [shape = 'u8[512]{0}', space=vmem, size = 0x400, scoped, tag = 'input window, operand 10, single buffered']
    #allocation12 [shape = 's32[1]{0}', space=sflag, size = 0x4, scoped, tag = 'scoped memory for net_forward.1']
    #allocation13 [shape = 'u8[1024]{0}', space=vmem, size = 0x400, scoped, tag = 'input window, operand 13, single buffered']
    #allocation14 [shape = 'u8[196608]{0}', space=vmem, size = 0x30000, scoped, tag = 'input window, operand 14, single buffered']
    #allocation15 [shape = 's32[1]{0}', space=sflag, size = 0x4, scoped, tag = 'scoped memory for net_forward.1']
    #allocation16 [shape = 'u8[196608]{0}', space=vmem, size = 0x30000, scoped, tag = 'input window, operand 15, single buffered']
    #allocation17 [shape = 'u8[196608]{0}', space=vmem, size = 0x30000, scoped, tag = 'input window, operand 17, single buffered']
    #allocation18 [shape = 's32[1]{0}', space=sflag, size = 0x4, scoped, tag = 'scoped memory for net_forward.1']
    #allocation19 [shape = 'u8[1024]{0}', space=vmem, size = 0x400, scoped, tag = 'output window, operand 0']
    %29 = vsyncpa [#allocation3], 0
    %s30 = scalar_lea.sflag [#allocation3], 1
    %31 = vsyncpa %s30, 0
    %32 = vsyncpa [#allocation6], 0
    %s33 = scalar_lea.sflag [#allocation6], 1
    %34 = vsyncpa %s33, 0
    %35 = vsyncpa [#allocation9], 0
    %36 = vsyncpa [#allocation12], 0
    %37 = vsyncpa [#allocation15], 0
    %38 = vsyncpa [#allocation18], 0
    %39 = vsyncpa [#allocation4], 0
    %s40 = scalar_lea.sflag [#allocation4], 1
    %41 = vsyncpa %s40, 0
    loop: start=0, step=1, limit=4
    $region2: #{net_forward.1} parent=1 // loop_pre_header
      _
    $region3: #{net_forward.1} parent=1 // loop_header
      %s43 = sphi 0, %s47
      %p44 = scmp.ge.s32.totalorder %s43, 4
      %s53 = sphi 0, %s55
      %s56 = sphi 0, %s53
      %s57 = sphi 0, %s56
      %s73 = sphi 0, %s57
      %s79 = sphi 0, %s81
      %s82 = sphi 0, %s79
      %s83 = sphi 0, %s82
      %s99 = sphi 0, %s83
      %s103 = sphi 0, %s103
      %s105 = sphi 0, %s103
      %s106 = sphi 0, %s105
      %s120 = sphi 0, %s106
      %s124 = sphi 0, %s124
      %s126 = sphi 0, %s124
      %s127 = sphi 0, %s126
      %s141 = sphi 0, %s127
      %s145 = sphi 0, %s145
      %s147 = sphi 0, %s145
      %s148 = sphi 0, %s147
      %s162 = sphi 0, %s148
      %s166 = sphi 0, %s166
      %s168 = sphi 0, %s166
      %s169 = sphi 0, %s168
      %s183 = sphi 0, %s169
      %s187 = sphi 0, %s187
      %s189 = sphi 0, %s187
      %s190 = sphi 0, %s189
      %s204 = sphi 0, %s190
      %s208 = sphi 0, %s208
      %s210 = sphi 0, %s208
      %s211 = sphi 0, %s210
      %s225 = sphi 0, %s211
      %s229 = sphi 0, %s229
      %s231 = sphi 0, %s229
      %s232 = sphi 0, %s231
      %s246 = sphi 0, %s232
      %s250 = sphi 0, %s250
      %s252 = sphi 0, %s250
      %s253 = sphi 0, %s252
      %s267 = sphi 0, %s253
      %s271 = sphi 0, %s271
      %s273 = sphi 0, %s271
      %s274 = sphi 0, %s273
      %s288 = sphi 0, %s274
      %s292 = sphi 0, %s292
      %s294 = sphi 0, %s292
      %s295 = sphi 0, %s294
      %s309 = sphi 0, %s295
      %s313 = sphi 0, %s313
      %s315 = sphi 0, %s313
      %s316 = sphi 0, %s315
      %s330 = sphi 0, %s316
      %s334 = sphi 0, %s334
      %s336 = sphi 0, %s334
      %s337 = sphi 0, %s336
      %s351 = sphi 0, %s337
      %s355 = sphi 0, %s355
      %s357 = sphi 0, %s355
      %s358 = sphi 0, %s357
      %s372 = sphi 0, %s358
      %s376 = sphi 0, %s376
      %s378 = sphi 0, %s376
      %s379 = sphi 0, %s378
      %s393 = sphi 0, %s379
      %s397 = sphi 0, %s397
      %s399 = sphi 0, %s397
      %s400 = sphi 0, %s399
      %s414 = sphi 0, %s400
      %s418 = sphi 0, %s418
      %s420 = sphi 0, %s418
      %s421 = sphi 0, %s420
      %s435 = sphi 0, %s421
      %s439 = sphi 0, %s439
      %s441 = sphi 0, %s439
      %s442 = sphi 0, %s441
      %s456 = sphi 0, %s442
      %s460 = sphi 0, %s460
      %s462 = sphi 0, %s460
      %s463 = sphi 0, %s462
      %s477 = sphi 0, %s463
      %s481 = sphi 0, %s481
      %s483 = sphi 0, %s481
      %s484 = sphi 0, %s483
      %s498 = sphi 0, %s484
      %s504 = sphi 0, %s506
      %s507 = sphi 0, %s504
      %s508 = sphi 0, %s507
      %s524 = sphi 0, %s508
      %s530 = sphi 0, %s532
      %s533 = sphi 0, %s530
      %s534 = sphi 0, %s533
      %s550 = sphi 0, %s534
      %s556 = sphi 0, %s558
      %s559 = sphi 0, %s556
      %s560 = sphi 0, %s559
      %s576 = sphi 0, %s560
    $region4: #{net_forward.1} parent=1 // loop_header_branch
      %46 = sbr.rel (%p44) target = $region8
    $region5: #{net_forward.1} parent=1 // loop_body
      %s48 = ssub.s32 %s43, 1
      %s49 = ssub.s32 %s43, 2
      %s50 = sadd.s32 %s43, 1
      %s51 = ssub.s32 %s43, %s50
      %p52 = scmp.eq.s32.totalorder %s51, 0
      %s54 = sadd.s32 %s53, 1
      %s55 = scalar_select %p52, %s53, %s54
      %p58 = pneg %p52
      %p59 = scmp.eq.s32.totalorder %s43, 1
      %p60 = por %p58, %p59
      %p61 = scmp.ne.s32.totalorder %s53, %s56
      %p62 = scmp.eq.s32.totalorder %s43, 0
      %p63 = por %p61, %p62
      %p64 = scmp.ne.s32.totalorder %s53, %s56
      %p65 = scmp.eq.s32.totalorder %s48, 1
      %p66 = por %p64, %p65
      %p67 = scmp.ne.s32.totalorder %s56, %s57
      %p68 = scmp.eq.s32.totalorder %s48, 0
      %p69 = por %p67, %p68
      %p70 = scmp.ne.s32.totalorder %s56, %s57
      %p71 = scmp.eq.s32.totalorder %s49, 1
      %p72 = por %p70, %p71
      %p74 = scmp.ne.s32.totalorder %s57, %s73
      %p75 = scmp.eq.s32.totalorder %s49, 0
      %p76 = por %p74, %p75
      %s77 = ssub.s32 %s43, %s50
      %p78 = scmp.eq.s32.totalorder %s77, 0
      %s80 = sadd.s32 %s79, 1
      %s81 = scalar_select %p78, %s79, %s80
      %p84 = pneg %p78
      %p85 = scmp.eq.s32.totalorder %s43, 1
      %p86 = por %p84, %p85
      %p87 = scmp.ne.s32.totalorder %s79, %s82
      %p88 = scmp.eq.s32.totalorder %s43, 0
      %p89 = por %p87, %p88
      %p90 = scmp.ne.s32.totalorder %s79, %s82
      %p91 = scmp.eq.s32.totalorder %s48, 1
      %p92 = por %p90, %p91
      %p93 = scmp.ne.s32.totalorder %s82, %s83
      %p94 = scmp.eq.s32.totalorder %s48, 0
      %p95 = por %p93, %p94
      %p96 = scmp.ne.s32.totalorder %s82, %s83
      %p97 = scmp.eq.s32.totalorder %s49, 1
      %p98 = por %p96, %p97
      %p100 = scmp.ne.s32.totalorder %s83, %s99
      %p101 = scmp.eq.s32.totalorder %s49, 0
      %p102 = por %p100, %p101
      %s104 = sadd.s32 %s103, 1
      %p107 = scmp.eq.s32.totalorder %s43, 1
      %p108 = scmp.ne.s32.totalorder %s103, %s105
      %p109 = scmp.eq.s32.totalorder %s43, 0
      %p110 = por %p108, %p109
      %p111 = scmp.ne.s32.totalorder %s103, %s105
      %p112 = scmp.eq.s32.totalorder %s48, 1
      %p113 = por %p111, %p112
      %p114 = scmp.ne.s32.totalorder %s105, %s106
      %p115 = scmp.eq.s32.totalorder %s48, 0
      %p116 = por %p114, %p115
      %p117 = scmp.ne.s32.totalorder %s105, %s106
      %p118 = scmp.eq.s32.totalorder %s49, 1
      %p119 = por %p117, %p118
      %p121 = scmp.ne.s32.totalorder %s106, %s120
      %p122 = scmp.eq.s32.totalorder %s49, 0
      %p123 = por %p121, %p122
      %s125 = sadd.s32 %s124, 1
      %p128 = scmp.eq.s32.totalorder %s43, 1
      %p129 = scmp.ne.s32.totalorder %s124, %s126
      %p130 = scmp.eq.s32.totalorder %s43, 0
      %p131 = por %p129, %p130
      %p132 = scmp.ne.s32.totalorder %s124, %s126
      %p133 = scmp.eq.s32.totalorder %s48, 1
      %p134 = por %p132, %p133
      %p135 = scmp.ne.s32.totalorder %s126, %s127
      %p136 = scmp.eq.s32.totalorder %s48, 0
      %p137 = por %p135, %p136
      %p138 = scmp.ne.s32.totalorder %s126, %s127
      %p139 = scmp.eq.s32.totalorder %s49, 1
      %p140 = por %p138, %p139
      %p142 = scmp.ne.s32.totalorder %s127, %s141
      %p143 = scmp.eq.s32.totalorder %s49, 0
      %p144 = por %p142, %p143
      %s146 = sadd.s32 %s145, 1
      %p149 = scmp.eq.s32.totalorder %s43, 1
      %p150 = scmp.ne.s32.totalorder %s145, %s147
      %p151 = scmp.eq.s32.totalorder %s43, 0
      %p152 = por %p150, %p151
      %p153 = scmp.ne.s32.totalorder %s145, %s147
      %p154 = scmp.eq.s32.totalorder %s48, 1
      %p155 = por %p153, %p154
      %p156 = scmp.ne.s32.totalorder %s147, %s148
      %p157 = scmp.eq.s32.totalorder %s48, 0
      %p158 = por %p156, %p157
      %p159 = scmp.ne.s32.totalorder %s147, %s148
      %p160 = scmp.eq.s32.totalorder %s49, 1
      %p161 = por %p159, %p160
      %p163 = scmp.ne.s32.totalorder %s148, %s162
      %p164 = scmp.eq.s32.totalorder %s49, 0
      %p165 = por %p163, %p164
      %s167 = sadd.s32 %s166, 1
      %p170 = scmp.eq.s32.totalorder %s43, 1
      %p171 = scmp.ne.s32.totalorder %s166, %s168
      %p172 = scmp.eq.s32.totalorder %s43, 0
      %p173 = por %p171, %p172
      %p174 = scmp.ne.s32.totalorder %s166, %s168
      %p175 = scmp.eq.s32.totalorder %s48, 1
      %p176 = por %p174, %p175
      %p177 = scmp.ne.s32.totalorder %s168, %s169
      %p178 = scmp.eq.s32.totalorder %s48, 0
      %p179 = por %p177, %p178
      %p180 = scmp.ne.s32.totalorder %s168, %s169
      %p181 = scmp.eq.s32.totalorder %s49, 1
      %p182 = por %p180, %p181
      %p184 = scmp.ne.s32.totalorder %s169, %s183
      %p185 = scmp.eq.s32.totalorder %s49, 0
      %p186 = por %p184, %p185
      %s188 = sadd.s32 %s187, 1
      %p191 = scmp.eq.s32.totalorder %s43, 1
      %p192 = scmp.ne.s32.totalorder %s187, %s189
      %p193 = scmp.eq.s32.totalorder %s43, 0
      %p194 = por %p192, %p193
      %p195 = scmp.ne.s32.totalorder %s187, %s189
      %p196 = scmp.eq.s32.totalorder %s48, 1
      %p197 = por %p195, %p196
      %p198 = scmp.ne.s32.totalorder %s189, %s190
      %p199 = scmp.eq.s32.totalorder %s48, 0
      %p200 = por %p198, %p199
      %p201 = scmp.ne.s32.totalorder %s189, %s190
      %p202 = scmp.eq.s32.totalorder %s49, 1
      %p203 = por %p201, %p202
      %p205 = scmp.ne.s32.totalorder %s190, %s204
      %p206 = scmp.eq.s32.totalorder %s49, 0
      %p207 = por %p205, %p206
      %s209 = sadd.s32 %s208, 1
      %p212 = scmp.eq.s32.totalorder %s43, 1
      %p213 = scmp.ne.s32.totalorder %s208, %s210
      %p214 = scmp.eq.s32.totalorder %s43, 0
      %p215 = por %p213, %p214
      %p216 = scmp.ne.s32.totalorder %s208, %s210
      %p217 = scmp.eq.s32.totalorder %s48, 1
      %p218 = por %p216, %p217
      %p219 = scmp.ne.s32.totalorder %s210, %s211
      %p220 = scmp.eq.s32.totalorder %s48, 0
      %p221 = por %p219, %p220
      %p222 = scmp.ne.s32.totalorder %s210, %s211
      %p223 = scmp.eq.s32.totalorder %s49, 1
      %p224 = por %p222, %p223
      %p226 = scmp.ne.s32.totalorder %s211, %s225
      %p227 = scmp.eq.s32.totalorder %s49, 0
      %p228 = por %p226, %p227
      %s230 = sadd.s32 %s229, 1
      %p233 = scmp.eq.s32.totalorder %s43, 1
      %p234 = scmp.ne.s32.totalorder %s229, %s231
      %p235 = scmp.eq.s32.totalorder %s43, 0
      %p236 = por %p234, %p235
      %p237 = scmp.ne.s32.totalorder %s229, %s231
      %p238 = scmp.eq.s32.totalorder %s48, 1
      %p239 = por %p237, %p238
      %p240 = scmp.ne.s32.totalorder %s231, %s232
      %p241 = scmp.eq.s32.totalorder %s48, 0
      %p242 = por %p240, %p241
      %p243 = scmp.ne.s32.totalorder %s231, %s232
      %p244 = scmp.eq.s32.totalorder %s49, 1
      %p245 = por %p243, %p244
      %p247 = scmp.ne.s32.totalorder %s232, %s246
      %p248 = scmp.eq.s32.totalorder %s49, 0
      %p249 = por %p247, %p248
      %s251 = sadd.s32 %s250, 1
      %p254 = scmp.eq.s32.totalorder %s43, 1
      %p255 = scmp.ne.s32.totalorder %s250, %s252
      %p256 = scmp.eq.s32.totalorder %s43, 0
      %p257 = por %p255, %p256
      %p258 = scmp.ne.s32.totalorder %s250, %s252
      %p259 = scmp.eq.s32.totalorder %s48, 1
      %p260 = por %p258, %p259
      %p261 = scmp.ne.s32.totalorder %s252, %s253
      %p262 = scmp.eq.s32.totalorder %s48, 0
      %p263 = por %p261, %p262
      %p264 = scmp.ne.s32.totalorder %s252, %s253
      %p265 = scmp.eq.s32.totalorder %s49, 1
      %p266 = por %p264, %p265
      %p268 = scmp.ne.s32.totalorder %s253, %s267
      %p269 = scmp.eq.s32.totalorder %s49, 0
      %p270 = por %p268, %p269
      %s272 = sadd.s32 %s271, 1
      %p275 = scmp.eq.s32.totalorder %s43, 1
      %p276 = scmp.ne.s32.totalorder %s271, %s273
      %p277 = scmp.eq.s32.totalorder %s43, 0
      %p278 = por %p276, %p277
      %p279 = scmp.ne.s32.totalorder %s271, %s273
      %p280 = scmp.eq.s32.totalorder %s48, 1
      %p281 = por %p279, %p280
      %p282 = scmp.ne.s32.totalorder %s273, %s274
      %p283 = scmp.eq.s32.totalorder %s48, 0
      %p284 = por %p282, %p283
      %p285 = scmp.ne.s32.totalorder %s273, %s274
      %p286 = scmp.eq.s32.totalorder %s49, 1
      %p287 = por %p285, %p286
      %p289 = scmp.ne.s32.totalorder %s274, %s288
      %p290 = scmp.eq.s32.totalorder %s49, 0
      %p291 = por %p289, %p290
      %s293 = sadd.s32 %s292, 1
      %p296 = scmp.eq.s32.totalorder %s43, 1
      %p297 = scmp.ne.s32.totalorder %s292, %s294
      %p298 = scmp.eq.s32.totalorder %s43, 0
      %p299 = por %p297, %p298
      %p300 = scmp.ne.s32.totalorder %s292, %s294
      %p301 = scmp.eq.s32.totalorder %s48, 1
      %p302 = por %p300, %p301
      %p303 = scmp.ne.s32.totalorder %s294, %s295
      %p304 = scmp.eq.s32.totalorder %s48, 0
      %p305 = por %p303, %p304
      %p306 = scmp.ne.s32.totalorder %s294, %s295
      %p307 = scmp.eq.s32.totalorder %s49, 1
      %p308 = por %p306, %p307
      %p310 = scmp.ne.s32.totalorder %s295, %s309
      %p311 = scmp.eq.s32.totalorder %s49, 0
      %p312 = por %p310, %p311
      %s314 = sadd.s32 %s313, 1
      %p317 = scmp.eq.s32.totalorder %s43, 1
      %p318 = scmp.ne.s32.totalorder %s313, %s315
      %p319 = scmp.eq.s32.totalorder %s43, 0
      %p320 = por %p318, %p319
      %p321 = scmp.ne.s32.totalorder %s313, %s315
      %p322 = scmp.eq.s32.totalorder %s48, 1
      %p323 = por %p321, %p322
      %p324 = scmp.ne.s32.totalorder %s315, %s316
      %p325 = scmp.eq.s32.totalorder %s48, 0
      %p326 = por %p324, %p325
      %p327 = scmp.ne.s32.totalorder %s315, %s316
      %p328 = scmp.eq.s32.totalorder %s49, 1
      %p329 = por %p327, %p328
      %p331 = scmp.ne.s32.totalorder %s316, %s330
      %p332 = scmp.eq.s32.totalorder %s49, 0
      %p333 = por %p331, %p332
      %s335 = sadd.s32 %s334, 1
      %p338 = scmp.eq.s32.totalorder %s43, 1
      %p339 = scmp.ne.s32.totalorder %s334, %s336
      %p340 = scmp.eq.s32.totalorder %s43, 0
      %p341 = por %p339, %p340
      %p342 = scmp.ne.s32.totalorder %s334, %s336
      %p343 = scmp.eq.s32.totalorder %s48, 1
      %p344 = por %p342, %p343
      %p345 = scmp.ne.s32.totalorder %s336, %s337
      %p346 = scmp.eq.s32.totalorder %s48, 0
      %p347 = por %p345, %p346
      %p348 = scmp.ne.s32.totalorder %s336, %s337
      %p349 = scmp.eq.s32.totalorder %s49, 1
      %p350 = por %p348, %p349
      %p352 = scmp.ne.s32.totalorder %s337, %s351
      %p353 = scmp.eq.s32.totalorder %s49, 0
      %p354 = por %p352, %p353
      %s356 = sadd.s32 %s355, 1
      %p359 = scmp.eq.s32.totalorder %s43, 1
      %p360 = scmp.ne.s32.totalorder %s355, %s357
      %p361 = scmp.eq.s32.totalorder %s43, 0
      %p362 = por %p360, %p361
      %p363 = scmp.ne.s32.totalorder %s355, %s357
      %p364 = scmp.eq.s32.totalorder %s48, 1
      %p365 = por %p363, %p364
      %p366 = scmp.ne.s32.totalorder %s357, %s358
      %p367 = scmp.eq.s32.totalorder %s48, 0
      %p368 = por %p366, %p367
      %p369 = scmp.ne.s32.totalorder %s357, %s358
      %p370 = scmp.eq.s32.totalorder %s49, 1
      %p371 = por %p369, %p370
      %p373 = scmp.ne.s32.totalorder %s358, %s372
      %p374 = scmp.eq.s32.totalorder %s49, 0
      %p375 = por %p373, %p374
      %s377 = sadd.s32 %s376, 1
      %p380 = scmp.eq.s32.totalorder %s43, 1
      %p381 = scmp.ne.s32.totalorder %s376, %s378
      %p382 = scmp.eq.s32.totalorder %s43, 0
      %p383 = por %p381, %p382
      %p384 = scmp.ne.s32.totalorder %s376, %s378
      %p385 = scmp.eq.s32.totalorder %s48, 1
      %p386 = por %p384, %p385
      %p387 = scmp.ne.s32.totalorder %s378, %s379
      %p388 = scmp.eq.s32.totalorder %s48, 0
      %p389 = por %p387, %p388
      %p390 = scmp.ne.s32.totalorder %s378, %s379
      %p391 = scmp.eq.s32.totalorder %s49, 1
      %p392 = por %p390, %p391
      %p394 = scmp.ne.s32.totalorder %s379, %s393
      %p395 = scmp.eq.s32.totalorder %s49, 0
      %p396 = por %p394, %p395
      %s398 = sadd.s32 %s397, 1
      %p401 = scmp.eq.s32.totalorder %s43, 1
      %p402 = scmp.ne.s32.totalorder %s397, %s399
      %p403 = scmp.eq.s32.totalorder %s43, 0
      %p404 = por %p402, %p403
      %p405 = scmp.ne.s32.totalorder %s397, %s399
      %p406 = scmp.eq.s32.totalorder %s48, 1
      %p407 = por %p405, %p406
      %p408 = scmp.ne.s32.totalorder %s399, %s400
      %p409 = scmp.eq.s32.totalorder %s48, 0
      %p410 = por %p408, %p409
      %p411 = scmp.ne.s32.totalorder %s399, %s400
      %p412 = scmp.eq.s32.totalorder %s49, 1
      %p413 = por %p411, %p412
      %p415 = scmp.ne.s32.totalorder %s400, %s414
      %p416 = scmp.eq.s32.totalorder %s49, 0
      %p417 = por %p415, %p416
      %s419 = sadd.s32 %s418, 1
      %p422 = scmp.eq.s32.totalorder %s43, 1
      %p423 = scmp.ne.s32.totalorder %s418, %s420
      %p424 = scmp.eq.s32.totalorder %s43, 0
      %p425 = por %p423, %p424
      %p426 = scmp.ne.s32.totalorder %s418, %s420
      %p427 = scmp.eq.s32.totalorder %s48, 1
      %p428 = por %p426, %p427
      %p429 = scmp.ne.s32.totalorder %s420, %s421
      %p430 = scmp.eq.s32.totalorder %s48, 0
      %p431 = por %p429, %p430
      %p432 = scmp.ne.s32.totalorder %s420, %s421
      %p433 = scmp.eq.s32.totalorder %s49, 1
      %p434 = por %p432, %p433
      %p436 = scmp.ne.s32.totalorder %s421, %s435
      %p437 = scmp.eq.s32.totalorder %s49, 0
      %p438 = por %p436, %p437
      %s440 = sadd.s32 %s439, 1
      %p443 = scmp.eq.s32.totalorder %s43, 1
      %p444 = scmp.ne.s32.totalorder %s439, %s441
      %p445 = scmp.eq.s32.totalorder %s43, 0
      %p446 = por %p444, %p445
      %p447 = scmp.ne.s32.totalorder %s439, %s441
      %p448 = scmp.eq.s32.totalorder %s48, 1
      %p449 = por %p447, %p448
      %p450 = scmp.ne.s32.totalorder %s441, %s442
      %p451 = scmp.eq.s32.totalorder %s48, 0
      %p452 = por %p450, %p451
      %p453 = scmp.ne.s32.totalorder %s441, %s442
      %p454 = scmp.eq.s32.totalorder %s49, 1
      %p455 = por %p453, %p454
      %p457 = scmp.ne.s32.totalorder %s442, %s456
      %p458 = scmp.eq.s32.totalorder %s49, 0
      %p459 = por %p457, %p458
      %s461 = sadd.s32 %s460, 1
      %p464 = scmp.eq.s32.totalorder %s43, 1
      %p465 = scmp.ne.s32.totalorder %s460, %s462
      %p466 = scmp.eq.s32.totalorder %s43, 0
      %p467 = por %p465, %p466
      %p468 = scmp.ne.s32.totalorder %s460, %s462
      %p469 = scmp.eq.s32.totalorder %s48, 1
      %p470 = por %p468, %p469
      %p471 = scmp.ne.s32.totalorder %s462, %s463
      %p472 = scmp.eq.s32.totalorder %s48, 0
      %p473 = por %p471, %p472
      %p474 = scmp.ne.s32.totalorder %s462, %s463
      %p475 = scmp.eq.s32.totalorder %s49, 1
      %p476 = por %p474, %p475
      %p478 = scmp.ne.s32.totalorder %s463, %s477
      %p479 = scmp.eq.s32.totalorder %s49, 0
      %p480 = por %p478, %p479
      %s482 = sadd.s32 %s481, 1
      %p485 = scmp.eq.s32.totalorder %s43, 1
      %p486 = scmp.ne.s32.totalorder %s481, %s483
      %p487 = scmp.eq.s32.totalorder %s43, 0
      %p488 = por %p486, %p487
      %p489 = scmp.ne.s32.totalorder %s481, %s483
      %p490 = scmp.eq.s32.totalorder %s48, 1
      %p491 = por %p489, %p490
      %p492 = scmp.ne.s32.totalorder %s483, %s484
      %p493 = scmp.eq.s32.totalorder %s48, 0
      %p494 = por %p492, %p493
      %p495 = scmp.ne.s32.totalorder %s483, %s484
      %p496 = scmp.eq.s32.totalorder %s49, 1
      %p497 = por %p495, %p496
      %p499 = scmp.ne.s32.totalorder %s484, %s498
      %p500 = scmp.eq.s32.totalorder %s49, 0
      %p501 = por %p499, %p500
      %s502 = ssub.s32 %s43, %s50
      %p503 = scmp.eq.s32.totalorder %s502, 0
      %s505 = sadd.s32 %s504, 1
      %s506 = scalar_select %p503, %s504, %s505
      %p509 = pneg %p503
      %p510 = scmp.eq.s32.totalorder %s43, 1
      %p511 = por %p509, %p510
      %p512 = scmp.ne.s32.totalorder %s504, %s507
      %p513 = scmp.eq.s32.totalorder %s43, 0
      %p514 = por %p512, %p513
      %p515 = scmp.ne.s32.totalorder %s504, %s507
      %p516 = scmp.eq.s32.totalorder %s48, 1
      %p517 = por %p515, %p516
      %p518 = scmp.ne.s32.totalorder %s507, %s508
      %p519 = scmp.eq.s32.totalorder %s48, 0
      %p520 = por %p518, %p519
      %p521 = scmp.ne.s32.totalorder %s507, %s508
      %p522 = scmp.eq.s32.totalorder %s49, 1
      %p523 = por %p521, %p522
      %p525 = scmp.ne.s32.totalorder %s508, %s524
      %p526 = scmp.eq.s32.totalorder %s49, 0
      %p527 = por %p525, %p526
      %s528 = ssub.s32 %s43, %s50
      %p529 = scmp.eq.s32.totalorder %s528, 0
      %s531 = sadd.s32 %s530, 1
      %s532 = scalar_select %p529, %s530, %s531
      %p535 = pneg %p529
      %p536 = scmp.eq.s32.totalorder %s43, 1
      %p537 = por %p535, %p536
      %p538 = scmp.ne.s32.totalorder %s530, %s533
      %p539 = scmp.eq.s32.totalorder %s43, 0
      %p540 = por %p538, %p539
      %p541 = scmp.ne.s32.totalorder %s530, %s533
      %p542 = scmp.eq.s32.totalorder %s48, 1
      %p543 = por %p541, %p542
      %p544 = scmp.ne.s32.totalorder %s533, %s534
      %p545 = scmp.eq.s32.totalorder %s48, 0
      %p546 = por %p544, %p545
      %p547 = scmp.ne.s32.totalorder %s533, %s534
      %p548 = scmp.eq.s32.totalorder %s49, 1
      %p549 = por %p547, %p548
      %p551 = scmp.ne.s32.totalorder %s534, %s550
      %p552 = scmp.eq.s32.totalorder %s49, 0
      %p553 = por %p551, %p552
      %s554 = ssub.s32 %s43, %s50
      %p555 = scmp.eq.s32.totalorder %s554, 0
      %s557 = sadd.s32 %s556, 1
      %s558 = scalar_select %p555, %s556, %s557
      %p561 = pneg %p555
      %p562 = scmp.eq.s32.totalorder %s43, 1
      %p563 = por %p561, %p562
      %p564 = scmp.ne.s32.totalorder %s556, %s559
      %p565 = scmp.eq.s32.totalorder %s43, 0
      %p566 = por %p564, %p565
      %p567 = scmp.ne.s32.totalorder %s556, %s559
      %p568 = scmp.eq.s32.totalorder %s48, 1
      %p569 = por %p567, %p568
      %p570 = scmp.ne.s32.totalorder %s559, %s560
      %p571 = scmp.eq.s32.totalorder %s48, 0
      %p572 = por %p570, %p571
      %p573 = scmp.ne.s32.totalorder %s559, %s560
      %p574 = scmp.eq.s32.totalorder %s49, 1
      %p575 = por %p573, %p574
      %p577 = scmp.ne.s32.totalorder %s560, %s576
      %p578 = scmp.eq.s32.totalorder %s49, 0
      %p579 = por %p577, %p578
      %p580 = scmp.le.s32.totalorder 1, %s43
      %p581 = scmp.lt.s32.totalorder %s43, 3
      %p582 = pnand %p580, %p581
      %p583 = pneg %p582
      // Predicated region
      $region9: #{net_forward.1} parent=5 // pred_check
        _
      $region10: #{net_forward.1} parent=5 // pred_check_branch
        %585 = sbr.rel (%p582) target = $region12
      $region11: #{net_forward.1} parent=5 // pred_region
        %s586 = ssub.s32 %s43, 1
        // Predicated region
        $region13: #{net_forward.1} parent=11 // pred_check
          %p587 = pneg %p116
        $region14: #{net_forward.1} parent=11 // pred_check_branch
          %589 = sbr.rel (%p587) target = $region16
        $region15: #{net_forward.1} parent=11 // pred_region
          _
        $region16: #{net_forward.1} parent=11 // pred_fallthru
          _
        // Predicated region
        $region17: #{net_forward.1} parent=11 // pred_check
          %p590 = pneg %p137
        $region18: #{net_forward.1} parent=11 // pred_check_branch
          %592 = sbr.rel (%p590) target = $region20
        $region19: #{net_forward.1} parent=11 // pred_region
          _
        $region20: #{net_forward.1} parent=11 // pred_fallthru
          _
        // Predicated region
        $region21: #{net_forward.1} parent=11 // pred_check
          %p593 = pneg %p158
        $region22: #{net_forward.1} parent=11 // pred_check_branch
          %595 = sbr.rel (%p593) target = $region24
        $region23: #{net_forward.1} parent=11 // pred_region
          _
        $region24: #{net_forward.1} parent=11 // pred_fallthru
          _
        // Predicated region
        $region25: #{net_forward.1} parent=11 // pred_check
          %p596 = pneg %p179
        $region26: #{net_forward.1} parent=11 // pred_check_branch
          %598 = sbr.rel (%p596) target = $region28
        $region27: #{net_forward.1} parent=11 // pred_region
          %s600 = ssub.s32 1280, 1280
          %601 = vsyncadd [#allocation6], %s600
          %s602 = sshll.u32 [#allocation7], 4
          %s603 = int_to_ptr.vmem [resolvable:$true] %s602
          %608 = dma.hbm_to_vmem [thread:$0]  %s5, 1280, %s603, [#allocation6], 256, 256, 16
        $region28: #{net_forward.1} parent=11 // pred_fallthru
          _
        // Predicated region
        $region29: #{net_forward.1} parent=11 // pred_check
          %p609 = pneg %p200
        $region30: #{net_forward.1} parent=11 // pred_check_branch
          %611 = sbr.rel (%p609) target = $region32
        $region31: #{net_forward.1} parent=11 // pred_region
          %s613 = ssub.s32 1280, 1280
          %614 = vsyncadd [#allocation9], %s613
          %s615 = sshll.u32 [#allocation8], 4
          %s616 = int_to_ptr.vmem [resolvable:$true] %s615
          %621 = dma.hbm_to_vmem [thread:$0]  %s6, 1280, %s616, [#allocation9], 256, 256, 16
        $region32: #{net_forward.1} parent=11 // pred_fallthru
          _
        // Predicated region
        $region33: #{net_forward.1} parent=11 // pred_check
          %p622 = pneg %p221
        $region34: #{net_forward.1} parent=11 // pred_check_branch
          %624 = sbr.rel (%p622) target = $region36
        $region35: #{net_forward.1} parent=11 // pred_region
          %s626 = ssub.s32 32, 32
          %627 = vsyncadd [#allocation9], %s626
          %s629 = sshll.u32 [#allocation10], 4
          %s630 = int_to_ptr.vmem [resolvable:$true] %s629
          %632 = dma.hbm_to_vmem [thread:$0]  %s7, 32, %s630, [#allocation9]
        $region36: #{net_forward.1} parent=11 // pred_fallthru
          _
        // Predicated region
        $region37: #{net_forward.1} parent=11 // pred_check
          %p633 = pneg %p242
        $region38: #{net_forward.1} parent=11 // pred_check_branch
          %635 = sbr.rel (%p633) target = $region40
        $region39: #{net_forward.1} parent=11 // pred_region
          _
        $region40: #{net_forward.1} parent=11 // pred_fallthru
          _
        // Predicated region
        $region41: #{net_forward.1} parent=11 // pred_check
          %p636 = pneg %p263
        $region42: #{net_forward.1} parent=11 // pred_check_branch
          %638 = sbr.rel (%p636) target = $region44
        $region43: #{net_forward.1} parent=11 // pred_region
          _
        $region44: #{net_forward.1} parent=11 // pred_fallthru
          _
        // Predicated region
        $region45: #{net_forward.1} parent=11 // pred_check
          %p639 = pneg %p284
        $region46: #{net_forward.1} parent=11 // pred_check_branch
          %641 = sbr.rel (%p639) target = $region48
        $region47: #{net_forward.1} parent=11 // pred_region
          %s643 = ssub.s32 16, 16
          %644 = vsyncadd [#allocation12], %s643
          %s646 = sshll.u32 [#allocation11], 4
          %s647 = int_to_ptr.vmem [resolvable:$true] %s646
          %649 = dma.hbm_to_vmem [thread:$0]  %s10, 16, %s647, [#allocation12]
        $region48: #{net_forward.1} parent=11 // pred_fallthru
          _
        // Predicated region
        $region49: #{net_forward.1} parent=11 // pred_check
          %p650 = pneg %p305
        $region50: #{net_forward.1} parent=11 // pred_check_branch
          %652 = sbr.rel (%p650) target = $region52
        $region51: #{net_forward.1} parent=11 // pred_region
          _
        $region52: #{net_forward.1} parent=11 // pred_fallthru
          _
        // Predicated region
        $region53: #{net_forward.1} parent=11 // pred_check
          %p653 = pneg %p326
        $region54: #{net_forward.1} parent=11 // pred_check_branch
          %655 = sbr.rel (%p653) target = $region56
        $region55: #{net_forward.1} parent=11 // pred_region
          _
        $region56: #{net_forward.1} parent=11 // pred_fallthru
          _
        // Predicated region
        $region57: #{net_forward.1} parent=11 // pred_check
          %p656 = pneg %p347
        $region58: #{net_forward.1} parent=11 // pred_check_branch
          %658 = sbr.rel (%p656) target = $region60
        $region59: #{net_forward.1} parent=11 // pred_region
          %s660 = ssub.s32 32, 32
          %661 = vsyncadd [#allocation12], %s660
          %s663 = sshll.u32 [#allocation13], 4
          %s664 = int_to_ptr.vmem [resolvable:$true] %s663
          %666 = dma.hbm_to_vmem [thread:$0]  %s13, 32, %s664, [#allocation12]
        $region60: #{net_forward.1} parent=11 // pred_fallthru
          _
        // Predicated region
        $region61: #{net_forward.1} parent=11 // pred_check
          %p667 = pneg %p368
        $region62: #{net_forward.1} parent=11 // pred_check_branch
          %669 = sbr.rel (%p667) target = $region64
        $region63: #{net_forward.1} parent=11 // pred_region
          %s671 = ssub.s32 6144, 6144
          %672 = vsyncadd [#allocation15], %s671
          %s673 = sshll.u32 [#allocation14], 4
          %s674 = int_to_ptr.vmem [resolvable:$true] %s673
          %679 = dma.hbm_to_vmem [thread:$0]  %s14, 6144, %s674, [#allocation15], 256, 256, 16
        $region64: #{net_forward.1} parent=11 // pred_fallthru
          _
        // Predicated region
        $region65: #{net_forward.1} parent=11 // pred_check
          %p680 = pneg %p389
        $region66: #{net_forward.1} parent=11 // pred_check_branch
          %682 = sbr.rel (%p680) target = $region68
        $region67: #{net_forward.1} parent=11 // pred_region
          %s684 = ssub.s32 6144, 6144
          %685 = vsyncadd [#allocation15], %s684
          %s686 = sshll.u32 [#allocation16], 4
          %s687 = int_to_ptr.vmem [resolvable:$true] %s686
          %692 = dma.hbm_to_vmem [thread:$0]  %s15, 6144, %s687, [#allocation15], 256, 256, 16
        $region68: #{net_forward.1} parent=11 // pred_fallthru
          _
        // Predicated region
        $region69: #{net_forward.1} parent=11 // pred_check
          %p693 = pneg %p410
        $region70: #{net_forward.1} parent=11 // pred_check_branch
          %695 = sbr.rel (%p693) target = $region72
        $region71: #{net_forward.1} parent=11 // pred_region
          _
        $region72: #{net_forward.1} parent=11 // pred_fallthru
          _
        // Predicated region
        $region73: #{net_forward.1} parent=11 // pred_check
          %p696 = pneg %p431
        $region74: #{net_forward.1} parent=11 // pred_check_branch
          %698 = sbr.rel (%p696) target = $region76
        $region75: #{net_forward.1} parent=11 // pred_region
          %s700 = ssub.s32 6144, 6144
          %701 = vsyncadd [#allocation18], %s700
          %s702 = sshll.u32 [#allocation17], 4
          %s703 = int_to_ptr.vmem [resolvable:$true] %s702
          %708 = dma.hbm_to_vmem [thread:$0]  %s17, 6144, %s703, [#allocation18], 256, 256, 16
        $region76: #{net_forward.1} parent=11 // pred_fallthru
          _
        // Predicated region
        $region77: #{net_forward.1} parent=11 // pred_check
          %p709 = pneg %p452
        $region78: #{net_forward.1} parent=11 // pred_check_branch
          %711 = sbr.rel (%p709) target = $region80
        $region79: #{net_forward.1} parent=11 // pred_region
          _
        $region80: #{net_forward.1} parent=11 // pred_fallthru
          _
        // Predicated region
        $region81: #{net_forward.1} parent=11 // pred_check
          %p712 = pneg %p473
        $region82: #{net_forward.1} parent=11 // pred_check_branch
          %714 = sbr.rel (%p712) target = $region84
        $region83: #{net_forward.1} parent=11 // pred_region
          _
        $region84: #{net_forward.1} parent=11 // pred_fallthru
          _
        // Predicated region
        $region85: #{net_forward.1} parent=11 // pred_check
          %p715 = pneg %p494
        $region86: #{net_forward.1} parent=11 // pred_check_branch
          %717 = sbr.rel (%p715) target = $region88
        $region87: #{net_forward.1} parent=11 // pred_region
          _
        $region88: #{net_forward.1} parent=11 // pred_fallthru
          _
      $region12: #{net_forward.1} parent=5 // pred_fallthru
        _
      %p718 = scmp.lt.s32.totalorder %s43, 2
      // Predicated region
      $region89: #{net_forward.1} parent=5 // pred_check
        %p719 = pneg %p718
      $region90: #{net_forward.1} parent=5 // pred_check_branch
        %721 = sbr.rel (%p719) target = $region92
      $region91: #{net_forward.1} parent=5 // pred_region
        // Predicated region
        $region93: #{net_forward.1} parent=91 // pred_check
          %p722 = pneg %p63
        $region94: #{net_forward.1} parent=91 // pred_check_branch
          %724 = sbr.rel (%p722) target = $region96
        $region95: #{net_forward.1} parent=91 // pred_region
          %s725 = sand.u32 %s53, 1
          %s726 = scalar_lea.sflag [#allocation3], %s725
          %s727 = sand.u32 %s53, 1
          %s728 = smul.addr %s727, 16
          %s729 = scalar_lea.vmem [#allocation2], %s728
          %s731 = ssub.s32 256, 256
          %732 = vsyncadd %s726, %s731
          %s733 = smul.addr %s43, 2
          %s734 = smul.addr %s733, 128
          %s735 = scalar_lea.hbm %s0, %s734
          %s736 = sshll.u32 %s729, 4
          %s737 = int_to_ptr.vmem [resolvable:$true] %s736
          %742 = dma.hbm_to_vmem [thread:$0]  %s735, 256, %s737, %s726, 128, 128, 8
        $region96: #{net_forward.1} parent=91 // pred_fallthru
          _
        // Predicated region
        $region97: #{net_forward.1} parent=91 // pred_check
          %p743 = pneg %p89
        $region98: #{net_forward.1} parent=91 // pred_check_branch
          %745 = sbr.rel (%p743) target = $region100
        $region99: #{net_forward.1} parent=91 // pred_region
          %s746 = sand.u32 %s43, 1
          %s747 = scalar_lea.sflag [#allocation6], %s746
          %s748 = sand.u32 %s79, 1
          %s749 = smul.addr %s748, 16
          %s750 = scalar_lea.vmem [#allocation5], %s749
          %s752 = ssub.s32 256, 256
          %753 = vsyncadd %s747, %s752
          %s754 = smul.addr %s43, 2
          %s755 = smul.addr %s754, 128
          %s756 = scalar_lea.hbm %s1, %s755
          %s757 = sshll.u32 %s750, 4
          %s758 = int_to_ptr.vmem [resolvable:$true] %s757
          %763 = dma.hbm_to_vmem [thread:$0]  %s756, 256, %s758, %s747, 128, 128, 8
        $region100: #{net_forward.1} parent=91 // pred_fallthru
          _
      $region92: #{net_forward.1} parent=5 // pred_fallthru
        _
      %p764 = scmp.le.s32.totalorder 1, %s43
      %p765 = scmp.lt.s32.totalorder %s43, 3
      %p766 = pnand %p764, %p765
      %p767 = pneg %p766
      // Predicated region
      $region101: #{net_forward.1} parent=5 // pred_check
        _
      $region102: #{net_forward.1} parent=5 // pred_check_branch
        %769 = sbr.rel (%p766) target = $region104
      $region103: #{net_forward.1} parent=5 // pred_region
        %s770 = ssub.s32 %s43, 1
        %s771 = sand.u32 %s56, 1
        %s772 = scalar_lea.sflag [#allocation3], %s771
        %s773 = sand.u32 %s56, 1
        %s774 = smul.addr %s773, 16
        %s775 = scalar_lea.vmem [#allocation2], %s774
        // Predicated region
        $region105: #{net_forward.1} parent=103 // pred_check
          %p776 = pneg %p69
        $region106: #{net_forward.1} parent=103 // pred_check_branch
          %778 = sbr.rel (%p776) target = $region108
        $region107: #{net_forward.1} parent=103 // pred_region
          %779 = dma.done %s772, 256
        $region108: #{net_forward.1} parent=103 // pred_fallthru
          _
        %s780 = sand.u32 %s48, 1
        %s781 = scalar_lea.sflag [#allocation6], %s780
        %s782 = sand.u32 %s82, 1
        %s783 = smul.addr %s782, 16
        %s784 = scalar_lea.vmem [#allocation5], %s783
        // Predicated region
        $region109: #{net_forward.1} parent=103 // pred_check
          %p785 = pneg %p95
        $region110: #{net_forward.1} parent=103 // pred_check_branch
          %787 = sbr.rel (%p785) target = $region112
        $region111: #{net_forward.1} parent=103 // pred_region
          %788 = dma.done %s781, 256
        $region112: #{net_forward.1} parent=103 // pred_fallthru
          _
        // Predicated region
        $region113: #{net_forward.1} parent=103 // pred_check
          %p789 = pneg %p179
        $region114: #{net_forward.1} parent=103 // pred_check_branch
          %791 = sbr.rel (%p789) target = $region116
        $region115: #{net_forward.1} parent=103 // pred_region
          %792 = dma.done [#allocation6], 1280
        $region116: #{net_forward.1} parent=103 // pred_fallthru
          _
        // Predicated region
        $region117: #{net_forward.1} parent=103 // pred_check
          %p793 = pneg %p200
        $region118: #{net_forward.1} parent=103 // pred_check_branch
          %795 = sbr.rel (%p793) target = $region120
        $region119: #{net_forward.1} parent=103 // pred_region
          %796 = dma.done [#allocation9], 1280
        $region120: #{net_forward.1} parent=103 // pred_fallthru
          _
        // Predicated region
        $region121: #{net_forward.1} parent=103 // pred_check
          %p797 = pneg %p221
        $region122: #{net_forward.1} parent=103 // pred_check_branch
          %799 = sbr.rel (%p797) target = $region124
        $region123: #{net_forward.1} parent=103 // pred_region
          %800 = dma.done [#allocation9], 32
        $region124: #{net_forward.1} parent=103 // pred_fallthru
          _
        // Predicated region
        $region125: #{net_forward.1} parent=103 // pred_check
          %p801 = pneg %p284
        $region126: #{net_forward.1} parent=103 // pred_check_branch
          %803 = sbr.rel (%p801) target = $region128
        $region127: #{net_forward.1} parent=103 // pred_region
          %804 = dma.done [#allocation12], 16
        $region128: #{net_forward.1} parent=103 // pred_fallthru
          _
        // Predicated region
        $region129: #{net_forward.1} parent=103 // pred_check
          %p805 = pneg %p347
        $region130: #{net_forward.1} parent=103 // pred_check_branch
          %807 = sbr.rel (%p805) target = $region132
        $region131: #{net_forward.1} parent=103 // pred_region
          %808 = dma.done [#allocation12], 32
        $region132: #{net_forward.1} parent=103 // pred_fallthru
          _
        // Predicated region
        $region133: #{net_forward.1} parent=103 // pred_check
          %p809 = pneg %p368
        $region134: #{net_forward.1} parent=103 // pred_check_branch
          %811 = sbr.rel (%p809) target = $region136
        $region135: #{net_forward.1} parent=103 // pred_region
          %812 = dma.done [#allocation15], 6144
        $region136: #{net_forward.1} parent=103 // pred_fallthru
          _
        // Predicated region
        $region137: #{net_forward.1} parent=103 // pred_check
          %p813 = pneg %p389
        $region138: #{net_forward.1} parent=103 // pred_check_branch
          %815 = sbr.rel (%p813) target = $region140
        $region139: #{net_forward.1} parent=103 // pred_region
          %816 = dma.done [#allocation15], 6144
        $region140: #{net_forward.1} parent=103 // pred_fallthru
          _
        // Predicated region
        $region141: #{net_forward.1} parent=103 // pred_check
          %p817 = pneg %p431
        $region142: #{net_forward.1} parent=103 // pred_check_branch
          %819 = sbr.rel (%p817) target = $region144
        $region143: #{net_forward.1} parent=103 // pred_region
          %820 = dma.done [#allocation18], 6144
        $region144: #{net_forward.1} parent=103 // pred_fallthru
          _
        %s821 = sand.u32 %s56, 1
        %s822 = scalar_lea.sflag [#allocation3], %s821
        %s823 = sand.u32 %s56, 1
        %s824 = smul.addr %s823, 16
        %s825 = scalar_lea.vmem [#allocation2], %s824
        %p826 = pneg %p69
        %p827 = pneg %p66
        %s828 = sand.u32 %s48, 1
        %s829 = scalar_lea.sflag [#allocation6], %s828
        %s830 = sand.u32 %s82, 1
        %s831 = smul.addr %s830, 16
        %s832 = scalar_lea.vmem [#allocation5], %s831
        %p833 = pneg %p95
        %p834 = pneg %p92
        %p835 = pneg %p116
        %p836 = pneg %p113
        %p837 = pneg %p137
        %p838 = pneg %p134
        %p839 = pneg %p158
        %p840 = pneg %p155
        %p841 = pneg %p179
        %p842 = pneg %p176
        %p843 = pneg %p200
        %p844 = pneg %p197
        %p845 = pneg %p221
        %p846 = pneg %p218
        %p847 = pneg %p242
        %p848 = pneg %p239
        %p849 = pneg %p263
        %p850 = pneg %p260
        %p851 = pneg %p284
        %p852 = pneg %p281
        %p853 = pneg %p305
        %p854 = pneg %p302
        %p855 = pneg %p326
        %p856 = pneg %p323
        %p857 = pneg %p347
        %p858 = pneg %p344
        %p859 = pneg %p368
        %p860 = pneg %p365
        %p861 = pneg %p389
        %p862 = pneg %p386
        %p863 = pneg %p410
        %p864 = pneg %p407
        %p865 = pneg %p431
        %p866 = pneg %p428
        %p867 = pneg %p452
        %p868 = pneg %p449
        %p869 = pneg %p473
        %p870 = pneg %p470
        %p871 = pneg %p494
        %p872 = pneg %p491
        %p873 = pneg %p520
        %p874 = pneg %p517
        %s875 = sand.u32 %s507, 1
        %s876 = scalar_lea.sflag [#allocation4], %s875
        %s877 = sand.u32 %s507, 1
        %s878 = scalar_lea.vmem [#allocation19], %s877
        %p879 = pneg %p546
        %p880 = pneg %p543
        %p881 = scmp.lt.s32.totalorder %s48, 1
        %s882 = scalar_select %p881, %s48, 1
        %s883 = smul.addr %s882, 2
        %s884 = scalar_lea.vmem %s22, %s883
        %p885 = pneg %p572
        %p886 = pneg %p569
        %p887 = scmp.lt.s32.totalorder %s48, 1
        %s888 = scalar_select %p887, %s48, 1
        %s889 = scalar_lea.vmem %s23, %s888
        %p890 = scmp.lt.s32.totalorder %s48, 1
        %s891 = scalar_select %p890, %s48, 1
        %s892 = smul.addr %s891, 2
        %s893 = scalar_lea.vmem %s22, %s892
        %p894 = scmp.lt.s32.totalorder %s48, 1
        %s895 = scalar_select %p894, %s48, 1
        %s896 = scalar_lea.vmem %s23, %s895
        %v897 = vld [vmem:[%s775] sm:$0xff]
        %v898 = vld [vmem:[%s775 + $0x8] sm:$0xff]
        %v899 = vld [vmem:[%s784] sm:$0xff]
        %v900 = vld [vmem:[%s784 + $0x8] sm:$0xff]
        %vm901 = vcmask 130048
        %v903 = vsel %vm901, %v899, 0
        %v906 = vsel %vm901, %v900, 0
        %908 = vmatprep.subr.mxu0 0.0
        %909 = vmatpush1.msra.mxu0 %v897
        %910 = vmatprep.subr.mxu0 0.0
        %911 = vmatpush1.msra.mxu0 %v898
        %912 = vmatprep.subr.mxu0 0.0
        %913 = vmatpush1.msra.mxu0 0.0
        %914 = vmatprep.subr.mxu0 0.0
        %915 = vmatpush1.msra.mxu0 0.0
        %916 = vmatprep.subr.mxu0 0.0
        %917 = vmatpush1.msra.mxu0 0.0
        %918 = vmatprep.subr.mxu0 0.0
        %919 = vmatpush1.msra.mxu0 0.0
        %920 = vmatprep.subr.mxu0 0.0
        %921 = vmatpush1.msra.mxu0 0.0
        %922 = vmatprep.subr.mxu0 0.0
        %923 = vmatpush1.msra.mxu0 0.0
        %924 = vmatprep.subr.mxu0 0.0
        %925 = vmatpush1.msra.mxu0 0.0
        %926 = vmatprep.subr.mxu0 0.0
        %927 = vmatpush1.msra.mxu0 0.0
        %928 = vmatprep.subr.mxu0 0.0
        %929 = vmatpush1.msra.mxu0 0.0
        %930 = vmatprep.subr.mxu0 0.0
        %931 = vmatpush1.msra.mxu0 0.0
        %932 = vmatprep.subr.mxu0 0.0
        %933 = vmatpush1.msra.mxu0 0.0
        %934 = vmatprep.subr.mxu0 0.0
        %935 = vmatpush1.msra.mxu0 0.0
        %936 = vmatprep.subr.mxu0 0.0
        %937 = vmatpush1.msra.mxu0 0.0
        %938 = vmatprep.subr.mxu0 0.0
        %939 = vmatpush1.msra.mxu0 0.0
        %940 = vmatprep.subr.mxu0 0.0
        %941 = vmatpush1.msra.mxu0 0.0
        %942 = vmatprep.subr.mxu0 0.0
        %943 = vmatpush1.msra.mxu0 0.0
        %944 = vmatprep.subr.mxu0 0.0
        %945 = vmatpush1.msra.mxu0 0.0
        %946 = vmatprep.subr.mxu0 0.0
        %947 = vmatpush1.msra.mxu0 0.0
        %948 = vmatprep.subr.mxu0 0.0
        %949 = vmatpush1.msra.mxu0 0.0
        %950 = vmatprep.subr.mxu0 0.0
        %951 = vmatpush1.msra.mxu0 0.0
        %952 = vmatprep.subr.mxu0 0.0
        %953 = vmatpush1.msra.mxu0 0.0
        %954 = vmatprep.subr.mxu0 0.0
        %955 = vmatpush1.msra.mxu0 0.0
        %956 = vmatprep.subr.mxu0 0.0
        %957 = vmatpush1.msra.mxu0 0.0
        %958 = vmatprep.subr.mxu0 0.0
        %959 = vmatpush1.msra.mxu0 0.0
        %960 = vmatprep.subr.mxu0 0.0
        %961 = vmatpush1.msra.mxu0 0.0
        %962 = vmatprep.subr.mxu0 0.0
        %963 = vmatpush1.msra.mxu0 0.0
        %964 = vmatprep.subr.mxu0 0.0
        %965 = vmatpush1.msra.mxu0 0.0
        %966 = vmatprep.subr.mxu0 0.0
        %967 = vmatpush1.msra.mxu0 0.0
        %968 = vmatprep.subr.mxu0 0.0
        %969 = vmatpush1.msra.mxu0 0.0
        %970 = vmatprep.subr.mxu0 0.0
        %971 = vmatpush1.msra.mxu0 0.0
        %972 = vmatprep.mubr.f32.mxu0 0.0
        %973 = vmatmul.mubr.f32.gmra.mrb[0].mxu0 %v903
        %v974 = vpop.f32.mrb[0].mxu0
        %v975 = vadd.f32 0.0, %v974
        %v976 = vpop.f32.mrb[0].mxu0
        %977 = vmatprep.mubr.f32.mxu0 0.0
        %978 = vmatmul.mubr.f32.gmra.mrb[0].mxu0 %v906
        %v979 = vpop.f32.mrb[0].mxu0
        %v980 = vadd.f32 0.0, %v979
        %v981 = vpop.f32.mrb[0].mxu0
        %982 = vdwg.mxu0
        %v983 = vsel %vm901, %v899, 0.0
        %984 = vadd.xlane.f32.xlu0 %v983
        %v985 = vpop.xlane.xlu0 %984
        %v986 = vsel %vm901, %v900, 0.0
        %987 = vadd.xlane.f32.xlu0 %v986
        %v988 = vpop.xlane.xlu0 %987
        %v989 = vmax.f32 %v985, 1.0
        %v990 = vmax.f32 %v988, 1.0
        %v991 = vrcp.pop %v989
        %v992 = vrcp.pop %v990
        %v993 = vmul.f32 %v975, %v991
        %v994 = vmul.f32 %v980, %v992
        %v995 = vld [vmem:[%s2] sm:$0xff]
        %v996 = vld [vmem:[%s2 + $0x8] sm:$0xff]
        %v997 = vld [vmem:[%s2 + $0x10] sm:$0xff]
        %v998 = vld [vmem:[%s2 + $0x18] sm:$0xff]
        %v999 = vld [vmem:[%s2 + $0x20] sm:$0x1f]
        %v1000 = vld [vmem:[%s3] sm:$0xff]
        %v1001 = vld [vmem:[%s3 + $0x8] sm:$0xff]
        %v1002 = vld [vmem:[%s3 + $0x10] sm:$0xff]
        %v1003 = vld [vmem:[%s3 + $0x18] sm:$0xff]
        %v1004 = vld [vmem:[%s3 + $0x20] sm:$0x1f]
        %vm1005 = vcmask 302080
        %v1007 = vsel %vm1005, %v897, 0
        %v1010 = vsel %vm1005, %v898, 0
        %vm1012 = vcmask 1044480
        %v1014 = vsel %vm1012, %v1004, 0
        %1016 = vmatprep.subr.mxu0 0.0
        %1017 = vmatpush1.msra.mxu0 %v1000
        %1018 = vmatprep.subr.mxu0 0.0
        %1019 = vmatpush1.msra.mxu0 %v1001
        %1020 = vmatprep.subr.mxu0 0.0
        %1021 = vmatpush1.msra.mxu0 %v1002
        %1022 = vmatprep.subr.mxu0 0.0
        %1023 = vmatpush1.msra.mxu0 %v1003
        %1024 = vmatprep.subr.mxu0 0.0
        %1025 = vmatpush1.msra.mxu0 %v1014
        %1026 = vmatprep.subr.mxu0 0.0
        %1027 = vmatpush1.msra.mxu0 0.0
        %1028 = vmatprep.subr.mxu0 0.0
        %1029 = vmatpush1.msra.mxu0 0.0
        %1030 = vmatprep.subr.mxu0 0.0
        %1031 = vmatpush1.msra.mxu0 0.0
        %1032 = vmatprep.subr.mxu0 0.0
        %1033 = vmatpush1.msra.mxu0 0.0
        %1034 = vmatprep.subr.mxu0 0.0
        %1035 = vmatpush1.msra.mxu0 0.0
        %1036 = vmatprep.subr.mxu0 0.0
        %1037 = vmatpush1.msra.mxu0 0.0
        %1038 = vmatprep.subr.mxu0 0.0
        %1039 = vmatpush1.msra.mxu0 0.0
        %1040 = vmatprep.subr.mxu0 0.0
        %1041 = vmatpush1.msra.mxu0 0.0
        %1042 = vmatprep.subr.mxu0 0.0
        %1043 = vmatpush1.msra.mxu0 0.0
        %1044 = vmatprep.subr.mxu0 0.0
        %1045 = vmatpush1.msra.mxu0 0.0
        %1046 = vmatprep.subr.mxu0 0.0
        %1047 = vmatpush1.msra.mxu0 0.0
        %1048 = vmatprep.subr.mxu0 0.0
        %1049 = vmatpush1.msra.mxu0 0.0
        %1050 = vmatprep.subr.mxu0 0.0
        %1051 = vmatpush1.msra.mxu0 0.0
        %1052 = vmatprep.subr.mxu0 0.0
        %1053 = vmatpush1.msra.mxu0 0.0
        %1054 = vmatprep.subr.mxu0 0.0
        %1055 = vmatpush1.msra.mxu0 0.0
        %1056 = vmatprep.subr.mxu0 0.0
        %1057 = vmatpush1.msra.mxu0 0.0
        %1058 = vmatprep.subr.mxu0 0.0
        %1059 = vmatpush1.msra.mxu0 0.0
        %1060 = vmatprep.subr.mxu0 0.0
        %1061 = vmatpush1.msra.mxu0 0.0
        %1062 = vmatprep.subr.mxu0 0.0
        %1063 = vmatpush1.msra.mxu0 0.0
        %1064 = vmatprep.subr.mxu0 0.0
        %1065 = vmatpush1.msra.mxu0 0.0
        %1066 = vmatprep.subr.mxu0 0.0
        %1067 = vmatpush1.msra.mxu0 0.0
        %1068 = vmatprep.subr.mxu0 0.0
        %1069 = vmatpush1.msra.mxu0 0.0
        %1070 = vmatprep.subr.mxu0 0.0
        %1071 = vmatpush1.msra.mxu0 0.0
        %1072 = vmatprep.subr.mxu0 0.0
        %1073 = vmatpush1.msra.mxu0 0.0
        %1074 = vmatprep.subr.mxu0 0.0
        %1075 = vmatpush1.msra.mxu0 0.0
        %1076 = vmatprep.subr.mxu0 0.0
        %1077 = vmatpush1.msra.mxu0 0.0
        %1078 = vmatprep.subr.mxu0 0.0
        %1079 = vmatpush1.msra.mxu0 0.0
        %1080 = vmatprep.mubr.f32.mxu0 0.0
        %1081 = vmatmul.mubr.f32.gmra.mrb[0].mxu0 %v1007
        %v1082 = vpop.f32.mrb[0].mxu0
        %v1083 = vadd.f32 0.0, %v1082
        %v1084 = vpop.f32.mrb[0].mxu0
        %1085 = vmatprep.mubr.f32.mxu0 0.0
        %1086 = vmatmul.mubr.f32.gmra.mrb[0].mxu0 %v1010
        %v1087 = vpop.f32.mrb[0].mxu0
        %v1088 = vadd.f32 0.0, %v1087
        %v1089 = vpop.f32.mrb[0].mxu0
        %1090 = vdwg.mxu0
        %v1092 = vsel %vm1005, %v993, 0
        %v1095 = vsel %vm1005, %v994, 0
        %v1098 = vsel %vm1012, %v999, 0
        %1100 = vmatprep.subr.mxu0 0.0
        %1101 = vmatpush1.msra.mxu0 %v995
        %1102 = vmatprep.subr.mxu0 0.0
        %1103 = vmatpush1.msra.mxu0 %v996
        %1104 = vmatprep.subr.mxu0 0.0
        %1105 = vmatpush1.msra.mxu0 %v997
        %1106 = vmatprep.subr.mxu0 0.0
        %1107 = vmatpush1.msra.mxu0 %v998
        %1108 = vmatprep.subr.mxu0 0.0
        %1109 = vmatpush1.msra.mxu0 %v1098
        %1110 = vmatprep.subr.mxu0 0.0
        %1111 = vmatpush1.msra.mxu0 0.0
        %1112 = vmatprep.subr.mxu0 0.0
        %1113 = vmatpush1.msra.mxu0 0.0
        %1114 = vmatprep.subr.mxu0 0.0
        %1115 = vmatpush1.msra.mxu0 0.0
        %1116 = vmatprep.subr.mxu0 0.0
        %1117 = vmatpush1.msra.mxu0 0.0
        %1118 = vmatprep.subr.mxu0 0.0
        %1119 = vmatpush1.msra.mxu0 0.0
        %1120 = vmatprep.subr.mxu0 0.0
        %1121 = vmatpush1.msra.mxu0 0.0
        %1122 = vmatprep.subr.mxu0 0.0
        %1123 = vmatpush1.msra.mxu0 0.0
        %1124 = vmatprep.subr.mxu0 0.0
        %1125 = vmatpush1.msra.mxu0 0.0
        %1126 = vmatprep.subr.mxu0 0.0
        %1127 = vmatpush1.msra.mxu0 0.0
        %1128 = vmatprep.subr.mxu0 0.0
        %1129 = vmatpush1.msra.mxu0 0.0
        %1130 = vmatprep.subr.mxu0 0.0
        %1131 = vmatpush1.msra.mxu0 0.0
        %1132 = vmatprep.subr.mxu0 0.0
        %1133 = vmatpush1.msra.mxu0 0.0
        %1134 = vmatprep.subr.mxu0 0.0
        %1135 = vmatpush1.msra.mxu0 0.0
        %1136 = vmatprep.subr.mxu0 0.0
        %1137 = vmatpush1.msra.mxu0 0.0
        %1138 = vmatprep.subr.mxu0 0.0
        %1139 = vmatpush1.msra.mxu0 0.0
        %1140 = vmatprep.subr.mxu0 0.0
        %1141 = vmatpush1.msra.mxu0 0.0
        %1142 = vmatprep.subr.mxu0 0.0
        %1143 = vmatpush1.msra.mxu0 0.0
        %1144 = vmatprep.subr.mxu0 0.0
        %1145 = vmatpush1.msra.mxu0 0.0
        %1146 = vmatprep.subr.mxu0 0.0
        %1147 = vmatpush1.msra.mxu0 0.0
        %1148 = vmatprep.subr.mxu0 0.0
        %1149 = vmatpush1.msra.mxu0 0.0
        %1150 = vmatprep.subr.mxu0 0.0
        %1151 = vmatpush1.msra.mxu0 0.0
        %1152 = vmatprep.subr.mxu0 0.0
        %1153 = vmatpush1.msra.mxu0 0.0
        %1154 = vmatprep.subr.mxu0 0.0
        %1155 = vmatpush1.msra.mxu0 0.0
        %1156 = vmatprep.subr.mxu0 0.0
        %1157 = vmatpush1.msra.mxu0 0.0
        %1158 = vmatprep.subr.mxu0 0.0
        %1159 = vmatpush1.msra.mxu0 0.0
        %1160 = vmatprep.subr.mxu0 0.0
        %1161 = vmatpush1.msra.mxu0 0.0
        %1162 = vmatprep.subr.mxu0 0.0
        %1163 = vmatpush1.msra.mxu0 0.0
        %1164 = vmatprep.mubr.f32.mxu0 0.0
        %1165 = vmatmul.mubr.f32.gmra.mrb[0].mxu0 %v1092
        %v1166 = vpop.f32.mrb[0].mxu0
        %v1167 = vadd.f32 %v1083, %v1166
        %v1168 = vpop.f32.mrb[0].mxu0
        %1169 = vmatprep.mubr.f32.mxu0 0.0
        %1170 = vmatmul.mubr.f32.gmra.mrb[0].mxu0 %v1095
        %v1171 = vpop.f32.mrb[0].mxu0
        %v1172 = vadd.f32 %v1088, %v1171
        %v1173 = vpop.f32.mrb[0].mxu0
        %1174 = vdwg.mxu0
        %v1175 = vld [vmem:[%s4] sm:$0x1]
        %v1177 = vlaneseq
        %v1178 = vshrl.u32 %v1177, 7
        %v1179 = vsub.s32 0, %v1178
        %v1180 = vrot.slane %v1175, %v1179
        %v1182 = vadd.f32 %v1167, %v1180
        %v1183 = vadd.f32 %v1172, %v1180
        %v1184 = vld [vmem:[#allocation7] sm:$0xff]
        %v1185 = vld [vmem:[#allocation7 + $0x8] sm:$0xff]
        %v1186 = vld [vmem:[#allocation7 + $0x10] sm:$0xff]
        %v1187 = vld [vmem:[#allocation7 + $0x18] sm:$0xff]
        %v1188 = vld [vmem:[#allocation7 + $0x20] sm:$0xff]
        %v1189 = vld [vmem:[#allocation7 + $0x28] sm:$0xff]
        %v1190 = vld [vmem:[#allocation7 + $0x30] sm:$0xff]
        %v1191 = vld [vmem:[#allocation7 + $0x38] sm:$0xff]
        %v1192 = vld [vmem:[#allocation7 + $0x40] sm:$0x1f]
        %v1193 = vld [vmem:[#allocation7 + $0x48] sm:$0x1f]
        %v1194 = vld [vmem:[#allocation8] sm:$0xff]
        %v1195 = vld [vmem:[#allocation8 + $0x8] sm:$0xff]
        %v1196 = vld [vmem:[#allocation8 + $0x10] sm:$0xff]
        %v1197 = vld [vmem:[#allocation8 + $0x18] sm:$0xff]
        %v1198 = vld [vmem:[#allocation8 + $0x20] sm:$0xff]
        %v1199 = vld [vmem:[#allocation8 + $0x28] sm:$0xff]
        %v1200 = vld [vmem:[#allocation8 + $0x30] sm:$0xff]
        %v1201 = vld [vmem:[#allocation8 + $0x38] sm:$0xff]
        %v1202 = vld [vmem:[#allocation8 + $0x40] sm:$0x1f]
        %v1203 = vld [vmem:[#allocation8 + $0x48] sm:$0x1f]
        %v1205 = vsel %vm1012, %v1202, 0
        %v1208 = vsel %vm1012, %v1203, 0
        %1210 = vmatprep.subr.mxu0 %v1195
        %1211 = vmatpush1.msra.mxu0 %v1194
        %1212 = vmatprep.subr.mxu0 %v1197
        %1213 = vmatpush1.msra.mxu0 %v1196
        %1214 = vmatprep.subr.mxu0 %v1199
        %1215 = vmatpush1.msra.mxu0 %v1198
        %1216 = vmatprep.subr.mxu0 %v1201
        %1217 = vmatpush1.msra.mxu0 %v1200
        %1218 = vmatprep.subr.mxu0 %v1208
        %1219 = vmatpush1.msra.mxu0 %v1205
        %1220 = vmatprep.subr.mxu0 0.0
        %1221 = vmatpush1.msra.mxu0 0.0
        %1222 = vmatprep.subr.mxu0 0.0
        %1223 = vmatpush1.msra.mxu0 0.0
        %1224 = vmatprep.subr.mxu0 0.0
        %1225 = vmatpush1.msra.mxu0 0.0
        %1226 = vmatprep.subr.mxu0 0.0
        %1227 = vmatpush1.msra.mxu0 0.0
        %1228 = vmatprep.subr.mxu0 0.0
        %1229 = vmatpush1.msra.mxu0 0.0
        %1230 = vmatprep.subr.mxu0 0.0
        %1231 = vmatpush1.msra.mxu0 0.0
        %1232 = vmatprep.subr.mxu0 0.0
        %1233 = vmatpush1.msra.mxu0 0.0
        %1234 = vmatprep.subr.mxu0 0.0
        %1235 = vmatpush1.msra.mxu0 0.0
        %1236 = vmatprep.subr.mxu0 0.0
        %1237 = vmatpush1.msra.mxu0 0.0
        %1238 = vmatprep.subr.mxu0 0.0
        %1239 = vmatpush1.msra.mxu0 0.0
        %1240 = vmatprep.subr.mxu0 0.0
        %1241 = vmatpush1.msra.mxu0 0.0
        %1242 = vmatprep.subr.mxu0 0.0
        %1243 = vmatpush1.msra.mxu0 0.0
        %1244 = vmatprep.subr.mxu0 0.0
        %1245 = vmatpush1.msra.mxu0 0.0
        %1246 = vmatprep.subr.mxu0 0.0
        %1247 = vmatpush1.msra.mxu0 0.0
        %1248 = vmatprep.subr.mxu0 0.0
        %1249 = vmatpush1.msra.mxu0 0.0
        %1250 = vmatprep.subr.mxu0 0.0
        %1251 = vmatpush1.msra.mxu0 0.0
        %1252 = vmatprep.subr.mxu0 0.0
        %1253 = vmatpush1.msra.mxu0 0.0
        %1254 = vmatprep.subr.mxu0 0.0
        %1255 = vmatpush1.msra.mxu0 0.0
        %1256 = vmatprep.subr.mxu0 0.0
        %1257 = vmatpush1.msra.mxu0 0.0
        %1258 = vmatprep.subr.mxu0 0.0
        %1259 = vmatpush1.msra.mxu0 0.0
        %1260 = vmatprep.subr.mxu0 0.0
        %1261 = vmatpush1.msra.mxu0 0.0
        %1262 = vmatprep.subr.mxu0 0.0
        %1263 = vmatpush1.msra.mxu0 0.0
        %1264 = vmatprep.subr.mxu0 0.0
        %1265 = vmatpush1.msra.mxu0 0.0
        %1266 = vmatprep.subr.mxu0 0.0
        %1267 = vmatpush1.msra.mxu0 0.0
        %1268 = vmatprep.subr.mxu0 0.0
        %1269 = vmatpush1.msra.mxu0 0.0
        %1270 = vmatprep.subr.mxu0 0.0
        %1271 = vmatpush1.msra.mxu0 0.0
        %1272 = vmatprep.subr.mxu0 0.0
        %1273 = vmatpush1.msra.mxu0 0.0
        %1274 = vmatprep.mubr.f32.mxu0 0.0
        %1275 = vmatmul.mubr.f32.gmra.mrb[0].mxu0 %v1007
        %v1276 = vpop.f32.mrb[0].mxu0
        %v1277 = vadd.f32 0.0, %v1276
        %v1278 = vpop.f32.mrb[0].mxu0
        %v1279 = vadd.f32 0.0, %v1278
        %1280 = vmatprep.mubr.f32.mxu0 0.0
        %1281 = vmatmul.mubr.f32.gmra.mrb[0].mxu0 %v1010
        %v1282 = vpop.f32.mrb[0].mxu0
        %v1283 = vadd.f32 0.0, %v1282
        %v1284 = vpop.f32.mrb[0].mxu0
        %v1285 = vadd.f32 0.0, %v1284
        %1286 = vdwg.mxu0
        %v1288 = vsel %vm1012, %v1192, 0
        %v1291 = vsel %vm1012, %v1193, 0
        %1293 = vmatprep.subr.mxu0 %v1185
        %1294 = vmatpush1.msra.mxu0 %v1184
        %1295 = vmatprep.subr.mxu0 %v1187
        %1296 = vmatpush1.msra.mxu0 %v1186
        %1297 = vmatprep.subr.mxu0 %v1189
        %1298 = vmatpush1.msra.mxu0 %v1188
        %1299 = vmatprep.subr.mxu0 %v1191
        %1300 = vmatpush1.msra.mxu0 %v1190
        %1301 = vmatprep.subr.mxu0 %v1291
        %1302 = vmatpush1.msra.mxu0 %v1288
        %1303 = vmatprep.subr.mxu0 0.0
        %1304 = vmatpush1.msra.mxu0 0.0
        %1305 = vmatprep.subr.mxu0 0.0
        %1306 = vmatpush1.msra.mxu0 0.0
        %1307 = vmatprep.subr.mxu0 0.0
        %1308 = vmatpush1.msra.mxu0 0.0
        %1309 = vmatprep.subr.mxu0 0.0
        %1310 = vmatpush1.msra.mxu0 0.0
        %1311 = vmatprep.subr.mxu0 0.0
        %1312 = vmatpush1.msra.mxu0 0.0
        %1313 = vmatprep.subr.mxu0 0.0
        %1314 = vmatpush1.msra.mxu0 0.0
        %1315 = vmatprep.subr.mxu0 0.0
        %1316 = vmatpush1.msra.mxu0 0.0
        %1317 = vmatprep.subr.mxu0 0.0
        %1318 = vmatpush1.msra.mxu0 0.0
        %1319 = vmatprep.subr.mxu0 0.0
        %1320 = vmatpush1.msra.mxu0 0.0
        %1321 = vmatprep.subr.mxu0 0.0
        %1322 = vmatpush1.msra.mxu0 0.0
        %1323 = vmatprep.subr.mxu0 0.0
        %1324 = vmatpush1.msra.mxu0 0.0
        %1325 = vmatprep.subr.mxu0 0.0
        %1326 = vmatpush1.msra.mxu0 0.0
        %1327 = vmatprep.subr.mxu0 0.0
        %1328 = vmatpush1.msra.mxu0 0.0
        %1329 = vmatprep.subr.mxu0 0.0
        %1330 = vmatpush1.msra.mxu0 0.0
        %1331 = vmatprep.subr.mxu0 0.0
        %1332 = vmatpush1.msra.mxu0 0.0
        %1333 = vmatprep.subr.mxu0 0.0
        %1334 = vmatpush1.msra.mxu0 0.0
        %1335 = vmatprep.subr.mxu0 0.0
        %1336 = vmatpush1.msra.mxu0 0.0
        %1337 = vmatprep.subr.mxu0 0.0
        %1338 = vmatpush1.msra.mxu0 0.0
        %1339 = vmatprep.subr.mxu0 0.0
        %1340 = vmatpush1.msra.mxu0 0.0
        %1341 = vmatprep.subr.mxu0 0.0
        %1342 = vmatpush1.msra.mxu0 0.0
        %1343 = vmatprep.subr.mxu0 0.0
        %1344 = vmatpush1.msra.mxu0 0.0
        %1345 = vmatprep.subr.mxu0 0.0
        %1346 = vmatpush1.msra.mxu0 0.0
        %1347 = vmatprep.subr.mxu0 0.0
        %1348 = vmatpush1.msra.mxu0 0.0
        %1349 = vmatprep.subr.mxu0 0.0
        %1350 = vmatpush1.msra.mxu0 0.0
        %1351 = vmatprep.subr.mxu0 0.0
        %1352 = vmatpush1.msra.mxu0 0.0
        %1353 = vmatprep.subr.mxu0 0.0
        %1354 = vmatpush1.msra.mxu0 0.0
        %1355 = vmatprep.subr.mxu0 0.0
        %1356 = vmatpush1.msra.mxu0 0.0
        %1357 = vmatprep.mubr.f32.mxu0 0.0
        %1358 = vmatmul.mubr.f32.gmra.mrb[0].mxu0 %v1092
        %v1359 = vpop.f32.mrb[0].mxu0
        %v1360 = vadd.f32 %v1277, %v1359
        %v1361 = vpop.f32.mrb[0].mxu0
        %v1362 = vadd.f32 %v1279, %v1361
        %1363 = vmatprep.mubr.f32.mxu0 0.0
        %1364 = vmatmul.mubr.f32.gmra.mrb[0].mxu0 %v1095
        %v1365 = vpop.f32.mrb[0].mxu0
        %v1366 = vadd.f32 %v1283, %v1365
        %v1367 = vpop.f32.mrb[0].mxu0
        %v1368 = vadd.f32 %v1285, %v1367
        %1369 = vdwg.mxu0
        %v1370 = vld [vmem:[#allocation10] sm:$0x3]
        %v1372 = vlaneseq
        %v1373 = vshrl.u32 %v1372, 7
        %v1374 = vsub.s32 0, %v1373
        %v1375 = vrot.slane %v1370, %v1374
        %v1376 = vlaneseq
        %v1377 = vshrl.u32 %v1376, 7
        %v1378 = vsub.s32 1, %v1377
        %v1379 = vrot.slane %v1370, %v1378
        %v1382 = vadd.f32 %v1360, %v1375
        %v1383 = vadd.f32 %v1362, %v1379
        %v1384 = vadd.f32 %v1366, %v1375
        %v1385 = vadd.f32 %v1368, %v1379
        %vm1386 = vcmask 228352
        %v1387 = vsel %vm1386, %v1182, -inf
        %1388 = vmax.xlane.f32.xlu0 %v1387
        %v1389 = vpop.xlane.xlu0 %1388
        %v1390 = vsel %vm1386, %v1183, -inf
        %1391 = vmax.xlane.f32.xlu0 %v1390
        %v1392 = vpop.xlane.xlu0 %1391
        %v1393 = vsub.f32 %v1182, %v1389
        %v1394 = vsub.f32 %v1183, %v1392
        %v1395 = vmul.f32 %v1393, 1.442695
        %v1396 = vpow.pop %v1395
        %v1397 = vmul.f32 %v1394, 1.442695
        %v1398 = vpow.pop %v1397
        %v1399 = vsel %vm1386, %v1396, 0.0
        %1400 = vadd.xlane.f32.xlu0 %v1399
        %v1401 = vpop.xlane.xlu0 %1400
        %v1402 = vsel %vm1386, %v1398, 0.0
        %1403 = vadd.xlane.f32.xlu0 %v1402
        %v1404 = vpop.xlane.xlu0 %1403
        %v1405 = vrcp.pop %v1401
        %v1406 = vrcp.pop %v1404
        %v1407 = vmul.f32 %v1396, %v1405
        %v1408 = vmul.f32 %v1398, %v1406
        %1409 = vxpose.xlu0.b32.start [1/16] %v1407, 128
        %1410 = vxpose.xlu0.b32.cont [2/16] %v1408, 128
        %1411 = vxpose.xlu0.b32.cont [3/16] 0.0, 128
        %1412 = vxpose.xlu0.b32.cont [4/16] 0.0, 128
        %1413 = vxpose.xlu0.b32.cont [5/16] 0.0, 128
        %1414 = vxpose.xlu0.b32.cont [6/16] 0.0, 128
        %1415 = vxpose.xlu0.b32.cont [7/16] 0.0, 128
        %1416 = vxpose.xlu0.b32.cont [8/16] 0.0, 128
        %1417 = vxpose.xlu0.b32.cont [9/16] 0.0, 128
        %1418 = vxpose.xlu0.b32.cont [10/16] 0.0, 128
        %1419 = vxpose.xlu0.b32.cont [11/16] 0.0, 128
        %1420 = vxpose.xlu0.b32.cont [12/16] 0.0, 128
        %1421 = vxpose.xlu0.b32.cont [13/16] 0.0, 128
        %1422 = vxpose.xlu0.b32.cont [14/16] 0.0, 128
        %1423 = vxpose.xlu0.b32.cont [15/16] 0.0, 128
        %1424 = vxpose.xlu0.b32.end [16/16] 0.0, 128
        %v1425 = vpop.trf.xlu0
        %v1426 = vpop.trf.xlu0
        %v1427 = vpop.trf.xlu0
        %v1428 = vpop.trf.xlu0
        %v1429 = vpop.trf.xlu0
        %v1430 = vpop.trf.xlu0
        %v1431 = vpop.trf.xlu0
        %v1432 = vpop.trf.xlu0
        %v1433 = vpop.trf.xlu0
        %v1434 = vpop.trf.xlu0
        %v1435 = vpop.trf.xlu0
        %v1436 = vpop.trf.xlu0
        %v1437 = vpop.trf.xlu0
        %v1438 = vpop.trf.xlu0
        %v1439 = vpop.trf.xlu0
        %v1440 = vpop.trf.xlu0
        %v1442 = vsel %vm901, %v1425, 0
        %v1445 = vsel %vm901, %v1426, 0
        %v1448 = vsel %vm901, %v1427, 0
        %v1451 = vsel %vm901, %v1428, 0
        %1453 = vmatprep.subr.mxu0 %v1383
        %1454 = vmatpush1.msra.mxu0 %v1382
        %1455 = vmatprep.subr.mxu0 %v1385
        %1456 = vmatpush1.msra.mxu0 %v1384
        %1457 = vmatprep.subr.mxu0 0.0
        %1458 = vmatpush1.msra.mxu0 0.0
        %1459 = vmatprep.subr.mxu0 0.0
        %1460 = vmatpush1.msra.mxu0 0.0
        %1461 = vmatprep.subr.mxu0 0.0
        %1462 = vmatpush1.msra.mxu0 0.0
        %1463 = vmatprep.subr.mxu0 0.0
        %1464 = vmatpush1.msra.mxu0 0.0
        %1465 = vmatprep.subr.mxu0 0.0
        %1466 = vmatpush1.msra.mxu0 0.0
        %1467 = vmatprep.subr.mxu0 0.0
        %1468 = vmatpush1.msra.mxu0 0.0
        %1469 = vmatprep.subr.mxu0 0.0
        %1470 = vmatpush1.msra.mxu0 0.0
        %1471 = vmatprep.subr.mxu0 0.0
        %1472 = vmatpush1.msra.mxu0 0.0
        %1473 = vmatprep.subr.mxu0 0.0
        %1474 = vmatpush1.msra.mxu0 0.0
        %1475 = vmatprep.subr.mxu0 0.0
        %1476 = vmatpush1.msra.mxu0 0.0
        %1477 = vmatprep.subr.mxu0 0.0
        %1478 = vmatpush1.msra.mxu0 0.0
        %1479 = vmatprep.subr.mxu0 0.0
        %1480 = vmatpush1.msra.mxu0 0.0
        %1481 = vmatprep.subr.mxu0 0.0
        %1482 = vmatpush1.msra.mxu0 0.0
        %1483 = vmatprep.subr.mxu0 0.0
        %1484 = vmatpush1.msra.mxu0 0.0
        %1485 = vmatprep.subr.mxu0 0.0
        %1486 = vmatpush1.msra.mxu0 0.0
        %1487 = vmatprep.subr.mxu0 0.0
        %1488 = vmatpush1.msra.mxu0 0.0
        %1489 = vmatprep.subr.mxu0 0.0
        %1490 = vmatpush1.msra.mxu0 0.0
        %1491 = vmatprep.subr.mxu0 0.0
        %1492 = vmatpush1.msra.mxu0 0.0
        %1493 = vmatprep.subr.mxu0 0.0
        %1494 = vmatpush1.msra.mxu0 0.0
        %1495 = vmatprep.subr.mxu0 0.0
        %1496 = vmatpush1.msra.mxu0 0.0
        %1497 = vmatprep.subr.mxu0 0.0
        %1498 = vmatpush1.msra.mxu0 0.0
        %1499 = vmatprep.subr.mxu0 0.0
        %1500 = vmatpush1.msra.mxu0 0.0
        %1501 = vmatprep.subr.mxu0 0.0
        %1502 = vmatpush1.msra.mxu0 0.0
        %1503 = vmatprep.subr.mxu0 0.0
        %1504 = vmatpush1.msra.mxu0 0.0
        %1505 = vmatprep.subr.mxu0 0.0
        %1506 = vmatpush1.msra.mxu0 0.0
        %1507 = vmatprep.subr.mxu0 0.0
        %1508 = vmatpush1.msra.mxu0 0.0
        %1509 = vmatprep.subr.mxu0 0.0
        %1510 = vmatpush1.msra.mxu0 0.0
        %1511 = vmatprep.subr.mxu0 0.0
        %1512 = vmatpush1.msra.mxu0 0.0
        %1513 = vmatprep.subr.mxu0 0.0
        %1514 = vmatpush1.msra.mxu0 0.0
        %1515 = vmatprep.subr.mxu0 0.0
        %1516 = vmatpush1.msra.mxu0 0.0
        %1517 = vmatprep.mubr.f32.mxu0 0.0
        %1518 = vmatmul.mubr.f32.gmra.mrb[0].mxu0 %v1442
        %v1519 = vpop.f32.mrb[0].mxu0
        %v1520 = vadd.f32 0.0, %v1519
        %v1521 = vpop.f32.mrb[0].mxu0
        %v1522 = vadd.f32 0.0, %v1521
        %1523 = vmatprep.mubr.f32.mxu0 0.0
        %1524 = vmatmul.mubr.f32.gmra.mrb[0].mxu0 %v1445
        %v1525 = vpop.f32.mrb[0].mxu0
        %v1526 = vadd.f32 0.0, %v1525
        %v1527 = vpop.f32.mrb[0].mxu0
        %v1528 = vadd.f32 0.0, %v1527
        %1529 = vmatprep.mubr.f32.mxu0 0.0
        %1530 = vmatmul.mubr.f32.gmra.mrb[0].mxu0 %v1448
        %v1531 = vpop.f32.mrb[0].mxu0
        %v1532 = vadd.f32 0.0, %v1531
        %v1533 = vpop.f32.mrb[0].mxu0
        %v1534 = vadd.f32 0.0, %v1533
        %1535 = vmatprep.mubr.f32.mxu0 0.0
        %1536 = vmatmul.mubr.f32.gmra.mrb[0].mxu0 %v1451
        %v1537 = vpop.f32.mrb[0].mxu0
        %v1538 = vadd.f32 0.0, %v1537
        %v1539 = vpop.f32.mrb[0].mxu0
        %v1540 = vadd.f32 0.0, %v1539
        %1541 = vdwg.mxu0
        %1542 = vmatprep.subr.mxu0 0.0
        %1543 = vmatpush1.msra.mxu0 %v899
        %1544 = vmatprep.subr.mxu0 0.0
        %1545 = vmatpush1.msra.mxu0 %v900
        %1546 = vmatprep.subr.mxu0 0.0
        %1547 = vmatpush1.msra.mxu0 0.0
        %1548 = vmatprep.subr.mxu0 0.0
        %1549 = vmatpush1.msra.mxu0 0.0
        %1550 = vmatprep.subr.mxu0 0.0
        %1551 = vmatpush1.msra.mxu0 0.0
        %1552 = vmatprep.subr.mxu0 0.0
        %1553 = vmatpush1.msra.mxu0 0.0
        %1554 = vmatprep.subr.mxu0 0.0
        %1555 = vmatpush1.msra.mxu0 0.0
        %1556 = vmatprep.subr.mxu0 0.0
        %1557 = vmatpush1.msra.mxu0 0.0
        %1558 = vmatprep.subr.mxu0 0.0
        %1559 = vmatpush1.msra.mxu0 0.0
        %1560 = vmatprep.subr.mxu0 0.0
        %1561 = vmatpush1.msra.mxu0 0.0
        %1562 = vmatprep.subr.mxu0 0.0
        %1563 = vmatpush1.msra.mxu0 0.0
        %1564 = vmatprep.subr.mxu0 0.0
        %1565 = vmatpush1.msra.mxu0 0.0
        %1566 = vmatprep.subr.mxu0 0.0
        %1567 = vmatpush1.msra.mxu0 0.0
        %1568 = vmatprep.subr.mxu0 0.0
        %1569 = vmatpush1.msra.mxu0 0.0
        %1570 = vmatprep.subr.mxu0 0.0
        %1571 = vmatpush1.msra.mxu0 0.0
        %1572 = vmatprep.subr.mxu0 0.0
        %1573 = vmatpush1.msra.mxu0 0.0
        %1574 = vmatprep.subr.mxu0 0.0
        %1575 = vmatpush1.msra.mxu0 0.0
        %1576 = vmatprep.subr.mxu0 0.0
        %1577 = vmatpush1.msra.mxu0 0.0
        %1578 = vmatprep.subr.mxu0 0.0
        %1579 = vmatpush1.msra.mxu0 0.0
        %1580 = vmatprep.subr.mxu0 0.0
        %1581 = vmatpush1.msra.mxu0 0.0
        %1582 = vmatprep.subr.mxu0 0.0
        %1583 = vmatpush1.msra.mxu0 0.0
        %1584 = vmatprep.subr.mxu0 0.0
        %1585 = vmatpush1.msra.mxu0 0.0
        %1586 = vmatprep.subr.mxu0 0.0
        %1587 = vmatpush1.msra.mxu0 0.0
        %1588 = vmatprep.subr.mxu0 0.0
        %1589 = vmatpush1.msra.mxu0 0.0
        %1590 = vmatprep.subr.mxu0 0.0
        %1591 = vmatpush1.msra.mxu0 0.0
        %1592 = vmatprep.subr.mxu0 0.0
        %1593 = vmatpush1.msra.mxu0 0.0
        %1594 = vmatprep.subr.mxu0 0.0
        %1595 = vmatpush1.msra.mxu0 0.0
        %1596 = vmatprep.subr.mxu0 0.0
        %1597 = vmatpush1.msra.mxu0 0.0
        %1598 = vmatprep.subr.mxu0 0.0
        %1599 = vmatpush1.msra.mxu0 0.0
        %1600 = vmatprep.subr.mxu0 0.0
        %1601 = vmatpush1.msra.mxu0 0.0
        %1602 = vmatprep.subr.mxu0 0.0
        %1603 = vmatpush1.msra.mxu0 0.0
        %1604 = vmatprep.subr.mxu0 0.0
        %1605 = vmatpush1.msra.mxu0 0.0
        %1606 = vmatprep.mubr.f32.mxu0 0.0
        %1607 = vmatmul.mubr.f32.gmra.mrb[0].mxu0 %v1442
        %v1608 = vpop.f32.mrb[0].mxu0
        %v1609 = vadd.f32 0.0, %v1608
        %v1610 = vpop.f32.mrb[0].mxu0
        %1611 = vmatprep.mubr.f32.mxu0 0.0
        %1612 = vmatmul.mubr.f32.gmra.mrb[0].mxu0 %v1445
        %v1613 = vpop.f32.mrb[0].mxu0
        %v1614 = vadd.f32 0.0, %v1613
        %v1615 = vpop.f32.mrb[0].mxu0
        %1616 = vmatprep.mubr.f32.mxu0 0.0
        %1617 = vmatmul.mubr.f32.gmra.mrb[0].mxu0 %v1448
        %v1618 = vpop.f32.mrb[0].mxu0
        %v1619 = vadd.f32 0.0, %v1618
        %v1620 = vpop.f32.mrb[0].mxu0
        %1621 = vmatprep.mubr.f32.mxu0 0.0
        %1622 = vmatmul.mubr.f32.gmra.mrb[0].mxu0 %v1451
        %v1623 = vpop.f32.mrb[0].mxu0
        %v1624 = vadd.f32 0.0, %v1623
        %v1625 = vpop.f32.mrb[0].mxu0
        %1626 = vdwg.mxu0
        %v1628 = vsel %vm901, %v1609, 0
        %v1631 = vsel %vm901, %v1614, 0
        %v1634 = vsel %vm901, %v1619, 0
        %v1637 = vsel %vm901, %v1624, 0
        %1639 = vmatprep.subr.mxu0 0.0
        %1640 = vmatpush1.msra.mxu0 %v1407
        %1641 = vmatprep.subr.mxu0 0.0
        %1642 = vmatpush1.msra.mxu0 %v1408
        %1643 = vmatprep.subr.mxu0 0.0
        %1644 = vmatpush1.msra.mxu0 0.0
        %1645 = vmatprep.subr.mxu0 0.0
        %1646 = vmatpush1.msra.mxu0 0.0
        %1647 = vmatprep.subr.mxu0 0.0
        %1648 = vmatpush1.msra.mxu0 0.0
        %1649 = vmatprep.subr.mxu0 0.0
        %1650 = vmatpush1.msra.mxu0 0.0
        %1651 = vmatprep.subr.mxu0 0.0
        %1652 = vmatpush1.msra.mxu0 0.0
        %1653 = vmatprep.subr.mxu0 0.0
        %1654 = vmatpush1.msra.mxu0 0.0
        %1655 = vmatprep.subr.mxu0 0.0
        %1656 = vmatpush1.msra.mxu0 0.0
        %1657 = vmatprep.subr.mxu0 0.0
        %1658 = vmatpush1.msra.mxu0 0.0
        %1659 = vmatprep.subr.mxu0 0.0
        %1660 = vmatpush1.msra.mxu0 0.0
        %1661 = vmatprep.subr.mxu0 0.0
        %1662 = vmatpush1.msra.mxu0 0.0
        %1663 = vmatprep.subr.mxu0 0.0
        %1664 = vmatpush1.msra.mxu0 0.0
        %1665 = vmatprep.subr.mxu0 0.0
        %1666 = vmatpush1.msra.mxu0 0.0
        %1667 = vmatprep.subr.mxu0 0.0
        %1668 = vmatpush1.msra.mxu0 0.0
        %1669 = vmatprep.subr.mxu0 0.0
        %1670 = vmatpush1.msra.mxu0 0.0
        %1671 = vmatprep.subr.mxu0 0.0
        %1672 = vmatpush1.msra.mxu0 0.0
        %1673 = vmatprep.subr.mxu0 0.0
        %1674 = vmatpush1.msra.mxu0 0.0
        %1675 = vmatprep.subr.mxu0 0.0
        %1676 = vmatpush1.msra.mxu0 0.0
        %1677 = vmatprep.subr.mxu0 0.0
        %1678 = vmatpush1.msra.mxu0 0.0
        %1679 = vmatprep.subr.mxu0 0.0
        %1680 = vmatpush1.msra.mxu0 0.0
        %1681 = vmatprep.subr.mxu0 0.0
        %1682 = vmatpush1.msra.mxu0 0.0
        %1683 = vmatprep.subr.mxu0 0.0
        %1684 = vmatpush1.msra.mxu0 0.0
        %1685 = vmatprep.subr.mxu0 0.0
        %1686 = vmatpush1.msra.mxu0 0.0
        %1687 = vmatprep.subr.mxu0 0.0
        %1688 = vmatpush1.msra.mxu0 0.0
        %1689 = vmatprep.subr.mxu0 0.0
        %1690 = vmatpush1.msra.mxu0 0.0
        %1691 = vmatprep.subr.mxu0 0.0
        %1692 = vmatpush1.msra.mxu0 0.0
        %1693 = vmatprep.subr.mxu0 0.0
        %1694 = vmatpush1.msra.mxu0 0.0
        %1695 = vmatprep.subr.mxu0 0.0
        %1696 = vmatpush1.msra.mxu0 0.0
        %1697 = vmatprep.subr.mxu0 0.0
        %1698 = vmatpush1.msra.mxu0 0.0
        %1699 = vmatprep.subr.mxu0 0.0
        %1700 = vmatpush1.msra.mxu0 0.0
        %1701 = vmatprep.subr.mxu0 0.0
        %1702 = vmatpush1.msra.mxu0 0.0
        %1703 = vmatprep.mubr.f32.mxu0 0.0
        %1704 = vmatmul.mubr.f32.gmra.mrb[0].mxu0 %v1628
        %v1705 = vpop.f32.mrb[0].mxu0
        %v1706 = vadd.f32 0.0, %v1705
        %v1707 = vpop.f32.mrb[0].mxu0
        %1708 = vmatprep.mubr.f32.mxu0 0.0
        %1709 = vmatmul.mubr.f32.gmra.mrb[0].mxu0 %v1631
        %v1710 = vpop.f32.mrb[0].mxu0
        %v1711 = vadd.f32 0.0, %v1710
        %v1712 = vpop.f32.mrb[0].mxu0
        %1713 = vmatprep.mubr.f32.mxu0 0.0
        %1714 = vmatmul.mubr.f32.gmra.mrb[0].mxu0 %v1634
        %v1715 = vpop.f32.mrb[0].mxu0
        %v1716 = vadd.f32 0.0, %v1715
        %v1717 = vpop.f32.mrb[0].mxu0
        %1718 = vmatprep.mubr.f32.mxu0 0.0
        %1719 = vmatmul.mubr.f32.gmra.mrb[0].mxu0 %v1637
        %v1720 = vpop.f32.mrb[0].mxu0
        %v1721 = vadd.f32 0.0, %v1720
        %v1722 = vpop.f32.mrb[0].mxu0
        %1723 = vdwg.mxu0
        %v1725 = vsel %vm1386, %v1407, 0
        %v1728 = vsel %vm1386, %v1408, 0
        %1730 = vmatprep.subr.mxu0 0.0
        %1731 = vmatpush1.xpose.msra.mxu0 %v1725
        %1732 = vmatprep.subr.mxu0 0.0
        %1733 = vmatpush1.xpose.msra.mxu0 %v1728
        %1734 = vmatprep.subr.mxu0 0.0
        %1735 = vmatpush1.xpose.msra.mxu0 0.0
        %1736 = vmatprep.subr.mxu0 0.0
        %1737 = vmatpush1.xpose.msra.mxu0 0.0
        %1738 = vmatprep.subr.mxu0 0.0
        %1739 = vmatpush1.xpose.msra.mxu0 0.0
        %1740 = vmatprep.subr.mxu0 0.0
        %1741 = vmatpush1.xpose.msra.mxu0 0.0
        %1742 = vmatprep.subr.mxu0 0.0
        %1743 = vmatpush1.xpose.msra.mxu0 0.0
        %1744 = vmatprep.subr.mxu0 0.0
        %1745 = vmatpush1.xpose.msra.mxu0 0.0
        %1746 = vmatprep.subr.mxu0 0.0
        %1747 = vmatpush1.xpose.msra.mxu0 0.0
        %1748 = vmatprep.subr.mxu0 0.0
        %1749 = vmatpush1.xpose.msra.mxu0 0.0
        %1750 = vmatprep.subr.mxu0 0.0
        %1751 = vmatpush1.xpose.msra.mxu0 0.0
        %1752 = vmatprep.subr.mxu0 0.0
        %1753 = vmatpush1.xpose.msra.mxu0 0.0
        %1754 = vmatprep.subr.mxu0 0.0
        %1755 = vmatpush1.xpose.msra.mxu0 0.0
        %1756 = vmatprep.subr.mxu0 0.0
        %1757 = vmatpush1.xpose.msra.mxu0 0.0
        %1758 = vmatprep.subr.mxu0 0.0
        %1759 = vmatpush1.xpose.msra.mxu0 0.0
        %1760 = vmatprep.subr.mxu0 0.0
        %1761 = vmatpush1.xpose.msra.mxu0 0.0
        %1762 = vmatprep.subr.mxu0 0.0
        %1763 = vmatpush1.xpose.msra.mxu0 0.0
        %1764 = vmatprep.subr.mxu0 0.0
        %1765 = vmatpush1.xpose.msra.mxu0 0.0
        %1766 = vmatprep.subr.mxu0 0.0
        %1767 = vmatpush1.xpose.msra.mxu0 0.0
        %1768 = vmatprep.subr.mxu0 0.0
        %1769 = vmatpush1.xpose.msra.mxu0 0.0
        %1770 = vmatprep.subr.mxu0 0.0
        %1771 = vmatpush1.xpose.msra.mxu0 0.0
        %1772 = vmatprep.subr.mxu0 0.0
        %1773 = vmatpush1.xpose.msra.mxu0 0.0
        %1774 = vmatprep.subr.mxu0 0.0
        %1775 = vmatpush1.xpose.msra.mxu0 0.0
        %1776 = vmatprep.subr.mxu0 0.0
        %1777 = vmatpush1.xpose.msra.mxu0 0.0
        %1778 = vmatprep.subr.mxu0 0.0
        %1779 = vmatpush1.xpose.msra.mxu0 0.0
        %1780 = vmatprep.subr.mxu0 0.0
        %1781 = vmatpush1.xpose.msra.mxu0 0.0
        %1782 = vmatprep.subr.mxu0 0.0
        %1783 = vmatpush1.xpose.msra.mxu0 0.0
        %1784 = vmatprep.subr.mxu0 0.0
        %1785 = vmatpush1.xpose.msra.mxu0 0.0
        %1786 = vmatprep.subr.mxu0 0.0
        %1787 = vmatpush1.xpose.msra.mxu0 0.0
        %1788 = vmatprep.subr.mxu0 0.0
        %1789 = vmatpush1.xpose.msra.mxu0 0.0
        %1790 = vmatprep.subr.mxu0 0.0
        %1791 = vmatpush1.xpose.msra.mxu0 0.0
        %1792 = vmatprep.subr.mxu0 0.0
        %1793 = vmatpush1.xpose.msra.mxu0 0.0
        %1794 = vmatprep.mubr.f32.mxu0 0.0
        %1795 = vmatmul.mubr.f32.gmra.mrb[0].mxu0 %v1725
        %v1796 = vpop.f32.mrb[0].mxu0
        %v1797 = vadd.f32 0.0, %v1796
        %v1798 = vpop.f32.mrb[0].mxu0
        %1799 = vmatprep.mubr.f32.mxu0 0.0
        %1800 = vmatmul.mubr.f32.gmra.mrb[0].mxu0 %v1728
        %v1801 = vpop.f32.mrb[0].mxu0
        %v1802 = vadd.f32 0.0, %v1801
        %v1803 = vpop.f32.mrb[0].mxu0
        %1804 = vdwg.mxu0
        %v1805 = vsub.f32 %v899, %v1797
        %v1806 = vsub.f32 %v900, %v1802
        %v1807 = vmul.f32 %v1805, %v1805
        %v1808 = vmul.f32 %v1806, %v1806
        %v1809 = vsel %vm901, %v1807, 0.0
        %v1810 = vsel %vm901, %v1808, 0.0
        %v1811 = vadd.f32 %v1809, %v1810
        %1812 = vadd.xlane.f32.xlu0 %v1811
        %v1813 = vpop.xlane.xlu0 %1812
        %v1814 = vrot.slane %v1813, 4
        %v1815 = vadd.f32 %v1813, %v1814
        %v1816 = vrot.slane %v1815, 2
        %v1817 = vadd.f32 %v1815, %v1816
        %v1818 = vrot.slane %v1817, 1
        %v1819 = vadd.f32 %v1817, %v1818
        %s1820 = vtos %v1819
        %v1821 = vsub.f32 0.0, %v1407
        %v1822 = vsub.f32 0.0, %v1408
        %v1823 = vadd.f32 %v1407, 1e-15
        %v1824 = vadd.f32 %v1408, 1e-15
        %v1825 = vlog2.pop %v1823
        %v1826 = vmul.f32 %v1825, 0.6931472
        %v1827 = vlog2.pop %v1824
        %v1828 = vmul.f32 %v1827, 0.6931472
        %v1829 = vmul.f32 %v1821, %v1826
        %v1830 = vmul.f32 %v1822, %v1828
        %v1831 = vsel %vm1386, %v1829, 0.0
        %v1832 = vsel %vm1386, %v1830, 0.0
        %v1833 = vadd.f32 %v1831, %v1832
        %1834 = vadd.xlane.f32.xlu0 %v1833
        %v1835 = vpop.xlane.xlu0 %1834
        %v1836 = vrot.slane %v1835, 4
        %v1837 = vadd.f32 %v1835, %v1836
        %v1838 = vrot.slane %v1837, 2
        %v1839 = vadd.f32 %v1837, %v1838
        %v1840 = vrot.slane %v1839, 1
        %v1841 = vadd.f32 %v1839, %v1840
        %s1842 = vtos %v1841
        %v1844 = vsel %vm1386, %v1706, 0
        %v1847 = vsel %vm1386, %v1711, 0
        %v1850 = vsel %vm1386, %v1716, 0
        %v1853 = vsel %vm1386, %v1721, 0
        %vm1855 = vcmask 1043456
        %v1857 = vsel %vm1855, %v1538, 0
        %v1860 = vsel %vm1855, %v1540, 0
        %1862 = vmatprep.subr.mxu0 %v1522
        %1863 = vmatpush1.msra.mxu0 %v1520
        %1864 = vmatprep.subr.mxu0 %v1528
        %1865 = vmatpush1.msra.mxu0 %v1526
        %1866 = vmatprep.subr.mxu0 %v1534
        %1867 = vmatpush1.msra.mxu0 %v1532
        %1868 = vmatprep.subr.mxu0 %v1860
        %1869 = vmatpush1.msra.mxu0 %v1857
        %1870 = vmatprep.subr.mxu0 0.0
        %1871 = vmatpush1.msra.mxu0 0.0
        %1872 = vmatprep.subr.mxu0 0.0
        %1873 = vmatpush1.msra.mxu0 0.0
        %1874 = vmatprep.subr.mxu0 0.0
        %1875 = vmatpush1.msra.mxu0 0.0
        %1876 = vmatprep.subr.mxu0 0.0
        %1877 = vmatpush1.msra.mxu0 0.0
        %1878 = vmatprep.subr.mxu0 0.0
        %1879 = vmatpush1.msra.mxu0 0.0
        %1880 = vmatprep.subr.mxu0 0.0
        %1881 = vmatpush1.msra.mxu0 0.0
        %1882 = vmatprep.subr.mxu0 0.0
        %1883 = vmatpush1.msra.mxu0 0.0
        %1884 = vmatprep.subr.mxu0 0.0
        %1885 = vmatpush1.msra.mxu0 0.0
        %1886 = vmatprep.subr.mxu0 0.0
        %1887 = vmatpush1.msra.mxu0 0.0
        %1888 = vmatprep.subr.mxu0 0.0
        %1889 = vmatpush1.msra.mxu0 0.0
        %1890 = vmatprep.subr.mxu0 0.0
        %1891 = vmatpush1.msra.mxu0 0.0
        %1892 = vmatprep.subr.mxu0 0.0
        %1893 = vmatpush1.msra.mxu0 0.0
        %1894 = vmatprep.subr.mxu0 0.0
        %1895 = vmatpush1.msra.mxu0 0.0
        %1896 = vmatprep.subr.mxu0 0.0
        %1897 = vmatpush1.msra.mxu0 0.0
        %1898 = vmatprep.subr.mxu0 0.0
        %1899 = vmatpush1.msra.mxu0 0.0
        %1900 = vmatprep.subr.mxu0 0.0
        %1901 = vmatpush1.msra.mxu0 0.0
        %1902 = vmatprep.subr.mxu0 0.0
        %1903 = vmatpush1.msra.mxu0 0.0
        %1904 = vmatprep.subr.mxu0 0.0
        %1905 = vmatpush1.msra.mxu0 0.0
        %1906 = vmatprep.subr.mxu0 0.0
        %1907 = vmatpush1.msra.mxu0 0.0
        %1908 = vmatprep.subr.mxu0 0.0
        %1909 = vmatpush1.msra.mxu0 0.0
        %1910 = vmatprep.subr.mxu0 0.0
        %1911 = vmatpush1.msra.mxu0 0.0
        %1912 = vmatprep.subr.mxu0 0.0
        %1913 = vmatpush1.msra.mxu0 0.0
        %1914 = vmatprep.subr.mxu0 0.0
        %1915 = vmatpush1.msra.mxu0 0.0
        %1916 = vmatprep.subr.mxu0 0.0
        %1917 = vmatpush1.msra.mxu0 0.0
        %1918 = vmatprep.subr.mxu0 0.0
        %1919 = vmatpush1.msra.mxu0 0.0
        %1920 = vmatprep.subr.mxu0 0.0
        %1921 = vmatpush1.msra.mxu0 0.0
        %1922 = vmatprep.subr.mxu0 0.0
        %1923 = vmatpush1.msra.mxu0 0.0
        %1924 = vmatprep.subr.mxu0 0.0
        %1925 = vmatpush1.msra.mxu0 0.0
        %1926 = vmatprep.mubr.f32.mxu0 0.0
        %1927 = vmatmul.mubr.f32.gmra.mrb[0].mxu0 %v1844
        %v1928 = vpop.f32.mrb[0].mxu0
        %v1929 = vadd.f32 0.0, %v1928
        %v1930 = vpop.f32.mrb[0].mxu0
        %v1931 = vadd.f32 0.0, %v1930
        %1932 = vmatprep.mubr.f32.mxu0 0.0
        %1933 = vmatmul.mubr.f32.gmra.mrb[0].mxu0 %v1847
        %v1934 = vpop.f32.mrb[0].mxu0
        %v1935 = vadd.f32 0.0, %v1934
        %v1936 = vpop.f32.mrb[0].mxu0
        %v1937 = vadd.f32 0.0, %v1936
        %1938 = vmatprep.mubr.f32.mxu0 0.0
        %1939 = vmatmul.mubr.f32.gmra.mrb[0].mxu0 %v1850
        %v1940 = vpop.f32.mrb[0].mxu0
        %v1941 = vadd.f32 0.0, %v1940
        %v1942 = vpop.f32.mrb[0].mxu0
        %v1943 = vadd.f32 0.0, %v1942
        %1944 = vmatprep.mubr.f32.mxu0 0.0
        %1945 = vmatmul.mubr.f32.gmra.mrb[0].mxu0 %v1853
        %v1946 = vpop.f32.mrb[0].mxu0
        %v1947 = vadd.f32 0.0, %v1946
        %v1948 = vpop.f32.mrb[0].mxu0
        %v1949 = vadd.f32 0.0, %v1948
        %1950 = vdwg.mxu0
        %v1951 = vsel %vm1386, %v1706, 0.0
        %1952 = vadd.xlane.f32.xlu0 %v1951
        %v1953 = vpop.xlane.xlu0 %1952
        %v1954 = vsel %vm1386, %v1711, 0.0
        %1955 = vadd.xlane.f32.xlu0 %v1954
        %v1956 = vpop.xlane.xlu0 %1955
        %v1957 = vsel %vm1386, %v1716, 0.0
        %1958 = vadd.xlane.f32.xlu0 %v1957
        %v1959 = vpop.xlane.xlu0 %1958
        %vm1960 = vcmask 224256
        %v1961 = vsel %vm1960, %v1721, 0.0
        %1962 = vadd.xlane.f32.xlu0 %v1961
        %v1963 = vpop.xlane.xlu0 %1962
        %v1964 = vmax.f32 %v1953, 1.0
        %v1965 = vmax.f32 %v1956, 1.0
        %v1966 = vmax.f32 %v1959, 1.0
        %v1967 = vmax.f32 %v1963, 1.0
        %v1968 = vrcp.pop %v1964
        %v1969 = vrcp.pop %v1965
        %v1970 = vrcp.pop %v1966
        %v1971 = vrcp.pop %v1967
        %v1972 = vmul.f32 %v1929, %v1968
        %v1973 = vmul.f32 %v1931, %v1968
        %v1974 = vmul.f32 %v1935, %v1969
        %v1975 = vmul.f32 %v1937, %v1969
        %v1976 = vmul.f32 %v1941, %v1970
        %v1977 = vmul.f32 %v1943, %v1970
        %v1978 = vmul.f32 %v1947, %v1971
        %v1979 = vmul.f32 %v1949, %v1971
        %v1980 = vld [vmem:[%s8] sm:$0xff]
        %v1981 = vld [vmem:[%s8 + $0x8] sm:$0xff]
        %v1982 = vld [vmem:[%s8 + $0x10] sm:$0xff]
        %v1983 = vld [vmem:[%s8 + $0x18] sm:$0xff]
        %v1984 = vld [vmem:[%s8 + $0x20] sm:$0xff]
        %v1985 = vld [vmem:[%s8 + $0x28] sm:$0xff]
        %v1986 = vld [vmem:[%s8 + $0x30] sm:$0xff]
        %v1987 = vld [vmem:[%s8 + $0x38] sm:$0xff]
        %v1988 = vld [vmem:[%s8 + $0x40] sm:$0xff]
        %v1989 = vld [vmem:[%s8 + $0x48] sm:$0xff]
        %v1990 = vld [vmem:[%s8 + $0x50] sm:$0xff]
        %v1991 = vld [vmem:[%s8 + $0x58] sm:$0xff]
        %v1992 = vld [vmem:[%s8 + $0x60] sm:$0xff]
        %v1993 = vld [vmem:[%s8 + $0x68] sm:$0xff]
        %v1994 = vld [vmem:[%s8 + $0x70] sm:$0xff]
        %v1995 = vld [vmem:[%s8 + $0x78] sm:$0xff]
        %v1996 = vld [vmem:[%s8 + $0x80] sm:$0xff]
        %v1997 = vld [vmem:[%s8 + $0x88] sm:$0xff]
        %v1998 = vld [vmem:[%s8 + $0x90] sm:$0xff]
        %v1999 = vld [vmem:[%s8 + $0x98] sm:$0xff]
        %v2000 = vld [vmem:[%s8 + $0xa0] sm:$0xff]
        %v2001 = vld [vmem:[%s8 + $0xa8] sm:$0xff]
        %v2002 = vld [vmem:[%s8 + $0xb0] sm:$0xff]
        %v2003 = vld [vmem:[%s8 + $0xb8] sm:$0xff]
        %v2004 = vld [vmem:[%s9] sm:$0xff]
        %v2005 = vld [vmem:[%s9 + $0x8] sm:$0xff]
        %v2006 = vld [vmem:[%s9 + $0x10] sm:$0xff]
        %v2007 = vld [vmem:[%s9 + $0x18] sm:$0xff]
        %v2008 = vld [vmem:[%s9 + $0x20] sm:$0xff]
        %v2009 = vld [vmem:[%s9 + $0x28] sm:$0xff]
        %v2010 = vld [vmem:[%s9 + $0x30] sm:$0xff]
        %v2011 = vld [vmem:[%s9 + $0x38] sm:$0xff]
        %v2012 = vld [vmem:[%s9 + $0x40] sm:$0xff]
        %v2013 = vld [vmem:[%s9 + $0x48] sm:$0xff]
        %v2014 = vld [vmem:[%s9 + $0x50] sm:$0xff]
        %v2015 = vld [vmem:[%s9 + $0x58] sm:$0xff]
        %v2016 = vld [vmem:[%s9 + $0x60] sm:$0xff]
        %v2017 = vld [vmem:[%s9 + $0x68] sm:$0xff]
        %v2018 = vld [vmem:[%s9 + $0x70] sm:$0xff]
        %v2019 = vld [vmem:[%s9 + $0x78] sm:$0xff]
        %v2020 = vld [vmem:[%s9 + $0x80] sm:$0xff]
        %v2021 = vld [vmem:[%s9 + $0x88] sm:$0xff]
        %v2022 = vld [vmem:[%s9 + $0x90] sm:$0xff]
        %v2023 = vld [vmem:[%s9 + $0x98] sm:$0xff]
        %v2024 = vld [vmem:[%s9 + $0xa0] sm:$0xff]
        %v2025 = vld [vmem:[%s9 + $0xa8] sm:$0xff]
        %v2026 = vld [vmem:[%s9 + $0xb0] sm:$0xff]
        %v2027 = vld [vmem:[%s9 + $0xb8] sm:$0xff]
        %vm2028 = vcmask 523264
        %v2030 = vsel %vm2028, %v1522, 0
        %v2033 = vsel %vm2028, %v1528, 0
        %v2036 = vsel %vm2028, %v1534, 0
        %v2038 = vsel %vm2028, %v1540, 0
        %2040 = vmatprep.subr.mxu0 0.0
        %2041 = vmatpush1.msra.mxu0 %v2004
        %2042 = vmatprep.subr.mxu0 0.0
        %2043 = vmatpush1.msra.mxu0 %v2005
        %2044 = vmatprep.subr.mxu0 0.0
        %2045 = vmatpush1.msra.mxu0 %v2006
        %2046 = vmatprep.subr.mxu0 0.0
        %2047 = vmatpush1.msra.mxu0 %v2007
        %2048 = vmatprep.subr.mxu0 0.0
        %2049 = vmatpush1.msra.mxu0 %v2008
        %2050 = vmatprep.subr.mxu0 0.0
        %2051 = vmatpush1.msra.mxu0 %v2009
        %2052 = vmatprep.subr.mxu0 0.0
        %2053 = vmatpush1.msra.mxu0 %v2010
        %2054 = vmatprep.subr.mxu0 0.0
        %2055 = vmatpush1.msra.mxu0 %v2011
        %2056 = vmatprep.subr.mxu0 0.0
        %2057 = vmatpush1.msra.mxu0 %v2012
        %2058 = vmatprep.subr.mxu0 0.0
        %2059 = vmatpush1.msra.mxu0 %v2013
        %2060 = vmatprep.subr.mxu0 0.0
        %2061 = vmatpush1.msra.mxu0 %v2014
        %2062 = vmatprep.subr.mxu0 0.0
        %2063 = vmatpush1.msra.mxu0 %v2015
        %2064 = vmatprep.subr.mxu0 0.0
        %2065 = vmatpush1.msra.mxu0 %v2016
        %2066 = vmatprep.subr.mxu0 0.0
        %2067 = vmatpush1.msra.mxu0 %v2017
        %2068 = vmatprep.subr.mxu0 0.0
        %2069 = vmatpush1.msra.mxu0 %v2018
        %2070 = vmatprep.subr.mxu0 0.0
        %2071 = vmatpush1.msra.mxu0 %v2019
        %2072 = vmatprep.subr.mxu0 0.0
        %2073 = vmatpush1.msra.mxu0 %v2020
        %2074 = vmatprep.subr.mxu0 0.0
        %2075 = vmatpush1.msra.mxu0 %v2021
        %2076 = vmatprep.subr.mxu0 0.0
        %2077 = vmatpush1.msra.mxu0 %v2022
        %2078 = vmatprep.subr.mxu0 0.0
        %2079 = vmatpush1.msra.mxu0 %v2023
        %2080 = vmatprep.subr.mxu0 0.0
        %2081 = vmatpush1.msra.mxu0 %v2024
        %2082 = vmatprep.subr.mxu0 0.0
        %2083 = vmatpush1.msra.mxu0 %v2025
        %2084 = vmatprep.subr.mxu0 0.0
        %2085 = vmatpush1.msra.mxu0 %v2026
        %2086 = vmatprep.subr.mxu0 0.0
        %2087 = vmatpush1.msra.mxu0 %v2027
        %2088 = vmatprep.subr.mxu0 0.0
        %2089 = vmatpush1.msra.mxu0 0.0
        %2090 = vmatprep.subr.mxu0 0.0
        %2091 = vmatpush1.msra.mxu0 0.0
        %2092 = vmatprep.subr.mxu0 0.0
        %2093 = vmatpush1.msra.mxu0 0.0
        %2094 = vmatprep.subr.mxu0 0.0
        %2095 = vmatpush1.msra.mxu0 0.0
        %2096 = vmatprep.subr.mxu0 0.0
        %2097 = vmatpush1.msra.mxu0 0.0
        %2098 = vmatprep.subr.mxu0 0.0
        %2099 = vmatpush1.msra.mxu0 0.0
        %2100 = vmatprep.subr.mxu0 0.0
        %2101 = vmatpush1.msra.mxu0 0.0
        %2102 = vmatprep.subr.mxu0 0.0
        %2103 = vmatpush1.msra.mxu0 0.0
        %2104 = vmatprep.mubr.f32.mxu0 %v2030
        %2105 = vmatmul.mubr.f32.gmra.mrb[0].mxu0 %v1520
        %v2106 = vpop.f32.mrb[0].mxu0
        %v2107 = vadd.f32 0.0, %v2106
        %v2108 = vpop.f32.mrb[0].mxu0
        %2109 = vmatprep.mubr.f32.mxu0 %v2033
        %2110 = vmatmul.mubr.f32.gmra.mrb[0].mxu0 %v1526
        %v2111 = vpop.f32.mrb[0].mxu0
        %v2112 = vadd.f32 0.0, %v2111
        %v2113 = vpop.f32.mrb[0].mxu0
        %2114 = vmatprep.mubr.f32.mxu0 %v2036
        %2115 = vmatmul.mubr.f32.gmra.mrb[0].mxu0 %v1532
        %v2116 = vpop.f32.mrb[0].mxu0
        %v2117 = vadd.f32 0.0, %v2116
        %v2118 = vpop.f32.mrb[0].mxu0
        %2119 = vmatprep.mubr.f32.mxu0 %v2038
        %2120 = vmatmul.mubr.f32.gmra.mrb[0].mxu0 %v1538
        %v2121 = vpop.f32.mrb[0].mxu0
        %v2122 = vadd.f32 0.0, %v2121
        %v2123 = vpop.f32.mrb[0].mxu0
        %2124 = vdwg.mxu0
        %v2126 = vsel %vm2028, %v1973, 0
        %v2129 = vsel %vm2028, %v1975, 0
        %v2132 = vsel %vm2028, %v1977, 0
        %v2135 = vsel %vm2028, %v1979, 0
        %2137 = vmatprep.subr.mxu0 0.0
        %2138 = vmatpush1.msra.mxu0 %v1980
        %2139 = vmatprep.subr.mxu0 0.0
        %2140 = vmatpush1.msra.mxu0 %v1981
        %2141 = vmatprep.subr.mxu0 0.0
        %2142 = vmatpush1.msra.mxu0 %v1982
        %2143 = vmatprep.subr.mxu0 0.0
        %2144 = vmatpush1.msra.mxu0 %v1983
        %2145 = vmatprep.subr.mxu0 0.0
        %2146 = vmatpush1.msra.mxu0 %v1984
        %2147 = vmatprep.subr.mxu0 0.0
        %2148 = vmatpush1.msra.mxu0 %v1985
        %2149 = vmatprep.subr.mxu0 0.0
        %2150 = vmatpush1.msra.mxu0 %v1986
        %2151 = vmatprep.subr.mxu0 0.0
        %2152 = vmatpush1.msra.mxu0 %v1987
        %2153 = vmatprep.subr.mxu0 0.0
        %2154 = vmatpush1.msra.mxu0 %v1988
        %2155 = vmatprep.subr.mxu0 0.0
        %2156 = vmatpush1.msra.mxu0 %v1989
        %2157 = vmatprep.subr.mxu0 0.0
        %2158 = vmatpush1.msra.mxu0 %v1990
        %2159 = vmatprep.subr.mxu0 0.0
        %2160 = vmatpush1.msra.mxu0 %v1991
        %2161 = vmatprep.subr.mxu0 0.0
        %2162 = vmatpush1.msra.mxu0 %v1992
        %2163 = vmatprep.subr.mxu0 0.0
        %2164 = vmatpush1.msra.mxu0 %v1993
        %2165 = vmatprep.subr.mxu0 0.0
        %2166 = vmatpush1.msra.mxu0 %v1994
        %2167 = vmatprep.subr.mxu0 0.0
        %2168 = vmatpush1.msra.mxu0 %v1995
        %2169 = vmatprep.subr.mxu0 0.0
        %2170 = vmatpush1.msra.mxu0 %v1996
        %2171 = vmatprep.subr.mxu0 0.0
        %2172 = vmatpush1.msra.mxu0 %v1997
        %2173 = vmatprep.subr.mxu0 0.0
        %2174 = vmatpush1.msra.mxu0 %v1998
        %2175 = vmatprep.subr.mxu0 0.0
        %2176 = vmatpush1.msra.mxu0 %v1999
        %2177 = vmatprep.subr.mxu0 0.0
        %2178 = vmatpush1.msra.mxu0 %v2000
        %2179 = vmatprep.subr.mxu0 0.0
        %2180 = vmatpush1.msra.mxu0 %v2001
        %2181 = vmatprep.subr.mxu0 0.0
        %2182 = vmatpush1.msra.mxu0 %v2002
        %2183 = vmatprep.subr.mxu0 0.0
        %2184 = vmatpush1.msra.mxu0 %v2003
        %2185 = vmatprep.subr.mxu0 0.0
        %2186 = vmatpush1.msra.mxu0 0.0
        %2187 = vmatprep.subr.mxu0 0.0
        %2188 = vmatpush1.msra.mxu0 0.0
        %2189 = vmatprep.subr.mxu0 0.0
        %2190 = vmatpush1.msra.mxu0 0.0
        %2191 = vmatprep.subr.mxu0 0.0
        %2192 = vmatpush1.msra.mxu0 0.0
        %2193 = vmatprep.subr.mxu0 0.0
        %2194 = vmatpush1.msra.mxu0 0.0
        %2195 = vmatprep.subr.mxu0 0.0
        %2196 = vmatpush1.msra.mxu0 0.0
        %2197 = vmatprep.subr.mxu0 0.0
        %2198 = vmatpush1.msra.mxu0 0.0
        %2199 = vmatprep.subr.mxu0 0.0
        %2200 = vmatpush1.msra.mxu0 0.0
        %2201 = vmatprep.mubr.f32.mxu0 %v2126
        %2202 = vmatmul.mubr.f32.gmra.mrb[0].mxu0 %v1972
        %v2203 = vpop.f32.mrb[0].mxu0
        %v2204 = vadd.f32 %v2107, %v2203
        %v2205 = vpop.f32.mrb[0].mxu0
        %2206 = vmatprep.mubr.f32.mxu0 %v2129
        %2207 = vmatmul.mubr.f32.gmra.mrb[0].mxu0 %v1974
        %v2208 = vpop.f32.mrb[0].mxu0
        %v2209 = vadd.f32 %v2112, %v2208
        %v2210 = vpop.f32.mrb[0].mxu0
        %2211 = vmatprep.mubr.f32.mxu0 %v2132
        %2212 = vmatmul.mubr.f32.gmra.mrb[0].mxu0 %v1976
        %v2213 = vpop.f32.mrb[0].mxu0
        %v2214 = vadd.f32 %v2117, %v2213
        %v2215 = vpop.f32.mrb[0].mxu0
        %2216 = vmatprep.mubr.f32.mxu0 %v2135
        %2217 = vmatmul.mubr.f32.gmra.mrb[0].mxu0 %v1978
        %v2218 = vpop.f32.mrb[0].mxu0
        %v2219 = vadd.f32 %v2122, %v2218
        %v2220 = vpop.f32.mrb[0].mxu0
        %2221 = vdwg.mxu0
        %v2222 = vld [vmem:[#allocation11] sm:$0x1]
        %v2224 = vlaneseq
        %v2225 = vshrl.u32 %v2224, 7
        %v2226 = vsub.s32 0, %v2225
        %v2227 = vrot.slane %v2222, %v2226
        %v2229 = vadd.f32 %v2204, %v2227
        %v2230 = vadd.f32 %v2209, %v2227
        %v2231 = vadd.f32 %v2214, %v2227
        %v2232 = vadd.f32 %v2219, %v2227
        %v2233 = vld [vmem:[%s11] sm:$0xff]
        %v2234 = vld [vmem:[%s11 + $0x8] sm:$0xff]
        %v2235 = vld [vmem:[%s11 + $0x10] sm:$0xff]
        %v2236 = vld [vmem:[%s11 + $0x18] sm:$0xff]
        %v2237 = vld [vmem:[%s11 + $0x20] sm:$0xff]
        %v2238 = vld [vmem:[%s11 + $0x28] sm:$0xff]
        %v2239 = vld [vmem:[%s11 + $0x30] sm:$0xff]
        %v2240 = vld [vmem:[%s11 + $0x38] sm:$0xff]
        %v2241 = vld [vmem:[%s11 + $0x40] sm:$0xff]
        %v2242 = vld [vmem:[%s11 + $0x48] sm:$0xff]
        %v2243 = vld [vmem:[%s11 + $0x50] sm:$0xff]
        %v2244 = vld [vmem:[%s11 + $0x58] sm:$0xff]
        %v2245 = vld [vmem:[%s11 + $0x60] sm:$0xff]
        %v2246 = vld [vmem:[%s11 + $0x68] sm:$0xff]
        %v2247 = vld [vmem:[%s11 + $0x70] sm:$0xff]
        %v2248 = vld [vmem:[%s11 + $0x78] sm:$0xff]
        %v2249 = vld [vmem:[%s11 + $0x80] sm:$0xff]
        %v2250 = vld [vmem:[%s11 + $0x88] sm:$0xff]
        %v2251 = vld [vmem:[%s11 + $0x90] sm:$0xff]
        %v2252 = vld [vmem:[%s11 + $0x98] sm:$0xff]
        %v2253 = vld [vmem:[%s11 + $0xa0] sm:$0xff]
        %v2254 = vld [vmem:[%s11 + $0xa8] sm:$0xff]
        %v2255 = vld [vmem:[%s11 + $0xb0] sm:$0xff]
        %v2256 = vld [vmem:[%s11 + $0xb8] sm:$0xff]
        %v2257 = vld [vmem:[%s11 + $0xc0] sm:$0xff]
        %v2258 = vld [vmem:[%s11 + $0xc8] sm:$0xff]
        %v2259 = vld [vmem:[%s11 + $0xd0] sm:$0xff]
        %v2260 = vld [vmem:[%s11 + $0xd8] sm:$0xff]
        %v2261 = vld [vmem:[%s11 + $0xe0] sm:$0xff]
        %v2262 = vld [vmem:[%s11 + $0xe8] sm:$0xff]
        %v2263 = vld [vmem:[%s11 + $0xf0] sm:$0xff]
        %v2264 = vld [vmem:[%s11 + $0xf8] sm:$0xff]
        %v2265 = vld [vmem:[%s11 + $0x100] sm:$0xff]
        %v2266 = vld [vmem:[%s11 + $0x108] sm:$0xff]
        %v2267 = vld [vmem:[%s11 + $0x110] sm:$0xff]
        %v2268 = vld [vmem:[%s11 + $0x118] sm:$0xff]
        %v2269 = vld [vmem:[%s11 + $0x120] sm:$0xff]
        %v2270 = vld [vmem:[%s11 + $0x128] sm:$0xff]
        %v2271 = vld [vmem:[%s11 + $0x130] sm:$0xff]
        %v2272 = vld [vmem:[%s11 + $0x138] sm:$0xff]
        %v2273 = vld [vmem:[%s11 + $0x140] sm:$0xff]
        %v2274 = vld [vmem:[%s11 + $0x148] sm:$0xff]
        %v2275 = vld [vmem:[%s11 + $0x150] sm:$0xff]
        %v2276 = vld [vmem:[%s11 + $0x158] sm:$0xff]
        %v2277 = vld [vmem:[%s11 + $0x160] sm:$0xff]
        %v2278 = vld [vmem:[%s11 + $0x168] sm:$0xff]
        %v2279 = vld [vmem:[%s11 + $0x170] sm:$0xff]
        %v2280 = vld [vmem:[%s11 + $0x178] sm:$0xff]
        %v2281 = vld [vmem:[%s12] sm:$0xff]
        %v2282 = vld [vmem:[%s12 + $0x8] sm:$0xff]
        %v2283 = vld [vmem:[%s12 + $0x10] sm:$0xff]
        %v2284 = vld [vmem:[%s12 + $0x18] sm:$0xff]
        %v2285 = vld [vmem:[%s12 + $0x20] sm:$0xff]
        %v2286 = vld [vmem:[%s12 + $0x28] sm:$0xff]
        %v2287 = vld [vmem:[%s12 + $0x30] sm:$0xff]
        %v2288 = vld [vmem:[%s12 + $0x38] sm:$0xff]
        %v2289 = vld [vmem:[%s12 + $0x40] sm:$0xff]
        %v2290 = vld [vmem:[%s12 + $0x48] sm:$0xff]
        %v2291 = vld [vmem:[%s12 + $0x50] sm:$0xff]
        %v2292 = vld [vmem:[%s12 + $0x58] sm:$0xff]
        %v2293 = vld [vmem:[%s12 + $0x60] sm:$0xff]
        %v2294 = vld [vmem:[%s12 + $0x68] sm:$0xff]
        %v2295 = vld [vmem:[%s12 + $0x70] sm:$0xff]
        %v2296 = vld [vmem:[%s12 + $0x78] sm:$0xff]
        %v2297 = vld [vmem:[%s12 + $0x80] sm:$0xff]
        %v2298 = vld [vmem:[%s12 + $0x88] sm:$0xff]
        %v2299 = vld [vmem:[%s12 + $0x90] sm:$0xff]
        %v2300 = vld [vmem:[%s12 + $0x98] sm:$0xff]
        %v2301 = vld [vmem:[%s12 + $0xa0] sm:$0xff]
        %v2302 = vld [vmem:[%s12 + $0xa8] sm:$0xff]
        %v2303 = vld [vmem:[%s12 + $0xb0] sm:$0xff]
        %v2304 = vld [vmem:[%s12 + $0xb8] sm:$0xff]
        %v2305 = vld [vmem:[%s12 + $0xc0] sm:$0xff]
        %v2306 = vld [vmem:[%s12 + $0xc8] sm:$0xff]
        %v2307 = vld [vmem:[%s12 + $0xd0] sm:$0xff]
        %v2308 = vld [vmem:[%s12 + $0xd8] sm:$0xff]
        %v2309 = vld [vmem:[%s12 + $0xe0] sm:$0xff]
        %v2310 = vld [vmem:[%s12 + $0xe8] sm:$0xff]
        %v2311 = vld [vmem:[%s12 + $0xf0] sm:$0xff]
        %v2312 = vld [vmem:[%s12 + $0xf8] sm:$0xff]
        %v2313 = vld [vmem:[%s12 + $0x100] sm:$0xff]
        %v2314 = vld [vmem:[%s12 + $0x108] sm:$0xff]
        %v2315 = vld [vmem:[%s12 + $0x110] sm:$0xff]
        %v2316 = vld [vmem:[%s12 + $0x118] sm:$0xff]
        %v2317 = vld [vmem:[%s12 + $0x120] sm:$0xff]
        %v2318 = vld [vmem:[%s12 + $0x128] sm:$0xff]
        %v2319 = vld [vmem:[%s12 + $0x130] sm:$0xff]
        %v2320 = vld [vmem:[%s12 + $0x138] sm:$0xff]
        %v2321 = vld [vmem:[%s12 + $0x140] sm:$0xff]
        %v2322 = vld [vmem:[%s12 + $0x148] sm:$0xff]
        %v2323 = vld [vmem:[%s12 + $0x150] sm:$0xff]
        %v2324 = vld [vmem:[%s12 + $0x158] sm:$0xff]
        %v2325 = vld [vmem:[%s12 + $0x160] sm:$0xff]
        %v2326 = vld [vmem:[%s12 + $0x168] sm:$0xff]
        %v2327 = vld [vmem:[%s12 + $0x170] sm:$0xff]
        %v2328 = vld [vmem:[%s12 + $0x178] sm:$0xff]
        %2329 = vmatprep.subr.mxu0 %v2282
        %2330 = vmatpush1.msra.mxu0 %v2281
        %2331 = vmatprep.subr.mxu0 %v2284
        %2332 = vmatpush1.msra.mxu0 %v2283
        %2333 = vmatprep.subr.mxu0 %v2286
        %2334 = vmatpush1.msra.mxu0 %v2285
        %2335 = vmatprep.subr.mxu0 %v2288
        %2336 = vmatpush1.msra.mxu0 %v2287
        %2337 = vmatprep.subr.mxu0 %v2290
        %2338 = vmatpush1.msra.mxu0 %v2289
        %2339 = vmatprep.subr.mxu0 %v2292
        %2340 = vmatpush1.msra.mxu0 %v2291
        %2341 = vmatprep.subr.mxu0 %v2294
        %2342 = vmatpush1.msra.mxu0 %v2293
        %2343 = vmatprep.subr.mxu0 %v2296
        %2344 = vmatpush1.msra.mxu0 %v2295
        %2345 = vmatprep.subr.mxu0 %v2298
        %2346 = vmatpush1.msra.mxu0 %v2297
        %2347 = vmatprep.subr.mxu0 %v2300
        %2348 = vmatpush1.msra.mxu0 %v2299
        %2349 = vmatprep.subr.mxu0 %v2302
        %2350 = vmatpush1.msra.mxu0 %v2301
        %2351 = vmatprep.subr.mxu0 %v2304
        %2352 = vmatpush1.msra.mxu0 %v2303
        %2353 = vmatprep.subr.mxu0 %v2306
        %2354 = vmatpush1.msra.mxu0 %v2305
        %2355 = vmatprep.subr.mxu0 %v2308
        %2356 = vmatpush1.msra.mxu0 %v2307
        %2357 = vmatprep.subr.mxu0 %v2310
        %2358 = vmatpush1.msra.mxu0 %v2309
        %2359 = vmatprep.subr.mxu0 %v2312
        %2360 = vmatpush1.msra.mxu0 %v2311
        %2361 = vmatprep.subr.mxu0 %v2314
        %2362 = vmatpush1.msra.mxu0 %v2313
        %2363 = vmatprep.subr.mxu0 %v2316
        %2364 = vmatpush1.msra.mxu0 %v2315
        %2365 = vmatprep.subr.mxu0 %v2318
        %2366 = vmatpush1.msra.mxu0 %v2317
        %2367 = vmatprep.subr.mxu0 %v2320
        %2368 = vmatpush1.msra.mxu0 %v2319
        %2369 = vmatprep.subr.mxu0 %v2322
        %2370 = vmatpush1.msra.mxu0 %v2321
        %2371 = vmatprep.subr.mxu0 %v2324
        %2372 = vmatpush1.msra.mxu0 %v2323
        %2373 = vmatprep.subr.mxu0 %v2326
        %2374 = vmatpush1.msra.mxu0 %v2325
        %2375 = vmatprep.subr.mxu0 %v2328
        %2376 = vmatpush1.msra.mxu0 %v2327
        %2377 = vmatprep.subr.mxu0 0.0
        %2378 = vmatpush1.msra.mxu0 0.0
        %2379 = vmatprep.subr.mxu0 0.0
        %2380 = vmatpush1.msra.mxu0 0.0
        %2381 = vmatprep.subr.mxu0 0.0
        %2382 = vmatpush1.msra.mxu0 0.0
        %2383 = vmatprep.subr.mxu0 0.0
        %2384 = vmatpush1.msra.mxu0 0.0
        %2385 = vmatprep.subr.mxu0 0.0
        %2386 = vmatpush1.msra.mxu0 0.0
        %2387 = vmatprep.subr.mxu0 0.0
        %2388 = vmatpush1.msra.mxu0 0.0
        %2389 = vmatprep.subr.mxu0 0.0
        %2390 = vmatpush1.msra.mxu0 0.0
        %2391 = vmatprep.subr.mxu0 0.0
        %2392 = vmatpush1.msra.mxu0 0.0
        %2393 = vmatprep.mubr.f32.mxu0 %v2030
        %2394 = vmatmul.mubr.f32.gmra.mrb[0].mxu0 %v1520
        %v2395 = vpop.f32.mrb[0].mxu0
        %v2396 = vadd.f32 0.0, %v2395
        %v2397 = vpop.f32.mrb[0].mxu0
        %v2398 = vadd.f32 0.0, %v2397
        %2399 = vmatprep.mubr.f32.mxu0 %v2033
        %2400 = vmatmul.mubr.f32.gmra.mrb[0].mxu0 %v1526
        %v2401 = vpop.f32.mrb[0].mxu0
        %v2402 = vadd.f32 0.0, %v2401
        %v2403 = vpop.f32.mrb[0].mxu0
        %v2404 = vadd.f32 0.0, %v2403
        %2405 = vmatprep.mubr.f32.mxu0 %v2036
        %2406 = vmatmul.mubr.f32.gmra.mrb[0].mxu0 %v1532
        %v2407 = vpop.f32.mrb[0].mxu0
        %v2408 = vadd.f32 0.0, %v2407
        %v2409 = vpop.f32.mrb[0].mxu0
        %v2410 = vadd.f32 0.0, %v2409
        %2411 = vmatprep.mubr.f32.mxu0 %v2038
        %2412 = vmatmul.mubr.f32.gmra.mrb[0].mxu0 %v1538
        %v2413 = vpop.f32.mrb[0].mxu0
        %v2414 = vadd.f32 0.0, %v2413
        %v2415 = vpop.f32.mrb[0].mxu0
        %v2416 = vadd.f32 0.0, %v2415
        %2417 = vdwg.mxu0
        %2418 = vmatprep.subr.mxu0 %v2234
        %2419 = vmatpush1.msra.mxu0 %v2233
        %2420 = vmatprep.subr.mxu0 %v2236
        %2421 = vmatpush1.msra.mxu0 %v2235
        %2422 = vmatprep.subr.mxu0 %v2238
        %2423 = vmatpush1.msra.mxu0 %v2237
        %2424 = vmatprep.subr.mxu0 %v2240
        %2425 = vmatpush1.msra.mxu0 %v2239
        %2426 = vmatprep.subr.mxu0 %v2242
        %2427 = vmatpush1.msra.mxu0 %v2241
        %2428 = vmatprep.subr.mxu0 %v2244
        %2429 = vmatpush1.msra.mxu0 %v2243
        %2430 = vmatprep.subr.mxu0 %v2246
        %2431 = vmatpush1.msra.mxu0 %v2245
        %2432 = vmatprep.subr.mxu0 %v2248
        %2433 = vmatpush1.msra.mxu0 %v2247
        %2434 = vmatprep.subr.mxu0 %v2250
        %2435 = vmatpush1.msra.mxu0 %v2249
        %2436 = vmatprep.subr.mxu0 %v2252
        %2437 = vmatpush1.msra.mxu0 %v2251
        %2438 = vmatprep.subr.mxu0 %v2254
        %2439 = vmatpush1.msra.mxu0 %v2253
        %2440 = vmatprep.subr.mxu0 %v2256
        %2441 = vmatpush1.msra.mxu0 %v2255
        %2442 = vmatprep.subr.mxu0 %v2258
        %2443 = vmatpush1.msra.mxu0 %v2257
        %2444 = vmatprep.subr.mxu0 %v2260
        %2445 = vmatpush1.msra.mxu0 %v2259
        %2446 = vmatprep.subr.mxu0 %v2262
        %2447 = vmatpush1.msra.mxu0 %v2261
        %2448 = vmatprep.subr.mxu0 %v2264
        %2449 = vmatpush1.msra.mxu0 %v2263
        %2450 = vmatprep.subr.mxu0 %v2266
        %2451 = vmatpush1.msra.mxu0 %v2265
        %2452 = vmatprep.subr.mxu0 %v2268
        %2453 = vmatpush1.msra.mxu0 %v2267
        %2454 = vmatprep.subr.mxu0 %v2270
        %2455 = vmatpush1.msra.mxu0 %v2269
        %2456 = vmatprep.subr.mxu0 %v2272
        %2457 = vmatpush1.msra.mxu0 %v2271
        %2458 = vmatprep.subr.mxu0 %v2274
        %2459 = vmatpush1.msra.mxu0 %v2273
        %2460 = vmatprep.subr.mxu0 %v2276
        %2461 = vmatpush1.msra.mxu0 %v2275
        %2462 = vmatprep.subr.mxu0 %v2278
        %2463 = vmatpush1.msra.mxu0 %v2277
        %2464 = vmatprep.subr.mxu0 %v2280
        %2465 = vmatpush1.msra.mxu0 %v2279
        %2466 = vmatprep.subr.mxu0 0.0
        %2467 = vmatpush1.msra.mxu0 0.0
        %2468 = vmatprep.subr.mxu0 0.0
        %2469 = vmatpush1.msra.mxu0 0.0
        %2470 = vmatprep.subr.mxu0 0.0
        %2471 = vmatpush1.msra.mxu0 0.0
        %2472 = vmatprep.subr.mxu0 0.0
        %2473 = vmatpush1.msra.mxu0 0.0
        %2474 = vmatprep.subr.mxu0 0.0
        %2475 = vmatpush1.msra.mxu0 0.0
        %2476 = vmatprep.subr.mxu0 0.0
        %2477 = vmatpush1.msra.mxu0 0.0
        %2478 = vmatprep.subr.mxu0 0.0
        %2479 = vmatpush1.msra.mxu0 0.0
        %2480 = vmatprep.subr.mxu0 0.0
        %2481 = vmatpush1.msra.mxu0 0.0
        %2482 = vmatprep.mubr.f32.mxu0 %v2126
        %2483 = vmatmul.mubr.f32.gmra.mrb[0].mxu0 %v1972
        %v2484 = vpop.f32.mrb[0].mxu0
        %v2485 = vadd.f32 %v2396, %v2484
        %v2486 = vpop.f32.mrb[0].mxu0
        %v2487 = vadd.f32 %v2398, %v2486
        %2488 = vmatprep.mubr.f32.mxu0 %v2129
        %2489 = vmatmul.mubr.f32.gmra.mrb[0].mxu0 %v1974
        %v2490 = vpop.f32.mrb[0].mxu0
        %v2491 = vadd.f32 %v2402, %v2490
        %v2492 = vpop.f32.mrb[0].mxu0
        %v2493 = vadd.f32 %v2404, %v2492
        %2494 = vmatprep.mubr.f32.mxu0 %v2132
        %2495 = vmatmul.mubr.f32.gmra.mrb[0].mxu0 %v1976
        %v2496 = vpop.f32.mrb[0].mxu0
        %v2497 = vadd.f32 %v2408, %v2496
        %v2498 = vpop.f32.mrb[0].mxu0
        %v2499 = vadd.f32 %v2410, %v2498
        %2500 = vmatprep.mubr.f32.mxu0 %v2135
        %2501 = vmatmul.mubr.f32.gmra.mrb[0].mxu0 %v1978
        %v2502 = vpop.f32.mrb[0].mxu0
        %v2503 = vadd.f32 %v2414, %v2502
        %v2504 = vpop.f32.mrb[0].mxu0
        %v2505 = vadd.f32 %v2416, %v2504
        %2506 = vdwg.mxu0
        %v2507 = vld [vmem:[#allocation13] sm:$0x3]
        %v2509 = vlaneseq
        %v2510 = vshrl.u32 %v2509, 7
        %v2511 = vsub.s32 0, %v2510
        %v2512 = vrot.slane %v2507, %v2511
        %v2513 = vlaneseq
        %v2514 = vshrl.u32 %v2513, 7
        %v2515 = vsub.s32 1, %v2514
        %v2516 = vrot.slane %v2507, %v2515
        %v2519 = vadd.f32 %v2485, %v2512
        %v2520 = vadd.f32 %v2487, %v2516
        %v2521 = vadd.f32 %v2491, %v2512
        %v2522 = vadd.f32 %v2493, %v2516
        %v2523 = vadd.f32 %v2497, %v2512
        %v2524 = vadd.f32 %v2499, %v2516
        %v2525 = vadd.f32 %v2503, %v2512
        %v2526 = vadd.f32 %v2505, %v2516
        %vm2527 = vcmask 56320
        %v2528 = vsel %vm2527, %v2229, -inf
        %2529 = vmax.xlane.f32.xlu0 %v2528
        %v2530 = vpop.xlane.xlu0 %2529
        %v2531 = vsel %vm2527, %v2230, -inf
        %2532 = vmax.xlane.f32.xlu0 %v2531
        %v2533 = vpop.xlane.xlu0 %2532
        %v2534 = vsel %vm2527, %v2231, -inf
        %2535 = vmax.xlane.f32.xlu0 %v2534
        %v2536 = vpop.xlane.xlu0 %2535
        %vm2537 = vcmask 52224
        %v2538 = vsel %vm2537, %v2232, -inf
        %2539 = vmax.xlane.f32.xlu0 %v2538
        %v2540 = vpop.xlane.xlu0 %2539
        %v2541 = vsub.f32 %v2229, %v2530
        %v2542 = vsub.f32 %v2230, %v2533
        %v2543 = vsub.f32 %v2231, %v2536
        %v2544 = vsub.f32 %v2232, %v2540
        %v2545 = vmul.f32 %v2541, 1.442695
        %v2546 = vpow.pop %v2545
        %v2547 = vmul.f32 %v2542, 1.442695
        %v2548 = vpow.pop %v2547
        %v2549 = vmul.f32 %v2543, 1.442695
        %v2550 = vpow.pop %v2549
        %v2551 = vmul.f32 %v2544, 1.442695
        %v2552 = vpow.pop %v2551
        %v2553 = vsel %vm2527, %v2546, 0.0
        %2554 = vadd.xlane.f32.xlu0 %v2553
        %v2555 = vpop.xlane.xlu0 %2554
        %v2556 = vsel %vm2527, %v2548, 0.0
        %2557 = vadd.xlane.f32.xlu0 %v2556
        %v2558 = vpop.xlane.xlu0 %2557
        %v2559 = vsel %vm2527, %v2550, 0.0
        %2560 = vadd.xlane.f32.xlu0 %v2559
        %v2561 = vpop.xlane.xlu0 %2560
        %v2562 = vsel %vm2537, %v2552, 0.0
        %2563 = vadd.xlane.f32.xlu0 %v2562
        %v2564 = vpop.xlane.xlu0 %2563
        %v2565 = vrcp.pop %v2555
        %v2566 = vrcp.pop %v2558
        %v2567 = vrcp.pop %v2561
        %v2568 = vrcp.pop %v2564
        %v2569 = vmul.f32 %v2546, %v2565
        %v2570 = vmul.f32 %v2548, %v2566
        %v2571 = vmul.f32 %v2550, %v2567
        %v2572 = vmul.f32 %v2552, %v2568
        %2573 = vxpose.xlu0.b32.start [1/16] %v2569, 128
        %2574 = vxpose.xlu0.b32.cont [2/16] %v2570, 128
        %2575 = vxpose.xlu0.b32.cont [3/16] %v2571, 128
        %2576 = vxpose.xlu0.b32.cont [4/16] %v2572, 128
        %2577 = vxpose.xlu0.b32.cont [5/16] 0.0, 128
        %2578 = vxpose.xlu0.b32.cont [6/16] 0.0, 128
        %2579 = vxpose.xlu0.b32.cont [7/16] 0.0, 128
        %2580 = vxpose.xlu0.b32.cont [8/16] 0.0, 128
        %2581 = vxpose.xlu0.b32.cont [9/16] 0.0, 128
        %2582 = vxpose.xlu0.b32.cont [10/16] 0.0, 128
        %2583 = vxpose.xlu0.b32.cont [11/16] 0.0, 128
        %2584 = vxpose.xlu0.b32.cont [12/16] 0.0, 128
        %2585 = vxpose.xlu0.b32.cont [13/16] 0.0, 128
        %2586 = vxpose.xlu0.b32.cont [14/16] 0.0, 128
        %2587 = vxpose.xlu0.b32.cont [15/16] 0.0, 128
        %2588 = vxpose.xlu0.b32.end [16/16] 0.0, 128
        %v2589 = vpop.trf.xlu0
        %v2590 = vpop.trf.xlu0
        %v2591 = vpop.trf.xlu0
        %v2592 = vpop.trf.xlu0
        %v2593 = vpop.trf.xlu0
        %v2594 = vpop.trf.xlu0
        %v2595 = vpop.trf.xlu0
        %v2596 = vpop.trf.xlu0
        %v2597 = vpop.trf.xlu0
        %v2598 = vpop.trf.xlu0
        %v2599 = vpop.trf.xlu0
        %v2600 = vpop.trf.xlu0
        %v2601 = vpop.trf.xlu0
        %v2602 = vpop.trf.xlu0
        %v2603 = vpop.trf.xlu0
        %v2604 = vpop.trf.xlu0
        %v2606 = vsel %vm1386, %v2589, 0
        %v2609 = vsel %vm1855, %v2525, 0
        %v2612 = vsel %vm1855, %v2526, 0
        %2614 = vmatprep.subr.mxu0 %v2520
        %2615 = vmatpush1.msra.mxu0 %v2519
        %2616 = vmatprep.subr.mxu0 %v2522
        %2617 = vmatpush1.msra.mxu0 %v2521
        %2618 = vmatprep.subr.mxu0 %v2524
        %2619 = vmatpush1.msra.mxu0 %v2523
        %2620 = vmatprep.subr.mxu0 %v2612
        %2621 = vmatpush1.msra.mxu0 %v2609
        %2622 = vmatprep.subr.mxu0 0.0
        %2623 = vmatpush1.msra.mxu0 0.0
        %2624 = vmatprep.subr.mxu0 0.0
        %2625 = vmatpush1.msra.mxu0 0.0
        %2626 = vmatprep.subr.mxu0 0.0
        %2627 = vmatpush1.msra.mxu0 0.0
        %2628 = vmatprep.subr.mxu0 0.0
        %2629 = vmatpush1.msra.mxu0 0.0
        %2630 = vmatprep.subr.mxu0 0.0
        %2631 = vmatpush1.msra.mxu0 0.0
        %2632 = vmatprep.subr.mxu0 0.0
        %2633 = vmatpush1.msra.mxu0 0.0
        %2634 = vmatprep.subr.mxu0 0.0
        %2635 = vmatpush1.msra.mxu0 0.0
        %2636 = vmatprep.subr.mxu0 0.0
        %2637 = vmatpush1.msra.mxu0 0.0
        %2638 = vmatprep.subr.mxu0 0.0
        %2639 = vmatpush1.msra.mxu0 0.0
        %2640 = vmatprep.subr.mxu0 0.0
        %2641 = vmatpush1.msra.mxu0 0.0
        %2642 = vmatprep.subr.mxu0 0.0
        %2643 = vmatpush1.msra.mxu0 0.0
        %2644 = vmatprep.subr.mxu0 0.0
        %2645 = vmatpush1.msra.mxu0 0.0
        %2646 = vmatprep.subr.mxu0 0.0
        %2647 = vmatpush1.msra.mxu0 0.0
        %2648 = vmatprep.subr.mxu0 0.0
        %2649 = vmatpush1.msra.mxu0 0.0
        %2650 = vmatprep.subr.mxu0 0.0
        %2651 = vmatpush1.msra.mxu0 0.0
        %2652 = vmatprep.subr.mxu0 0.0
        %2653 = vmatpush1.msra.mxu0 0.0
        %2654 = vmatprep.subr.mxu0 0.0
        %2655 = vmatpush1.msra.mxu0 0.0
        %2656 = vmatprep.subr.mxu0 0.0
        %2657 = vmatpush1.msra.mxu0 0.0
        %2658 = vmatprep.subr.mxu0 0.0
        %2659 = vmatpush1.msra.mxu0 0.0
        %2660 = vmatprep.subr.mxu0 0.0
        %2661 = vmatpush1.msra.mxu0 0.0
        %2662 = vmatprep.subr.mxu0 0.0
        %2663 = vmatpush1.msra.mxu0 0.0
        %2664 = vmatprep.subr.mxu0 0.0
        %2665 = vmatpush1.msra.mxu0 0.0
        %2666 = vmatprep.subr.mxu0 0.0
        %2667 = vmatpush1.msra.mxu0 0.0
        %2668 = vmatprep.subr.mxu0 0.0
        %2669 = vmatpush1.msra.mxu0 0.0
        %2670 = vmatprep.subr.mxu0 0.0
        %2671 = vmatpush1.msra.mxu0 0.0
        %2672 = vmatprep.subr.mxu0 0.0
        %2673 = vmatpush1.msra.mxu0 0.0
        %2674 = vmatprep.subr.mxu0 0.0
        %2675 = vmatpush1.msra.mxu0 0.0
        %2676 = vmatprep.subr.mxu0 0.0
        %2677 = vmatpush1.msra.mxu0 0.0
        %2678 = vmatprep.mubr.f32.mxu0 0.0
        %2679 = vmatmul.mubr.f32.gmra.mrb[0].mxu0 %v2606
        %v2680 = vpop.f32.mrb[0].mxu0
        %v2681 = vadd.f32 0.0, %v2680
        %v2682 = vpop.f32.mrb[0].mxu0
        %v2683 = vadd.f32 0.0, %v2682
        %2684 = vdwg.mxu0
        %v2685 = vsel %vm1855, %v1721, 0
        %2687 = vmatprep.subr.mxu0 0.0
        %2688 = vmatpush1.msra.mxu0 %v1706
        %2689 = vmatprep.subr.mxu0 0.0
        %2690 = vmatpush1.msra.mxu0 %v1711
        %2691 = vmatprep.subr.mxu0 0.0
        %2692 = vmatpush1.msra.mxu0 %v1716
        %2693 = vmatprep.subr.mxu0 0.0
        %2694 = vmatpush1.msra.mxu0 %v2685
        %2695 = vmatprep.subr.mxu0 0.0
        %2696 = vmatpush1.msra.mxu0 0.0
        %2697 = vmatprep.subr.mxu0 0.0
        %2698 = vmatpush1.msra.mxu0 0.0
        %2699 = vmatprep.subr.mxu0 0.0
        %2700 = vmatpush1.msra.mxu0 0.0
        %2701 = vmatprep.subr.mxu0 0.0
        %2702 = vmatpush1.msra.mxu0 0.0
        %2703 = vmatprep.subr.mxu0 0.0
        %2704 = vmatpush1.msra.mxu0 0.0
        %2705 = vmatprep.subr.mxu0 0.0
        %2706 = vmatpush1.msra.mxu0 0.0
        %2707 = vmatprep.subr.mxu0 0.0
        %2708 = vmatpush1.msra.mxu0 0.0
        %2709 = vmatprep.subr.mxu0 0.0
        %2710 = vmatpush1.msra.mxu0 0.0
        %2711 = vmatprep.subr.mxu0 0.0
        %2712 = vmatpush1.msra.mxu0 0.0
        %2713 = vmatprep.subr.mxu0 0.0
        %2714 = vmatpush1.msra.mxu0 0.0
        %2715 = vmatprep.subr.mxu0 0.0
        %2716 = vmatpush1.msra.mxu0 0.0
        %2717 = vmatprep.subr.mxu0 0.0
        %2718 = vmatpush1.msra.mxu0 0.0
        %2719 = vmatprep.subr.mxu0 0.0
        %2720 = vmatpush1.msra.mxu0 0.0
        %2721 = vmatprep.subr.mxu0 0.0
        %2722 = vmatpush1.msra.mxu0 0.0
        %2723 = vmatprep.subr.mxu0 0.0
        %2724 = vmatpush1.msra.mxu0 0.0
        %2725 = vmatprep.subr.mxu0 0.0
        %2726 = vmatpush1.msra.mxu0 0.0
        %2727 = vmatprep.subr.mxu0 0.0
        %2728 = vmatpush1.msra.mxu0 0.0
        %2729 = vmatprep.subr.mxu0 0.0
        %2730 = vmatpush1.msra.mxu0 0.0
        %2731 = vmatprep.subr.mxu0 0.0
        %2732 = vmatpush1.msra.mxu0 0.0
        %2733 = vmatprep.subr.mxu0 0.0
        %2734 = vmatpush1.msra.mxu0 0.0
        %2735 = vmatprep.subr.mxu0 0.0
        %2736 = vmatpush1.msra.mxu0 0.0
        %2737 = vmatprep.subr.mxu0 0.0
        %2738 = vmatpush1.msra.mxu0 0.0
        %2739 = vmatprep.subr.mxu0 0.0
        %2740 = vmatpush1.msra.mxu0 0.0
        %2741 = vmatprep.subr.mxu0 0.0
        %2742 = vmatpush1.msra.mxu0 0.0
        %2743 = vmatprep.subr.mxu0 0.0
        %2744 = vmatpush1.msra.mxu0 0.0
        %2745 = vmatprep.subr.mxu0 0.0
        %2746 = vmatpush1.msra.mxu0 0.0
        %2747 = vmatprep.subr.mxu0 0.0
        %2748 = vmatpush1.msra.mxu0 0.0
        %2749 = vmatprep.subr.mxu0 0.0
        %2750 = vmatpush1.msra.mxu0 0.0
        %2751 = vmatprep.mubr.f32.mxu0 0.0
        %2752 = vmatmul.mubr.f32.gmra.mrb[0].mxu0 %v2606
        %v2753 = vpop.f32.mrb[0].mxu0
        %v2754 = vadd.f32 0.0, %v2753
        %v2755 = vpop.f32.mrb[0].mxu0
        %2756 = vdwg.mxu0
        %v2758 = vsel %vm1386, %v2754, 0
        %v2761 = vsel %vm1855, %v2572, 0
        %2763 = vmatprep.subr.mxu0 0.0
        %2764 = vmatpush1.msra.mxu0 %v2569
        %2765 = vmatprep.subr.mxu0 0.0
        %2766 = vmatpush1.msra.mxu0 %v2570
        %2767 = vmatprep.subr.mxu0 0.0
        %2768 = vmatpush1.msra.mxu0 %v2571
        %2769 = vmatprep.subr.mxu0 0.0
        %2770 = vmatpush1.msra.mxu0 %v2761
        %2771 = vmatprep.subr.mxu0 0.0
        %2772 = vmatpush1.msra.mxu0 0.0
        %2773 = vmatprep.subr.mxu0 0.0
        %2774 = vmatpush1.msra.mxu0 0.0
        %2775 = vmatprep.subr.mxu0 0.0
        %2776 = vmatpush1.msra.mxu0 0.0
        %2777 = vmatprep.subr.mxu0 0.0
        %2778 = vmatpush1.msra.mxu0 0.0
        %2779 = vmatprep.subr.mxu0 0.0
        %2780 = vmatpush1.msra.mxu0 0.0
        %2781 = vmatprep.subr.mxu0 0.0
        %2782 = vmatpush1.msra.mxu0 0.0
        %2783 = vmatprep.subr.mxu0 0.0
        %2784 = vmatpush1.msra.mxu0 0.0
        %2785 = vmatprep.subr.mxu0 0.0
        %2786 = vmatpush1.msra.mxu0 0.0
        %2787 = vmatprep.subr.mxu0 0.0
        %2788 = vmatpush1.msra.mxu0 0.0
        %2789 = vmatprep.subr.mxu0 0.0
        %2790 = vmatpush1.msra.mxu0 0.0
        %2791 = vmatprep.subr.mxu0 0.0
        %2792 = vmatpush1.msra.mxu0 0.0
        %2793 = vmatprep.subr.mxu0 0.0
        %2794 = vmatpush1.msra.mxu0 0.0
        %2795 = vmatprep.subr.mxu0 0.0
        %2796 = vmatpush1.msra.mxu0 0.0
        %2797 = vmatprep.subr.mxu0 0.0
        %2798 = vmatpush1.msra.mxu0 0.0
        %2799 = vmatprep.subr.mxu0 0.0
        %2800 = vmatpush1.msra.mxu0 0.0
        %2801 = vmatprep.subr.mxu0 0.0
        %2802 = vmatpush1.msra.mxu0 0.0
        %2803 = vmatprep.subr.mxu0 0.0
        %2804 = vmatpush1.msra.mxu0 0.0
        %2805 = vmatprep.subr.mxu0 0.0
        %2806 = vmatpush1.msra.mxu0 0.0
        %2807 = vmatprep.subr.mxu0 0.0
        %2808 = vmatpush1.msra.mxu0 0.0
        %2809 = vmatprep.subr.mxu0 0.0
        %2810 = vmatpush1.msra.mxu0 0.0
        %2811 = vmatprep.subr.mxu0 0.0
        %2812 = vmatpush1.msra.mxu0 0.0
        %2813 = vmatprep.subr.mxu0 0.0
        %2814 = vmatpush1.msra.mxu0 0.0
        %2815 = vmatprep.subr.mxu0 0.0
        %2816 = vmatpush1.msra.mxu0 0.0
        %2817 = vmatprep.subr.mxu0 0.0
        %2818 = vmatpush1.msra.mxu0 0.0
        %2819 = vmatprep.subr.mxu0 0.0
        %2820 = vmatpush1.msra.mxu0 0.0
        %2821 = vmatprep.subr.mxu0 0.0
        %2822 = vmatpush1.msra.mxu0 0.0
        %2823 = vmatprep.subr.mxu0 0.0
        %2824 = vmatpush1.msra.mxu0 0.0
        %2825 = vmatprep.subr.mxu0 0.0
        %2826 = vmatpush1.msra.mxu0 0.0
        %2827 = vmatprep.mubr.f32.mxu0 0.0
        %2828 = vmatmul.mubr.f32.gmra.mrb[0].mxu0 %v2758
        %v2829 = vpop.f32.mrb[0].mxu0
        %v2830 = vadd.f32 0.0, %v2829
        %v2831 = vpop.f32.mrb[0].mxu0
        %2832 = vdwg.mxu0
        %v2834 = vsel %vm2527, %v2569, 0
        %v2837 = vsel %vm2527, %v2570, 0
        %v2840 = vsel %vm2527, %v2571, 0
        %v2842 = vsel %vm2527, %v2572, 0
        %2844 = vmatprep.subr.mxu0 0.0
        %2845 = vmatpush1.xpose.msra.mxu0 %v2834
        %2846 = vmatprep.subr.mxu0 0.0
        %2847 = vmatpush1.xpose.msra.mxu0 %v2837
        %2848 = vmatprep.subr.mxu0 0.0
        %2849 = vmatpush1.xpose.msra.mxu0 %v2840
        %2850 = vmatprep.subr.mxu0 0.0
        %2851 = vmatpush1.xpose.msra.mxu0 %v2842
        %2852 = vmatprep.subr.mxu0 0.0
        %2853 = vmatpush1.xpose.msra.mxu0 0.0
        %2854 = vmatprep.subr.mxu0 0.0
        %2855 = vmatpush1.xpose.msra.mxu0 0.0
        %2856 = vmatprep.subr.mxu0 0.0
        %2857 = vmatpush1.xpose.msra.mxu0 0.0
        %2858 = vmatprep.subr.mxu0 0.0
        %2859 = vmatpush1.xpose.msra.mxu0 0.0
        %2860 = vmatprep.subr.mxu0 0.0
        %2861 = vmatpush1.xpose.msra.mxu0 0.0
        %2862 = vmatprep.subr.mxu0 0.0
        %2863 = vmatpush1.xpose.msra.mxu0 0.0
        %2864 = vmatprep.subr.mxu0 0.0
        %2865 = vmatpush1.xpose.msra.mxu0 0.0
        %2866 = vmatprep.subr.mxu0 0.0
        %2867 = vmatpush1.xpose.msra.mxu0 0.0
        %2868 = vmatprep.subr.mxu0 0.0
        %2869 = vmatpush1.xpose.msra.mxu0 0.0
        %2870 = vmatprep.subr.mxu0 0.0
        %2871 = vmatpush1.xpose.msra.mxu0 0.0
        %2872 = vmatprep.subr.mxu0 0.0
        %2873 = vmatpush1.xpose.msra.mxu0 0.0
        %2874 = vmatprep.subr.mxu0 0.0
        %2875 = vmatpush1.xpose.msra.mxu0 0.0
        %2876 = vmatprep.subr.mxu0 0.0
        %2877 = vmatpush1.xpose.msra.mxu0 0.0
        %2878 = vmatprep.subr.mxu0 0.0
        %2879 = vmatpush1.xpose.msra.mxu0 0.0
        %2880 = vmatprep.subr.mxu0 0.0
        %2881 = vmatpush1.xpose.msra.mxu0 0.0
        %2882 = vmatprep.subr.mxu0 0.0
        %2883 = vmatpush1.xpose.msra.mxu0 0.0
        %2884 = vmatprep.subr.mxu0 0.0
        %2885 = vmatpush1.xpose.msra.mxu0 0.0
        %2886 = vmatprep.subr.mxu0 0.0
        %2887 = vmatpush1.xpose.msra.mxu0 0.0
        %2888 = vmatprep.subr.mxu0 0.0
        %2889 = vmatpush1.xpose.msra.mxu0 0.0
        %2890 = vmatprep.subr.mxu0 0.0
        %2891 = vmatpush1.xpose.msra.mxu0 0.0
        %2892 = vmatprep.subr.mxu0 0.0
        %2893 = vmatpush1.xpose.msra.mxu0 0.0
        %2894 = vmatprep.subr.mxu0 0.0
        %2895 = vmatpush1.xpose.msra.mxu0 0.0
        %2896 = vmatprep.subr.mxu0 0.0
        %2897 = vmatpush1.xpose.msra.mxu0 0.0
        %2898 = vmatprep.subr.mxu0 0.0
        %2899 = vmatpush1.xpose.msra.mxu0 0.0
        %2900 = vmatprep.subr.mxu0 0.0
        %2901 = vmatpush1.xpose.msra.mxu0 0.0
        %2902 = vmatprep.subr.mxu0 0.0
        %2903 = vmatpush1.xpose.msra.mxu0 0.0
        %2904 = vmatprep.subr.mxu0 0.0
        %2905 = vmatpush1.xpose.msra.mxu0 0.0
        %2906 = vmatprep.subr.mxu0 0.0
        %2907 = vmatpush1.xpose.msra.mxu0 0.0
        %2908 = vmatprep.mubr.f32.mxu0 0.0
        %2909 = vmatmul.mubr.f32.gmra.mrb[0].mxu0 %v2834
        %v2910 = vpop.f32.mrb[0].mxu0
        %v2911 = vadd.f32 0.0, %v2910
        %v2912 = vpop.f32.mrb[0].mxu0
        %2913 = vmatprep.mubr.f32.mxu0 0.0
        %2914 = vmatmul.mubr.f32.gmra.mrb[0].mxu0 %v2837
        %v2915 = vpop.f32.mrb[0].mxu0
        %v2916 = vadd.f32 0.0, %v2915
        %v2917 = vpop.f32.mrb[0].mxu0
        %2918 = vmatprep.mubr.f32.mxu0 0.0
        %2919 = vmatmul.mubr.f32.gmra.mrb[0].mxu0 %v2840
        %v2920 = vpop.f32.mrb[0].mxu0
        %v2921 = vadd.f32 0.0, %v2920
        %v2922 = vpop.f32.mrb[0].mxu0
        %2923 = vmatprep.mubr.f32.mxu0 0.0
        %2924 = vmatmul.mubr.f32.gmra.mrb[0].mxu0 %v2842
        %v2925 = vpop.f32.mrb[0].mxu0
        %v2926 = vadd.f32 0.0, %v2925
        %v2927 = vpop.f32.mrb[0].mxu0
        %2928 = vdwg.mxu0
        %v2929 = vsub.f32 %v1706, %v2911
        %v2930 = vsub.f32 %v1711, %v2916
        %v2931 = vsub.f32 %v1716, %v2921
        %v2932 = vsub.f32 %v1721, %v2926
        %v2933 = vmul.f32 %v2929, %v2929
        %v2934 = vmul.f32 %v2930, %v2930
        %v2935 = vmul.f32 %v2931, %v2931
        %v2936 = vmul.f32 %v2932, %v2932
        %v2937 = vsel %vm1386, %v2933, 0.0
        %v2938 = vsel %vm1386, %v2934, 0.0
        %v2939 = vadd.f32 %v2937, %v2938
        %v2940 = vsel %vm1386, %v2935, 0.0
        %v2941 = vadd.f32 %v2939, %v2940
        %v2942 = vsel %vm1960, %v2936, 0.0
        %v2943 = vadd.f32 %v2941, %v2942
        %2944 = vadd.xlane.f32.xlu0 %v2943
        %v2945 = vpop.xlane.xlu0 %2944
        %v2946 = vrot.slane %v2945, 4
        %v2947 = vadd.f32 %v2945, %v2946
        %v2948 = vrot.slane %v2947, 2
        %v2949 = vadd.f32 %v2947, %v2948
        %v2950 = vrot.slane %v2949, 1
        %v2951 = vadd.f32 %v2949, %v2950
        %s2952 = vtos %v2951
        %v2953 = vsub.f32 0.0, %v2569
        %v2954 = vsub.f32 0.0, %v2570
        %v2955 = vsub.f32 0.0, %v2571
        %v2956 = vsub.f32 0.0, %v2572
        %v2957 = vadd.f32 %v2569, 1e-15
        %v2958 = vadd.f32 %v2570, 1e-15
        %v2959 = vadd.f32 %v2571, 1e-15
        %v2960 = vadd.f32 %v2572, 1e-15
        %v2961 = vlog2.pop %v2957
        %v2962 = vmul.f32 %v2961, 0.6931472
        %v2963 = vlog2.pop %v2958
        %v2964 = vmul.f32 %v2963, 0.6931472
        %v2965 = vlog2.pop %v2959
        %v2966 = vmul.f32 %v2965, 0.6931472
        %v2967 = vlog2.pop %v2960
        %v2968 = vmul.f32 %v2967, 0.6931472
        %v2969 = vmul.f32 %v2953, %v2962
        %v2970 = vmul.f32 %v2954, %v2964
        %v2971 = vmul.f32 %v2955, %v2966
        %v2972 = vmul.f32 %v2956, %v2968
        %v2973 = vsel %vm2527, %v2969, 0.0
        %v2974 = vsel %vm2527, %v2970, 0.0
        %v2975 = vadd.f32 %v2973, %v2974
        %v2976 = vsel %vm2527, %v2971, 0.0
        %v2977 = vadd.f32 %v2975, %v2976
        %v2978 = vsel %vm2537, %v2972, 0.0
        %v2979 = vadd.f32 %v2977, %v2978
        %2980 = vadd.xlane.f32.xlu0 %v2979
        %v2981 = vpop.xlane.xlu0 %2980
        %v2982 = vrot.slane %v2981, 4
        %v2983 = vadd.f32 %v2981, %v2982
        %v2984 = vrot.slane %v2983, 2
        %v2985 = vadd.f32 %v2983, %v2984
        %v2986 = vrot.slane %v2985, 1
        %v2987 = vadd.f32 %v2985, %v2986
        %s2988 = vtos %v2987
        %v2990 = vsel %vm2527, %v2830, 0
        %vm2992 = vcmask 1046528
        %v2994 = vsel %vm2992, %v2681, 0
        %v2997 = vsel %vm2992, %v2683, 0
        %2999 = vmatprep.subr.mxu0 %v2997
        %3000 = vmatpush1.msra.mxu0 %v2994
        %3001 = vmatprep.subr.mxu0 0.0
        %3002 = vmatpush1.msra.mxu0 0.0
        %3003 = vmatprep.subr.mxu0 0.0
        %3004 = vmatpush1.msra.mxu0 0.0
        %3005 = vmatprep.subr.mxu0 0.0
        %3006 = vmatpush1.msra.mxu0 0.0
        %3007 = vmatprep.subr.mxu0 0.0
        %3008 = vmatpush1.msra.mxu0 0.0
        %3009 = vmatprep.subr.mxu0 0.0
        %3010 = vmatpush1.msra.mxu0 0.0
        %3011 = vmatprep.subr.mxu0 0.0
        %3012 = vmatpush1.msra.mxu0 0.0
        %3013 = vmatprep.subr.mxu0 0.0
        %3014 = vmatpush1.msra.mxu0 0.0
        %3015 = vmatprep.subr.mxu0 0.0
        %3016 = vmatpush1.msra.mxu0 0.0
        %3017 = vmatprep.subr.mxu0 0.0
        %3018 = vmatpush1.msra.mxu0 0.0
        %3019 = vmatprep.subr.mxu0 0.0
        %3020 = vmatpush1.msra.mxu0 0.0
        %3021 = vmatprep.subr.mxu0 0.0
        %3022 = vmatpush1.msra.mxu0 0.0
        %3023 = vmatprep.subr.mxu0 0.0
        %3024 = vmatpush1.msra.mxu0 0.0
        %3025 = vmatprep.subr.mxu0 0.0
        %3026 = vmatpush1.msra.mxu0 0.0
        %3027 = vmatprep.subr.mxu0 0.0
        %3028 = vmatpush1.msra.mxu0 0.0
        %3029 = vmatprep.subr.mxu0 0.0
        %3030 = vmatpush1.msra.mxu0 0.0
        %3031 = vmatprep.subr.mxu0 0.0
        %3032 = vmatpush1.msra.mxu0 0.0
        %3033 = vmatprep.subr.mxu0 0.0
        %3034 = vmatpush1.msra.mxu0 0.0
        %3035 = vmatprep.subr.mxu0 0.0
        %3036 = vmatpush1.msra.mxu0 0.0
        %3037 = vmatprep.subr.mxu0 0.0
        %3038 = vmatpush1.msra.mxu0 0.0
        %3039 = vmatprep.subr.mxu0 0.0
        %3040 = vmatpush1.msra.mxu0 0.0
        %3041 = vmatprep.subr.mxu0 0.0
        %3042 = vmatpush1.msra.mxu0 0.0
        %3043 = vmatprep.subr.mxu0 0.0
        %3044 = vmatpush1.msra.mxu0 0.0
        %3045 = vmatprep.subr.mxu0 0.0
        %3046 = vmatpush1.msra.mxu0 0.0
        %3047 = vmatprep.subr.mxu0 0.0
        %3048 = vmatpush1.msra.mxu0 0.0
        %3049 = vmatprep.subr.mxu0 0.0
        %3050 = vmatpush1.msra.mxu0 0.0
        %3051 = vmatprep.subr.mxu0 0.0
        %3052 = vmatpush1.msra.mxu0 0.0
        %3053 = vmatprep.subr.mxu0 0.0
        %3054 = vmatpush1.msra.mxu0 0.0
        %3055 = vmatprep.subr.mxu0 0.0
        %3056 = vmatpush1.msra.mxu0 0.0
        %3057 = vmatprep.subr.mxu0 0.0
        %3058 = vmatpush1.msra.mxu0 0.0
        %3059 = vmatprep.subr.mxu0 0.0
        %3060 = vmatpush1.msra.mxu0 0.0
        %3061 = vmatprep.subr.mxu0 0.0
        %3062 = vmatpush1.msra.mxu0 0.0
        %3063 = vmatprep.mubr.f32.mxu0 0.0
        %3064 = vmatmul.mubr.f32.gmra.mrb[0].mxu0 %v2990
        %v3065 = vpop.f32.mrb[0].mxu0
        %v3066 = vadd.f32 0.0, %v3065
        %v3067 = vpop.f32.mrb[0].mxu0
        %v3068 = vadd.f32 0.0, %v3067
        %3069 = vdwg.mxu0
        %vm3070 = vcmask 55296
        %v3071 = vsel %vm3070, %v2830, 0.0
        %3072 = vadd.xlane.f32.xlu0 %v3071
        %v3073 = vpop.xlane.xlu0 %3072
        %v3074 = vmax.f32 %v3073, 1.0
        %v3075 = vrcp.pop %v3074
        %v3076 = vmul.f32 %v3066, %v3075
        %v3077 = vmul.f32 %v3068, %v3075
        %v3078 = vld [vmem:[#allocation14] sm:$0xff]
        %v3079 = vld [vmem:[#allocation14 + $0x8] sm:$0xff]
        %v3080 = vld [vmem:[#allocation14 + $0x10] sm:$0xff]
        %v3081 = vld [vmem:[#allocation14 + $0x18] sm:$0xff]
        %v3082 = vld [vmem:[#allocation14 + $0x20] sm:$0xff]
        %v3083 = vld [vmem:[#allocation14 + $0x28] sm:$0xff]
        %v3084 = vld [vmem:[#allocation14 + $0x30] sm:$0xff]
        %v3085 = vld [vmem:[#allocation14 + $0x38] sm:$0xff]
        %v3086 = vld [vmem:[#allocation14 + $0x40] sm:$0xff]
        %v3087 = vld [vmem:[#allocation14 + $0x48] sm:$0xff]
        %v3088 = vld [vmem:[#allocation14 + $0x50] sm:$0xff]
        %v3089 = vld [vmem:[#allocation14 + $0x58] sm:$0xff]
        %v3090 = vld [vmem:[#allocation14 + $0x60] sm:$0xff]
        %v3091 = vld [vmem:[#allocation14 + $0x68] sm:$0xff]
        %v3092 = vld [vmem:[#allocation14 + $0x70] sm:$0xff]
        %v3093 = vld [vmem:[#allocation14 + $0x78] sm:$0xff]
        %v3094 = vld [vmem:[#allocation14 + $0x80] sm:$0xff]
        %v3095 = vld [vmem:[#allocation14 + $0x88] sm:$0xff]
        %v3096 = vld [vmem:[#allocation14 + $0x90] sm:$0xff]
        %v3097 = vld [vmem:[#allocation14 + $0x98] sm:$0xff]
        %v3098 = vld [vmem:[#allocation14 + $0xa0] sm:$0xff]
        %v3099 = vld [vmem:[#allocation14 + $0xa8] sm:$0xff]
        %v3100 = vld [vmem:[#allocation14 + $0xb0] sm:$0xff]
        %v3101 = vld [vmem:[#allocation14 + $0xb8] sm:$0xff]
        %v3102 = vld [vmem:[#allocation14 + $0xc0] sm:$0xff]
        %v3103 = vld [vmem:[#allocation14 + $0xc8] sm:$0xff]
        %v3104 = vld [vmem:[#allocation14 + $0xd0] sm:$0xff]
        %v3105 = vld [vmem:[#allocation14 + $0xd8] sm:$0xff]
        %v3106 = vld [vmem:[#allocation14 + $0xe0] sm:$0xff]
        %v3107 = vld [vmem:[#allocation14 + $0xe8] sm:$0xff]
        %v3108 = vld [vmem:[#allocation14 + $0xf0] sm:$0xff]
        %v3109 = vld [vmem:[#allocation14 + $0xf8] sm:$0xff]
        %v3110 = vld [vmem:[#allocation14 + $0x100] sm:$0xff]
        %v3111 = vld [vmem:[#allocation14 + $0x108] sm:$0xff]
        %v3112 = vld [vmem:[#allocation14 + $0x110] sm:$0xff]
        %v3113 = vld [vmem:[#allocation14 + $0x118] sm:$0xff]
        %v3114 = vld [vmem:[#allocation14 + $0x120] sm:$0xff]
        %v3115 = vld [vmem:[#allocation14 + $0x128] sm:$0xff]
        %v3116 = vld [vmem:[#allocation14 + $0x130] sm:$0xff]
        %v3117 = vld [vmem:[#allocation14 + $0x138] sm:$0xff]
        %v3118 = vld [vmem:[#allocation14 + $0x140] sm:$0xff]
        %v3119 = vld [vmem:[#allocation14 + $0x148] sm:$0xff]
        %v3120 = vld [vmem:[#allocation14 + $0x150] sm:$0xff]
        %v3121 = vld [vmem:[#allocation14 + $0x158] sm:$0xff]
        %v3122 = vld [vmem:[#allocation14 + $0x160] sm:$0xff]
        %v3123 = vld [vmem:[#allocation14 + $0x168] sm:$0xff]
        %v3124 = vld [vmem:[#allocation14 + $0x170] sm:$0xff]
        %v3125 = vld [vmem:[#allocation14 + $0x178] sm:$0xff]
        %v3126 = vld [vmem:[#allocation16] sm:$0xff]
        %v3127 = vld [vmem:[#allocation16 + $0x8] sm:$0xff]
        %v3128 = vld [vmem:[#allocation16 + $0x10] sm:$0xff]
        %v3129 = vld [vmem:[#allocation16 + $0x18] sm:$0xff]
        %v3130 = vld [vmem:[#allocation16 + $0x20] sm:$0xff]
        %v3131 = vld [vmem:[#allocation16 + $0x28] sm:$0xff]
        %v3132 = vld [vmem:[#allocation16 + $0x30] sm:$0xff]
        %v3133 = vld [vmem:[#allocation16 + $0x38] sm:$0xff]
        %v3134 = vld [vmem:[#allocation16 + $0x40] sm:$0xff]
        %v3135 = vld [vmem:[#allocation16 + $0x48] sm:$0xff]
        %v3136 = vld [vmem:[#allocation16 + $0x50] sm:$0xff]
        %v3137 = vld [vmem:[#allocation16 + $0x58] sm:$0xff]
        %v3138 = vld [vmem:[#allocation16 + $0x60] sm:$0xff]
        %v3139 = vld [vmem:[#allocation16 + $0x68] sm:$0xff]
        %v3140 = vld [vmem:[#allocation16 + $0x70] sm:$0xff]
        %v3141 = vld [vmem:[#allocation16 + $0x78] sm:$0xff]
        %v3142 = vld [vmem:[#allocation16 + $0x80] sm:$0xff]
        %v3143 = vld [vmem:[#allocation16 + $0x88] sm:$0xff]
        %v3144 = vld [vmem:[#allocation16 + $0x90] sm:$0xff]
        %v3145 = vld [vmem:[#allocation16 + $0x98] sm:$0xff]
        %v3146 = vld [vmem:[#allocation16 + $0xa0] sm:$0xff]
        %v3147 = vld [vmem:[#allocation16 + $0xa8] sm:$0xff]
        %v3148 = vld [vmem:[#allocation16 + $0xb0] sm:$0xff]
        %v3149 = vld [vmem:[#allocation16 + $0xb8] sm:$0xff]
        %v3150 = vld [vmem:[#allocation16 + $0xc0] sm:$0xff]
        %v3151 = vld [vmem:[#allocation16 + $0xc8] sm:$0xff]
        %v3152 = vld [vmem:[#allocation16 + $0xd0] sm:$0xff]
        %v3153 = vld [vmem:[#allocation16 + $0xd8] sm:$0xff]
        %v3154 = vld [vmem:[#allocation16 + $0xe0] sm:$0xff]
        %v3155 = vld [vmem:[#allocation16 + $0xe8] sm:$0xff]
        %v3156 = vld [vmem:[#allocation16 + $0xf0] sm:$0xff]
        %v3157 = vld [vmem:[#allocation16 + $0xf8] sm:$0xff]
        %v3158 = vld [vmem:[#allocation16 + $0x100] sm:$0xff]
        %v3159 = vld [vmem:[#allocation16 + $0x108] sm:$0xff]
        %v3160 = vld [vmem:[#allocation16 + $0x110] sm:$0xff]
        %v3161 = vld [vmem:[#allocation16 + $0x118] sm:$0xff]
        %v3162 = vld [vmem:[#allocation16 + $0x120] sm:$0xff]
        %v3163 = vld [vmem:[#allocation16 + $0x128] sm:$0xff]
        %v3164 = vld [vmem:[#allocation16 + $0x130] sm:$0xff]
        %v3165 = vld [vmem:[#allocation16 + $0x138] sm:$0xff]
        %v3166 = vld [vmem:[#allocation16 + $0x140] sm:$0xff]
        %v3167 = vld [vmem:[#allocation16 + $0x148] sm:$0xff]
        %v3168 = vld [vmem:[#allocation16 + $0x150] sm:$0xff]
        %v3169 = vld [vmem:[#allocation16 + $0x158] sm:$0xff]
        %v3170 = vld [vmem:[#allocation16 + $0x160] sm:$0xff]
        %v3171 = vld [vmem:[#allocation16 + $0x168] sm:$0xff]
        %v3172 = vld [vmem:[#allocation16 + $0x170] sm:$0xff]
        %v3173 = vld [vmem:[#allocation16 + $0x178] sm:$0xff]
        %v3174 = vsel %vm2028, %v2683, 0
        %3176 = vmatprep.subr.mxu0 %v3127
        %3177 = vmatpush1.msra.mxu0 %v3126
        %3178 = vmatprep.subr.mxu0 %v3129
        %3179 = vmatpush1.msra.mxu0 %v3128
        %3180 = vmatprep.subr.mxu0 %v3131
        %3181 = vmatpush1.msra.mxu0 %v3130
        %3182 = vmatprep.subr.mxu0 %v3133
        %3183 = vmatpush1.msra.mxu0 %v3132
        %3184 = vmatprep.subr.mxu0 %v3135
        %3185 = vmatpush1.msra.mxu0 %v3134
        %3186 = vmatprep.subr.mxu0 %v3137
        %3187 = vmatpush1.msra.mxu0 %v3136
        %3188 = vmatprep.subr.mxu0 %v3139
        %3189 = vmatpush1.msra.mxu0 %v3138
        %3190 = vmatprep.subr.mxu0 %v3141
        %3191 = vmatpush1.msra.mxu0 %v3140
        %3192 = vmatprep.subr.mxu0 %v3143
        %3193 = vmatpush1.msra.mxu0 %v3142
        %3194 = vmatprep.subr.mxu0 %v3145
        %3195 = vmatpush1.msra.mxu0 %v3144
        %3196 = vmatprep.subr.mxu0 %v3147
        %3197 = vmatpush1.msra.mxu0 %v3146
        %3198 = vmatprep.subr.mxu0 %v3149
        %3199 = vmatpush1.msra.mxu0 %v3148
        %3200 = vmatprep.subr.mxu0 %v3151
        %3201 = vmatpush1.msra.mxu0 %v3150
        %3202 = vmatprep.subr.mxu0 %v3153
        %3203 = vmatpush1.msra.mxu0 %v3152
        %3204 = vmatprep.subr.mxu0 %v3155
        %3205 = vmatpush1.msra.mxu0 %v3154
        %3206 = vmatprep.subr.mxu0 %v3157
        %3207 = vmatpush1.msra.mxu0 %v3156
        %3208 = vmatprep.subr.mxu0 %v3159
        %3209 = vmatpush1.msra.mxu0 %v3158
        %3210 = vmatprep.subr.mxu0 %v3161
        %3211 = vmatpush1.msra.mxu0 %v3160
        %3212 = vmatprep.subr.mxu0 %v3163
        %3213 = vmatpush1.msra.mxu0 %v3162
        %3214 = vmatprep.subr.mxu0 %v3165
        %3215 = vmatpush1.msra.mxu0 %v3164
        %3216 = vmatprep.subr.mxu0 %v3167
        %3217 = vmatpush1.msra.mxu0 %v3166
        %3218 = vmatprep.subr.mxu0 %v3169
        %3219 = vmatpush1.msra.mxu0 %v3168
        %3220 = vmatprep.subr.mxu0 %v3171
        %3221 = vmatpush1.msra.mxu0 %v3170
        %3222 = vmatprep.subr.mxu0 %v3173
        %3223 = vmatpush1.msra.mxu0 %v3172
        %3224 = vmatprep.subr.mxu0 0.0
        %3225 = vmatpush1.msra.mxu0 0.0
        %3226 = vmatprep.subr.mxu0 0.0
        %3227 = vmatpush1.msra.mxu0 0.0
        %3228 = vmatprep.subr.mxu0 0.0
        %3229 = vmatpush1.msra.mxu0 0.0
        %3230 = vmatprep.subr.mxu0 0.0
        %3231 = vmatpush1.msra.mxu0 0.0
        %3232 = vmatprep.subr.mxu0 0.0
        %3233 = vmatpush1.msra.mxu0 0.0
        %3234 = vmatprep.subr.mxu0 0.0
        %3235 = vmatpush1.msra.mxu0 0.0
        %3236 = vmatprep.subr.mxu0 0.0
        %3237 = vmatpush1.msra.mxu0 0.0
        %3238 = vmatprep.subr.mxu0 0.0
        %3239 = vmatpush1.msra.mxu0 0.0
        %3240 = vmatprep.mubr.f32.mxu0 %v3174
        %3241 = vmatmul.mubr.f32.gmra.mrb[0].mxu0 %v2681
        %v3242 = vpop.f32.mrb[0].mxu0
        %v3243 = vadd.f32 0.0, %v3242
        %v3244 = vpop.f32.mrb[0].mxu0
        %v3245 = vadd.f32 0.0, %v3244
        %3246 = vdwg.mxu0
        %v3248 = vsel %vm2028, %v3077, 0
        %3250 = vmatprep.subr.mxu0 %v3079
        %3251 = vmatpush1.msra.mxu0 %v3078
        %3252 = vmatprep.subr.mxu0 %v3081
        %3253 = vmatpush1.msra.mxu0 %v3080
        %3254 = vmatprep.subr.mxu0 %v3083
        %3255 = vmatpush1.msra.mxu0 %v3082
        %3256 = vmatprep.subr.mxu0 %v3085
        %3257 = vmatpush1.msra.mxu0 %v3084
        %3258 = vmatprep.subr.mxu0 %v3087
        %3259 = vmatpush1.msra.mxu0 %v3086
        %3260 = vmatprep.subr.mxu0 %v3089
        %3261 = vmatpush1.msra.mxu0 %v3088
        %3262 = vmatprep.subr.mxu0 %v3091
        %3263 = vmatpush1.msra.mxu0 %v3090
        %3264 = vmatprep.subr.mxu0 %v3093
        %3265 = vmatpush1.msra.mxu0 %v3092
        %3266 = vmatprep.subr.mxu0 %v3095
        %3267 = vmatpush1.msra.mxu0 %v3094
        %3268 = vmatprep.subr.mxu0 %v3097
        %3269 = vmatpush1.msra.mxu0 %v3096
        %3270 = vmatprep.subr.mxu0 %v3099
        %3271 = vmatpush1.msra.mxu0 %v3098
        %3272 = vmatprep.subr.mxu0 %v3101
        %3273 = vmatpush1.msra.mxu0 %v3100
        %3274 = vmatprep.subr.mxu0 %v3103
        %3275 = vmatpush1.msra.mxu0 %v3102
        %3276 = vmatprep.subr.mxu0 %v3105
        %3277 = vmatpush1.msra.mxu0 %v3104
        %3278 = vmatprep.subr.mxu0 %v3107
        %3279 = vmatpush1.msra.mxu0 %v3106
        %3280 = vmatprep.subr.mxu0 %v3109
        %3281 = vmatpush1.msra.mxu0 %v3108
        %3282 = vmatprep.subr.mxu0 %v3111
        %3283 = vmatpush1.msra.mxu0 %v3110
        %3284 = vmatprep.subr.mxu0 %v3113
        %3285 = vmatpush1.msra.mxu0 %v3112
        %3286 = vmatprep.subr.mxu0 %v3115
        %3287 = vmatpush1.msra.mxu0 %v3114
        %3288 = vmatprep.subr.mxu0 %v3117
        %3289 = vmatpush1.msra.mxu0 %v3116
        %3290 = vmatprep.subr.mxu0 %v3119
        %3291 = vmatpush1.msra.mxu0 %v3118
        %3292 = vmatprep.subr.mxu0 %v3121
        %3293 = vmatpush1.msra.mxu0 %v3120
        %3294 = vmatprep.subr.mxu0 %v3123
        %3295 = vmatpush1.msra.mxu0 %v3122
        %3296 = vmatprep.subr.mxu0 %v3125
        %3297 = vmatpush1.msra.mxu0 %v3124
        %3298 = vmatprep.subr.mxu0 0.0
        %3299 = vmatpush1.msra.mxu0 0.0
        %3300 = vmatprep.subr.mxu0 0.0
        %3301 = vmatpush1.msra.mxu0 0.0
        %3302 = vmatprep.subr.mxu0 0.0
        %3303 = vmatpush1.msra.mxu0 0.0
        %3304 = vmatprep.subr.mxu0 0.0
        %3305 = vmatpush1.msra.mxu0 0.0
        %3306 = vmatprep.subr.mxu0 0.0
        %3307 = vmatpush1.msra.mxu0 0.0
        %3308 = vmatprep.subr.mxu0 0.0
        %3309 = vmatpush1.msra.mxu0 0.0
        %3310 = vmatprep.subr.mxu0 0.0
        %3311 = vmatpush1.msra.mxu0 0.0
        %3312 = vmatprep.subr.mxu0 0.0
        %3313 = vmatpush1.msra.mxu0 0.0
        %3314 = vmatprep.mubr.f32.mxu0 %v3248
        %3315 = vmatmul.mubr.f32.gmra.mrb[0].mxu0 %v3076
        %v3316 = vpop.f32.mrb[0].mxu0
        %v3317 = vadd.f32 %v3243, %v3316
        %v3318 = vpop.f32.mrb[0].mxu0
        %v3319 = vadd.f32 %v3245, %v3318
        %3320 = vdwg.mxu0
        %v3321 = vld [vmem:[%s16] sm:$0x3]
        %v3323 = vlaneseq
        %v3324 = vshrl.u32 %v3323, 7
        %v3325 = vsub.s32 0, %v3324
        %v3326 = vrot.slane %v3321, %v3325
        %v3327 = vlaneseq
        %v3328 = vshrl.u32 %v3327, 7
        %v3329 = vsub.s32 1, %v3328
        %v3330 = vrot.slane %v3321, %v3329
        %v3333 = vadd.f32 %v3317, %v3326
        %v3334 = vadd.f32 %v3319, %v3330
        %v3335 = vsel %vm2992, %v3333, 0.0
        %v3336 = vrot.slane %v3335, 4
        %v3337 = vadd.f32 %v3335, %v3336
        %v3338 = vrot.slane %v3337, 2
        %v3339 = vadd.f32 %v3337, %v3338
        %v3340 = vrot.slane %v3339, 1
        %v3341 = vadd.f32 %v3339, %v3340
        %vm3342 = vcmask 522240
        %v3343 = vsel %vm3342, %v3334, 0.0
        %v3344 = vrot.slane %v3343, 4
        %v3345 = vadd.f32 %v3343, %v3344
        %v3346 = vrot.slane %v3345, 2
        %v3347 = vadd.f32 %v3345, %v3346
        %v3348 = vrot.slane %v3347, 1
        %v3349 = vadd.f32 %v3347, %v3348
        %v3350 = vrcp.pop 7.0
        %v3351 = vmul.f32 %v3341, %v3350
        %v3352 = vmul.f32 %v3349, %v3350
        %v3353 = vld [vmem:[#allocation17] sm:$0xff]
        %v3354 = vld [vmem:[#allocation17 + $0x8] sm:$0xff]
        %v3355 = vld [vmem:[#allocation17 + $0x10] sm:$0xff]
        %v3356 = vld [vmem:[#allocation17 + $0x18] sm:$0xff]
        %v3357 = vld [vmem:[#allocation17 + $0x20] sm:$0xff]
        %v3358 = vld [vmem:[#allocation17 + $0x28] sm:$0xff]
        %v3359 = vld [vmem:[#allocation17 + $0x30] sm:$0xff]
        %v3360 = vld [vmem:[#allocation17 + $0x38] sm:$0xff]
        %v3361 = vld [vmem:[#allocation17 + $0x40] sm:$0xff]
        %v3362 = vld [vmem:[#allocation17 + $0x48] sm:$0xff]
        %v3363 = vld [vmem:[#allocation17 + $0x50] sm:$0xff]
        %v3364 = vld [vmem:[#allocation17 + $0x58] sm:$0xff]
        %v3365 = vld [vmem:[#allocation17 + $0x60] sm:$0xff]
        %v3366 = vld [vmem:[#allocation17 + $0x68] sm:$0xff]
        %v3367 = vld [vmem:[#allocation17 + $0x70] sm:$0xff]
        %v3368 = vld [vmem:[#allocation17 + $0x78] sm:$0xff]
        %v3369 = vld [vmem:[#allocation17 + $0x80] sm:$0xff]
        %v3370 = vld [vmem:[#allocation17 + $0x88] sm:$0xff]
        %v3371 = vld [vmem:[#allocation17 + $0x90] sm:$0xff]
        %v3372 = vld [vmem:[#allocation17 + $0x98] sm:$0xff]
        %v3373 = vld [vmem:[#allocation17 + $0xa0] sm:$0xff]
        %v3374 = vld [vmem:[#allocation17 + $0xa8] sm:$0xff]
        %v3375 = vld [vmem:[#allocation17 + $0xb0] sm:$0xff]
        %v3376 = vld [vmem:[#allocation17 + $0xb8] sm:$0xff]
        %v3377 = vld [vmem:[#allocation17 + $0xc0] sm:$0xff]
        %v3378 = vld [vmem:[#allocation17 + $0xc8] sm:$0xff]
        %v3379 = vld [vmem:[#allocation17 + $0xd0] sm:$0xff]
        %v3380 = vld [vmem:[#allocation17 + $0xd8] sm:$0xff]
        %v3381 = vld [vmem:[#allocation17 + $0xe0] sm:$0xff]
        %v3382 = vld [vmem:[#allocation17 + $0xe8] sm:$0xff]
        %v3383 = vld [vmem:[#allocation17 + $0xf0] sm:$0xff]
        %v3384 = vld [vmem:[#allocation17 + $0xf8] sm:$0xff]
        %v3385 = vld [vmem:[#allocation17 + $0x100] sm:$0xff]
        %v3386 = vld [vmem:[#allocation17 + $0x108] sm:$0xff]
        %v3387 = vld [vmem:[#allocation17 + $0x110] sm:$0xff]
        %v3388 = vld [vmem:[#allocation17 + $0x118] sm:$0xff]
        %v3389 = vld [vmem:[#allocation17 + $0x120] sm:$0xff]
        %v3390 = vld [vmem:[#allocation17 + $0x128] sm:$0xff]
        %v3391 = vld [vmem:[#allocation17 + $0x130] sm:$0xff]
        %v3392 = vld [vmem:[#allocation17 + $0x138] sm:$0xff]
        %v3393 = vld [vmem:[#allocation17 + $0x140] sm:$0xff]
        %v3394 = vld [vmem:[#allocation17 + $0x148] sm:$0xff]
        %v3395 = vld [vmem:[#allocation17 + $0x150] sm:$0xff]
        %v3396 = vld [vmem:[#allocation17 + $0x158] sm:$0xff]
        %v3397 = vld [vmem:[#allocation17 + $0x160] sm:$0xff]
        %v3398 = vld [vmem:[#allocation17 + $0x168] sm:$0xff]
        %v3399 = vld [vmem:[#allocation17 + $0x170] sm:$0xff]
        %v3400 = vld [vmem:[#allocation17 + $0x178] sm:$0xff]
        %v3401 = vld [vmem:[%s18] sm:$0x3]
        %v3403 = vlaneseq
        %v3404 = vshrl.u32 %v3403, 7
        %v3405 = vsub.s32 0, %v3404
        %v3406 = vrot.slane %v3401, %v3405
        %v3407 = vlaneseq
        %v3408 = vshrl.u32 %v3407, 7
        %v3409 = vsub.s32 1, %v3408
        %v3410 = vrot.slane %v3401, %v3409
        %v3414 = vsel %vm2028, %v3352, 0
        %3416 = vmatprep.subr.mxu0 %v3354
        %3417 = vmatpush1.msra.mxu0 %v3353
        %3418 = vmatprep.subr.mxu0 %v3356
        %3419 = vmatpush1.msra.mxu0 %v3355
        %3420 = vmatprep.subr.mxu0 %v3358
        %3421 = vmatpush1.msra.mxu0 %v3357
        %3422 = vmatprep.subr.mxu0 %v3360
        %3423 = vmatpush1.msra.mxu0 %v3359
        %3424 = vmatprep.subr.mxu0 %v3362
        %3425 = vmatpush1.msra.mxu0 %v3361
        %3426 = vmatprep.subr.mxu0 %v3364
        %3427 = vmatpush1.msra.mxu0 %v3363
        %3428 = vmatprep.subr.mxu0 %v3366
        %3429 = vmatpush1.msra.mxu0 %v3365
        %3430 = vmatprep.subr.mxu0 %v3368
        %3431 = vmatpush1.msra.mxu0 %v3367
        %3432 = vmatprep.subr.mxu0 %v3370
        %3433 = vmatpush1.msra.mxu0 %v3369
        %3434 = vmatprep.subr.mxu0 %v3372
        %3435 = vmatpush1.msra.mxu0 %v3371
        %3436 = vmatprep.subr.mxu0 %v3374
        %3437 = vmatpush1.msra.mxu0 %v3373
        %3438 = vmatprep.subr.mxu0 %v3376
        %3439 = vmatpush1.msra.mxu0 %v3375
        %3440 = vmatprep.subr.mxu0 %v3378
        %3441 = vmatpush1.msra.mxu0 %v3377
        %3442 = vmatprep.subr.mxu0 %v3380
        %3443 = vmatpush1.msra.mxu0 %v3379
        %3444 = vmatprep.subr.mxu0 %v3382
        %3445 = vmatpush1.msra.mxu0 %v3381
        %3446 = vmatprep.subr.mxu0 %v3384
        %3447 = vmatpush1.msra.mxu0 %v3383
        %3448 = vmatprep.subr.mxu0 %v3386
        %3449 = vmatpush1.msra.mxu0 %v3385
        %3450 = vmatprep.subr.mxu0 %v3388
        %3451 = vmatpush1.msra.mxu0 %v3387
        %3452 = vmatprep.subr.mxu0 %v3390
        %3453 = vmatpush1.msra.mxu0 %v3389
        %3454 = vmatprep.subr.mxu0 %v3392
        %3455 = vmatpush1.msra.mxu0 %v3391
        %3456 = vmatprep.subr.mxu0 %v3394
        %3457 = vmatpush1.msra.mxu0 %v3393
        %3458 = vmatprep.subr.mxu0 %v3396
        %3459 = vmatpush1.msra.mxu0 %v3395
        %3460 = vmatprep.subr.mxu0 %v3398
        %3461 = vmatpush1.msra.mxu0 %v3397
        %3462 = vmatprep.subr.mxu0 %v3400
        %3463 = vmatpush1.msra.mxu0 %v3399
        %3464 = vmatprep.subr.mxu0 0.0
        %3465 = vmatpush1.msra.mxu0 0.0
        %3466 = vmatprep.subr.mxu0 0.0
        %3467 = vmatpush1.msra.mxu0 0.0
        %3468 = vmatprep.subr.mxu0 0.0
        %3469 = vmatpush1.msra.mxu0 0.0
        %3470 = vmatprep.subr.mxu0 0.0
        %3471 = vmatpush1.msra.mxu0 0.0
        %3472 = vmatprep.subr.mxu0 0.0
        %3473 = vmatpush1.msra.mxu0 0.0
        %3474 = vmatprep.subr.mxu0 0.0
        %3475 = vmatpush1.msra.mxu0 0.0
        %3476 = vmatprep.subr.mxu0 0.0
        %3477 = vmatpush1.msra.mxu0 0.0
        %3478 = vmatprep.subr.mxu0 0.0
        %3479 = vmatpush1.msra.mxu0 0.0
        %3480 = vmatprep.mubr.f32.mxu0 %v3414
        %3481 = vmatmul.mubr.f32.gmra.mrb[0].mxu0 %v3351
        %v3482 = vpop.f32.mrb[0].mxu0
        %v3483 = vadd.f32 %v3406, %v3482
        %v3484 = vpop.f32.mrb[0].mxu0
        %v3485 = vadd.f32 %v3410, %v3484
        %3486 = vdwg.mxu0
        %v3487 = vmax.f32 %v3483, 0.0
        %v3488 = vmax.f32 %v3485, 0.0
        %v3489 = vld [vmem:[%s19] sm:$0xff]
        %v3490 = vld [vmem:[%s19 + $0x8] sm:$0xff]
        %v3491 = vld [vmem:[%s19 + $0x10] sm:$0xff]
        %v3492 = vld [vmem:[%s19 + $0x18] sm:$0xff]
        %v3493 = vld [vmem:[%s19 + $0x20] sm:$0xff]
        %v3494 = vld [vmem:[%s19 + $0x28] sm:$0xff]
        %v3495 = vld [vmem:[%s19 + $0x30] sm:$0xff]
        %v3496 = vld [vmem:[%s19 + $0x38] sm:$0xff]
        %v3497 = vld [vmem:[%s19 + $0x40] sm:$0xff]
        %v3498 = vld [vmem:[%s19 + $0x48] sm:$0xff]
        %v3499 = vld [vmem:[%s19 + $0x50] sm:$0xff]
        %v3500 = vld [vmem:[%s19 + $0x58] sm:$0xff]
        %v3501 = vld [vmem:[%s19 + $0x60] sm:$0xff]
        %v3502 = vld [vmem:[%s19 + $0x68] sm:$0xff]
        %v3503 = vld [vmem:[%s19 + $0x70] sm:$0xff]
        %v3504 = vld [vmem:[%s19 + $0x78] sm:$0xff]
        %v3505 = vld [vmem:[%s19 + $0x80] sm:$0xff]
        %v3506 = vld [vmem:[%s19 + $0x88] sm:$0xff]
        %v3507 = vld [vmem:[%s19 + $0x90] sm:$0xff]
        %v3508 = vld [vmem:[%s19 + $0x98] sm:$0xff]
        %v3509 = vld [vmem:[%s19 + $0xa0] sm:$0xff]
        %v3510 = vld [vmem:[%s19 + $0xa8] sm:$0xff]
        %v3511 = vld [vmem:[%s19 + $0xb0] sm:$0xff]
        %v3512 = vld [vmem:[%s19 + $0xb8] sm:$0xff]
        %v3513 = vld [vmem:[%s20] sm:$0x1]
        %v3515 = vsel %vm2028, %v3488, 0
        %3517 = vmatprep.subr.mxu0 0.0
        %3518 = vmatpush1.msra.mxu0 %v3489
        %3519 = vmatprep.subr.mxu0 0.0
        %3520 = vmatpush1.msra.mxu0 %v3490
        %3521 = vmatprep.subr.mxu0 0.0
        %3522 = vmatpush1.msra.mxu0 %v3491
        %3523 = vmatprep.subr.mxu0 0.0
        %3524 = vmatpush1.msra.mxu0 %v3492
        %3525 = vmatprep.subr.mxu0 0.0
        %3526 = vmatpush1.msra.mxu0 %v3493
        %3527 = vmatprep.subr.mxu0 0.0
        %3528 = vmatpush1.msra.mxu0 %v3494
        %3529 = vmatprep.subr.mxu0 0.0
        %3530 = vmatpush1.msra.mxu0 %v3495
        %3531 = vmatprep.subr.mxu0 0.0
        %3532 = vmatpush1.msra.mxu0 %v3496
        %3533 = vmatprep.subr.mxu0 0.0
        %3534 = vmatpush1.msra.mxu0 %v3497
        %3535 = vmatprep.subr.mxu0 0.0
        %3536 = vmatpush1.msra.mxu0 %v3498
        %3537 = vmatprep.subr.mxu0 0.0
        %3538 = vmatpush1.msra.mxu0 %v3499
        %3539 = vmatprep.subr.mxu0 0.0
        %3540 = vmatpush1.msra.mxu0 %v3500
        %3541 = vmatprep.subr.mxu0 0.0
        %3542 = vmatpush1.msra.mxu0 %v3501
        %3543 = vmatprep.subr.mxu0 0.0
        %3544 = vmatpush1.msra.mxu0 %v3502
        %3545 = vmatprep.subr.mxu0 0.0
        %3546 = vmatpush1.msra.mxu0 %v3503
        %3547 = vmatprep.subr.mxu0 0.0
        %3548 = vmatpush1.msra.mxu0 %v3504
        %3549 = vmatprep.subr.mxu0 0.0
        %3550 = vmatpush1.msra.mxu0 %v3505
        %3551 = vmatprep.subr.mxu0 0.0
        %3552 = vmatpush1.msra.mxu0 %v3506
        %3553 = vmatprep.subr.mxu0 0.0
        %3554 = vmatpush1.msra.mxu0 %v3507
        %3555 = vmatprep.subr.mxu0 0.0
        %3556 = vmatpush1.msra.mxu0 %v3508
        %3557 = vmatprep.subr.mxu0 0.0
        %3558 = vmatpush1.msra.mxu0 %v3509
        %3559 = vmatprep.subr.mxu0 0.0
        %3560 = vmatpush1.msra.mxu0 %v3510
        %3561 = vmatprep.subr.mxu0 0.0
        %3562 = vmatpush1.msra.mxu0 %v3511
        %3563 = vmatprep.subr.mxu0 0.0
        %3564 = vmatpush1.msra.mxu0 %v3512
        %3565 = vmatprep.subr.mxu0 0.0
        %3566 = vmatpush1.msra.mxu0 0.0
        %3567 = vmatprep.subr.mxu0 0.0
        %3568 = vmatpush1.msra.mxu0 0.0
        %3569 = vmatprep.subr.mxu0 0.0
        %3570 = vmatpush1.msra.mxu0 0.0
        %3571 = vmatprep.subr.mxu0 0.0
        %3572 = vmatpush1.msra.mxu0 0.0
        %3573 = vmatprep.subr.mxu0 0.0
        %3574 = vmatpush1.msra.mxu0 0.0
        %3575 = vmatprep.subr.mxu0 0.0
        %3576 = vmatpush1.msra.mxu0 0.0
        %3577 = vmatprep.subr.mxu0 0.0
        %3578 = vmatpush1.msra.mxu0 0.0
        %3579 = vmatprep.subr.mxu0 0.0
        %3580 = vmatpush1.msra.mxu0 0.0
        %3581 = vmatprep.mubr.f32.mxu0 %v3515
        %3582 = vmatmul.mubr.f32.gmra.mrb[0].mxu0 %v3487
        %v3583 = vpop.f32.mrb[0].mxu0
        %v3584 = vadd.f32 %v3513, %v3583
        %v3585 = vpop.f32.mrb[0].mxu0
        %3586 = vdwg.mxu0
        %vm3587 = vcmask 8192
        %v3588 = vsel %vm3587, %v3584, -inf
        %3589 = vmax.xlane.f32.xlu0 %v3588
        %v3590 = vpop.xlane.xlu0 %3589
        %v3591 = vsub.f32 %v3584, %v3590
        %v3592 = vmul.f32 %v3591, 1.442695
        %v3593 = vpow.pop %v3592
        %v3594 = vsel %vm3587, %v3593, 0.0
        %3595 = vadd.xlane.f32.xlu0 %v3594
        %v3596 = vpop.xlane.xlu0 %3595
        %v3597 = vlog2.pop %v3596
        %v3598 = vmul.f32 %v3597, 0.6931472
        %v3599 = vadd.f32 %v3590, %v3598
        %v3600 = vsub.f32 %v3584, %v3599
        %3601 = vst.msk [vmem:[%s878] sm:$0x1] %vm3587, %v3600
        %v3603 = vcombine.low %v3351, %v3352
        %v3605 = vunpack.c.l.s4 1966171168
        %v3606 = vunpack.c.0.s8 %v3605
        %v3607 = vlaneseq
        %v3608 = vshrl.u32 %v3607, 7
        %v3609 = vsub.s32 %v3606, %v3608
        %v3610 = vrot.slane %v3603, %v3609
        %v3612 = vunpack.c.l.s4 1966171168
        %v3613 = vunpack.c.0.s8 %v3612
        %v3614 = vlaneseq
        %v3615 = vshrl.u32 %v3614, 7
        %v3616 = vsub.s32 %v3613, %v3615
        %v3617 = vrot.slane %v3610, %v3616
        %v3619 = vlaneseq
        %vm3620 = vcmp.ge.s32.totalorder %v3619, 0
        %vm3621 = vcmp.lt.s32.totalorder %v3619, 192
        %vm3622 = vmand %vm3620, %vm3621
        %3623 = vst.msk [vmem:[%s893] sm:$0x3] %vm3622, %v3617
        %v3624 = vlaneseq
        %v3625 = vand.u32 %v3624, 127
        %vm3626 = vcmp.eq.s32.totalorder %v3625, 0
        %v3627 = vstv %s1820
        %v3628 = vsel %vm3626, %v3627, 0.0
        %vm3629 = vcmp.eq.s32.totalorder %v3625, 1
        %v3630 = vstv %s1842
        %v3631 = vsel %vm3629, %v3630, 0.0
        %v3632 = vadd.f32 %v3628, %v3631
        %vm3633 = vcmp.eq.s32.totalorder %v3625, 2
        %v3634 = vstv %s2952
        %v3635 = vsel %vm3633, %v3634, 0.0
        %v3636 = vadd.f32 %v3632, %v3635
        %vm3637 = vcmp.eq.s32.totalorder %v3625, 3
        %v3638 = vstv %s2988
        %v3639 = vsel %vm3637, %v3638, 0.0
        %v3640 = vadd.f32 %v3636, %v3639
        %vm3641 = vcmask 24576
        %3642 = vst.msk [vmem:[%s896] sm:$0x1] %vm3641, %v3640
        %s3643 = sand.u32 %s507, 1
        %s3644 = scalar_lea.sflag [#allocation4], %s3643
        %s3645 = sand.u32 %s507, 1
        %s3646 = scalar_lea.vmem [#allocation19], %s3645
        %p3647 = scmp.lt.s32.totalorder %s48, 1
        %s3648 = scalar_select %p3647, %s48, 1
        %s3649 = smul.addr %s3648, 2
        %s3650 = scalar_lea.vmem %s22, %s3649
        %p3651 = scmp.lt.s32.totalorder %s48, 1
        %s3652 = scalar_select %p3651, %s48, 1
        %s3653 = scalar_lea.vmem %s23, %s3652
        // Predicated region
        $region145: #{net_forward.1} parent=103 // pred_check
          %p3654 = pneg %p517
        $region146: #{net_forward.1} parent=103 // pred_check_branch
          %3656 = sbr.rel (%p3654) target = $region148
        $region147: #{net_forward.1} parent=103 // pred_region
          %s3658 = ssub.s32 16, 16
          %3659 = vsyncadd %s3644, %s3658
          %s3660 = smul.addr %s48, 16
          %s3661 = scalar_lea.hbm %s21, %s3660
          %s3663 = sshll.u32 %s3646, 4
          %s3664 = int_to_ptr.vmem [resolvable:$true] %s3663
          %3666 = dma.vmem_to_hbm [thread:$0]  %s3664, 16, %s3661, %s3644
        $region148: #{net_forward.1} parent=103 // pred_fallthru
          _
        // Predicated region
        $region149: #{net_forward.1} parent=103 // pred_check
          %p3667 = pneg %p543
        $region150: #{net_forward.1} parent=103 // pred_check_branch
          %3669 = sbr.rel (%p3667) target = $region152
        $region151: #{net_forward.1} parent=103 // pred_region
          _
        $region152: #{net_forward.1} parent=103 // pred_fallthru
          _
        // Predicated region
        $region153: #{net_forward.1} parent=103 // pred_check
          %p3670 = pneg %p569
        $region154: #{net_forward.1} parent=103 // pred_check_branch
          %3672 = sbr.rel (%p3670) target = $region156
        $region155: #{net_forward.1} parent=103 // pred_region
          _
        $region156: #{net_forward.1} parent=103 // pred_fallthru
          _
      $region104: #{net_forward.1} parent=5 // pred_fallthru
        _
      %p3673 = scmp.le.s32.totalorder 2, %s43
      // Predicated region
      $region157: #{net_forward.1} parent=5 // pred_check
        %p3674 = pneg %p3673
      $region158: #{net_forward.1} parent=5 // pred_check_branch
        %3676 = sbr.rel (%p3674) target = $region160
      $region159: #{net_forward.1} parent=5 // pred_region
        %s3677 = ssub.s32 %s43, 2
        // Predicated region
        $region161: #{net_forward.1} parent=159 // pred_check
          %p3678 = pneg %p523
        $region162: #{net_forward.1} parent=159 // pred_check_branch
          %3680 = sbr.rel (%p3678) target = $region164
        $region163: #{net_forward.1} parent=159 // pred_region
          %s3681 = sand.u32 %s508, 1
          %s3682 = scalar_lea.sflag [#allocation4], %s3681
          %s3683 = sand.u32 %s508, 1
          %s3684 = scalar_lea.vmem [#allocation19], %s3683
          %3685 = dma.done %s3682, 16
        $region164: #{net_forward.1} parent=159 // pred_fallthru
          _
        // Predicated region
        $region165: #{net_forward.1} parent=159 // pred_check
          %p3686 = pneg %p549
        $region166: #{net_forward.1} parent=159 // pred_check_branch
          %3688 = sbr.rel (%p3686) target = $region168
        $region167: #{net_forward.1} parent=159 // pred_region
          %p3689 = scmp.lt.s32.totalorder %s49, 1
          %s3690 = scalar_select %p3689, %s49, 1
          %s3691 = smul.addr %s3690, 2
          %s3692 = scalar_lea.vmem %s22, %s3691
        $region168: #{net_forward.1} parent=159 // pred_fallthru
          _
        // Predicated region
        $region169: #{net_forward.1} parent=159 // pred_check
          %p3693 = pneg %p575
        $region170: #{net_forward.1} parent=159 // pred_check_branch
          %3695 = sbr.rel (%p3693) target = $region172
        $region171: #{net_forward.1} parent=159 // pred_region
          %p3696 = scmp.lt.s32.totalorder %s49, 1
          %s3697 = scalar_select %p3696, %s49, 1
          %s3698 = scalar_lea.vmem %s23, %s3697
        $region172: #{net_forward.1} parent=159 // pred_fallthru
          _
      $region160: #{net_forward.1} parent=5 // pred_fallthru
        _
    $region6: #{net_forward.1} parent=1 // loop_footer
      %s47 = sadd.s32 1, %s43
    $region7: #{net_forward.1} parent=1 // loop_footer_branch
      %42 = sbr.rel target = $region3
    $region8: #{net_forward.1} parent=1 // loop_exit
      _
    %3699 = vsyncpa [#allocation3], 1
    %s3700 = scalar_lea.sflag [#allocation3], 1
    %3701 = vsyncpa %s3700, 1
    %3702 = vsyncpa [#allocation6], 1
    %s3703 = scalar_lea.sflag [#allocation6], 1
    %3704 = vsyncpa %s3703, 1
    %3705 = vsyncpa [#allocation9], 1
    %3706 = vsyncpa [#allocation12], 1
    %3707 = vsyncpa [#allocation15], 1
    %3708 = vsyncpa [#allocation18], 1
    %3709 = vsyncpa [#allocation4], 1
    %s3710 = scalar_lea.sflag [#allocation4], 1
    %3711 = vsyncpa %s3710, 1

</llo_original>
